<compile_context>
chip_gen: v7x
topology: tpu7x:2x2x1
jax: 0.10.0
libtpu: 0.0.40
codegen_flags: <defaults>
</compile_context>

<pallas_src>
import functools

import jax
import jax.numpy as jnp
from jax import lax
from jax.experimental import pallas as pl
from jax.experimental.pallas import tpu as pltpu

NUM_GROUPS = 32     # nn.GroupNorm(32, out_channels)
EPS = 1e-5          # PyTorch GroupNorm default eps


def _corblock_rt_kernel(*refs, H, W, Cin, Cout, K, has_input, add_state):
    """Fused per-sample forward:
       skip = relu(GN(conv_input(x) + b)) [+ state]   (or skip = state / 0 when inp is None)
       out  = relu(GN(conv1(skip)))
    Everything between the input DMA and the output DMA stays in VMEM / vregs."""
    it = iter(refs)
    if has_input:
        x_ref = next(it)
        w_in_ref = next(it)
        b_in_ref = next(it)
        g_in_ref = next(it)
        bt_in_ref = next(it)
    w1_ref = next(it)
    g1_ref = next(it)
    bt1_ref = next(it)
    gid_r_ref = next(it)          # (Cout, 1) f32 per-channel group id
    gid_c_ref = next(it)          # (1, Cout) f32 per-channel group id
    st_ref = next(it) if add_state else None
    out_ref = next(it)

    cg = Cout // NUM_GROUPS
    inv_npx = 1.0 / float(H * W * cg)
    npix = float(H * W)

    # Group-average matrix rebuilt in-kernel from two tiny group-id vectors (no HBM DMA of a
    # Cout x Cout matrix): gavg[c, d] = 1/(H*W*Cg) iff group(c) == group(d).
    gavg = jnp.where(gid_r_ref[...] == gid_c_ref[...],
                     jnp.float32(inv_npx), jnp.float32(0.0))

    def pad_same(x3, p, C):
        """Zero-bordered (H+2p, W+2p, C) halo built as a value (no scratch memset/store/load)."""
        if p == 0:
            return x3
        dt = x3.dtype
        zc = jnp.zeros((H, p, C), dt)
        mid = jnp.concatenate([zc, x3, zc], axis=1)
        zr = jnp.zeros((p, W + 2 * p, C), dt)
        return jnp.concatenate([zr, mid, zr], axis=0)

    def conv_same(xpad, w2_ref, ksize, C):
        """SAME stride-1 conv as a single weight-stationary MXU pass:
        (H*W, k*k*C) @ (k*k*C, Cout) with f32 accumulation (no VMEM accumulator round-trips).
        dy offsets are free major-axis slices; dx offsets are sublane shifts; taps are folded
        onto the lane axis so the contraction K = k*k*C is long."""
        # NOTE: for C not a multiple of 128 (small-C layers) the lane concat needs XLU shuffles.
        slab = jnp.concatenate(
            [xpad[dy:dy + H, dx:dx + W, :] for dy in range(ksize) for dx in range(ksize)],
            axis=-1)                                        # (H, W, k*k*C)
        # TODO(synk): for W % 8 != 0 feature maps (7/14/28) pad H*W to a multiple of 8 so this
        # flatten stays a free re-tiling instead of a relayout.
        slab = slab.reshape(H * W, ksize * ksize * C)       # free when W % 8 == 0
        return jnp.dot(slab, w2_ref[...], preferred_element_type=jnp.float32)

    def gn_relu(a2d, gamma, beta, bias=None):
        """GroupNorm + affine + ReLU with a fused per-channel scale/shift epilogue:
        one sum/sum-of-squares reduction pass and one fma+max pass over the (H*W, C) tensor.
        An optional per-channel conv bias is folded into the statistics and the shift
        analytically, so it never requires a separate pass over the big tensor."""
        s1 = jnp.sum(a2d, axis=0, keepdims=True)            # (1, C)  sum(x)
        s2 = jnp.sum(a2d * a2d, axis=0, keepdims=True)      # (1, C)  sum(x^2)
        if bias is not None:
            s2 = s2 + (2.0 * bias) * s1 + npix * bias * bias
            s1 = s1 + npix * bias
        stats = jnp.concatenate([s1, s2], axis=0)                              # (2, C)
        gstats = jnp.dot(stats, gavg, preferred_element_type=jnp.float32)      # per-group means
        mean = gstats[0:1]
        var = jnp.maximum(gstats[1:2] - mean * mean, 0.0)   # clamped E[x^2]-E[x]^2 (f32 inputs)
        scale = gamma * lax.rsqrt(var + EPS)
        shift = beta - mean * scale
        if bias is not None:
            shift = shift + bias * scale
        return jnp.maximum(a2d * scale + shift, 0.0)

    # ---- stage 1: skip = relu(norm_input(conv_input(x))) [+ state] ----
    if has_input:
        xpad = pad_same(x_ref[0], K // 2, Cin)
        a1 = conv_same(xpad, w_in_ref, K, Cin)
        skip = gn_relu(a1, g_in_ref[...], bt_in_ref[...], bias=b_in_ref[...])
        if add_state:
            skip = skip + st_ref[0].astype(jnp.float32)
    else:
        # PyTorch path: inp=None -> zeros tensor, so skip is just the state (or zeros).
        skip = (st_ref[0].astype(jnp.float32) if add_state
                else jnp.zeros((H * W, Cout), jnp.float32))

    # ---- stage 2: out = relu(norm1(conv1(skip)))   (conv1: 3x3, stride 1, no bias) ----
    # TODO(synk): skip (incl. the recurrent state contribution) is carried in bf16 into conv1;
    # long recurrent unrolls accumulate bf16 error relative to the f32 PyTorch model.
    skpad = pad_same(skip.reshape(H, W, Cout).astype(jnp.bfloat16), 1, Cout)
    a2 = conv_same(skpad, w1_ref, 3, Cout)
    out_ref[0] = gn_relu(a2, g1_ref[...], bt1_ref[...]).astype(out_ref.dtype)


def prepare_params(params):
    """One-time conversion of PyTorch-layout params to kernel-ready layouts/dtypes.
    Call once outside the recurrent loop."""
    w_in = params['conv_input.weight']                 # (Cout, Cin, K, K) OIHW
    cout, cin, k, _ = (int(s) for s in w_in.shape)
    w1 = params['conv1.weight']                        # (Cout, Cout, 3, 3)
    assert cout % NUM_GROUPS == 0, "GroupNorm(32, C) needs C % 32 == 0"
    cg = cout // NUM_GROUPS
    gid = (jnp.arange(cout, dtype=jnp.int32) // cg).astype(jnp.float32)
    return {
        'K': k, 'Cin': cin, 'Cout': cout,
        # OIHW -> (ky, kx, cin, cout) -> (ky*kx*cin, cout); bf16 operands for the MXU.
        'w_in': jnp.transpose(w_in, (2, 3, 1, 0)).reshape(k * k * cin, cout).astype(jnp.bfloat16),
        'b_in': params['conv_input.bias'].reshape(1, cout).astype(jnp.float32),
        'g_in': params['norm_input.weight'].reshape(1, cout).astype(jnp.float32),
        'bt_in': params['norm_input.bias'].reshape(1, cout).astype(jnp.float32),
        'w1': jnp.transpose(w1, (2, 3, 1, 0)).reshape(9 * cout, cout).astype(jnp.bfloat16),
        'g1': params['norm1.weight'].reshape(1, cout).astype(jnp.float32),
        'bt1': params['norm1.bias'].reshape(1, cout).astype(jnp.float32),
        'gid_r': gid.reshape(cout, 1),
        'gid_c': gid.reshape(1, cout),
    }


def _pad_bytes(shape, dtype):
    """Rough (8,128)-tile-padded VMEM footprint of one buffer of `shape`/`dtype`."""
    item = jnp.dtype(dtype).itemsize
    sub = 8 * max(1, 4 // item)
    dims = list(shape) if len(shape) >= 2 else [1] + list(shape)
    dims[-1] = -(-dims[-1] // 128) * 128
    dims[-2] = -(-dims[-2] // sub) * sub
    total = item
    for d in dims:
        total *= d
    return total


def corblock_rt_forward_nhwc(prep, inp=None, state=None, batch_size=None, out_shape=None,
                             stride=1, out_dtype=jnp.bfloat16):
    """CORblock_RT.forward with NHWC activations (use this directly inside a recurrent loop).
    Returns a bf16 NHWC output by default (feed it straight back as the next `state`)."""
    if stride != 1:
        # TODO(synk): conv_input stride > 1 (used by real CORnet-RT V1/V2/V4/IT) not implemented.
        raise NotImplementedError("CORblock_RT Pallas kernel only supports conv_input stride=1")
    k, cin, cout = prep['K'], prep['Cin'], prep['Cout']
    assert k % 2 == 1, "only odd kernel sizes (SAME padding) are supported"
    has_input = inp is not None
    add_state = state is not None
    if has_input:
        n, h, w = int(inp.shape[0]), int(inp.shape[1]), int(inp.shape[2])
    else:
        n = int(batch_size) if batch_size is not None else int(state.shape[0])
        h = w = int(out_shape) if out_shape is not None else int(state.shape[1])

    args, in_specs = [], []
    if has_input:
        args += [inp.astype(jnp.bfloat16), prep['w_in'], prep['b_in'], prep['g_in'], prep['bt_in']]
        in_specs += [
            pl.BlockSpec((1, h, w, cin), lambda i: (i, 0, 0, 0)),       # input sample (bf16)
            # NOTE: the parameter blocks below are grid-invariant; on v7x they could be
            # single-buffered (pipeline_mode=pl.Buffered(1)) to save VMEM at large Cout.
            pl.BlockSpec((k * k * cin, cout), lambda i: (0, 0)),        # conv_input weights
            pl.BlockSpec((1, cout), lambda i: (0, 0)),                  # conv_input bias
            pl.BlockSpec((1, cout), lambda i: (0, 0)),                  # norm_input gamma
            pl.BlockSpec((1, cout), lambda i: (0, 0)),                  # norm_input beta
        ]
    args += [prep['w1'], prep['g1'], prep['bt1'], prep['gid_r'], prep['gid_c']]
    in_specs += [
        pl.BlockSpec((9 * cout, cout), lambda i: (0, 0)),               # conv1 weights
        pl.BlockSpec((1, cout), lambda i: (0, 0)),                      # norm1 gamma
        pl.BlockSpec((1, cout), lambda i: (0, 0)),                      # norm1 beta
        pl.BlockSpec((cout, 1), lambda i: (0, 0)),                      # group ids (column)
        pl.BlockSpec((1, cout), lambda i: (0, 0)),                      # group ids (row)
    ]
    if add_state:
        args.append(state.reshape(n, h * w, cout).astype(jnp.bfloat16))
        in_specs.append(pl.BlockSpec((1, h * w, cout), lambda i: (i, 0, 0)))

    # --- explicit VMEM budget: double-buffered blocks + the large in-kernel value temps ---
    est = 0
    if has_input:
        est += 2 * _pad_bytes((h, w, cin), jnp.bfloat16)
        est += 2 * _pad_bytes((k * k * cin, cout), jnp.bfloat16)
        est += 6 * _pad_bytes((1, cout), jnp.float32)
        est += _pad_bytes((h + k - 1, w + k - 1, cin), jnp.bfloat16)    # padded-x temp
        est += _pad_bytes((h * w, k * k * cin), jnp.bfloat16)           # stage-1 slab
        est += 2 * _pad_bytes((h * w, cout), jnp.float32)               # stage-1 f32 activations
    est += 2 * _pad_bytes((9 * cout, cout), jnp.bfloat16)
    est += 4 * _pad_bytes((1, cout), jnp.float32)
    est += 2 * (_pad_bytes((cout, 1), jnp.float32) + _pad_bytes((1, cout), jnp.float32))
    if add_state:
        est += 2 * _pad_bytes((h * w, cout), jnp.bfloat16)
    est += 2 * _pad_bytes((h * w, cout), out_dtype)                     # output block
    est += _pad_bytes((h + 2, w + 2, cout), jnp.bfloat16)               # padded-skip temp
    est += _pad_bytes((h * w, 9 * cout), jnp.bfloat16)                  # stage-2 slab
    est += 2 * _pad_bytes((h * w, cout), jnp.float32)                   # stage-2 f32 activations
    est += _pad_bytes((cout, cout), jnp.float32)                        # in-kernel gavg
    vmem_limit = int(min(128 << 20, max(32 << 20, 2 * est)))            # 2x headroom, >= default

    flops = 2 * n * h * w * (9 * cout) * cout
    bytes_acc = (n * h * w * cout * 2                                   # bf16 output
                 + int(prep['w1'].size) * 2 + 4 * cout * 4 + 2 * cout * 4)
    if has_input:
        flops += 2 * n * h * w * (k * k * cin) * cout
        bytes_acc += n * h * w * cin * 2 + int(prep['w_in'].size) * 2 + 3 * cout * 4
    if add_state:
        bytes_acc += n * h * w * cout * 2                               # bf16 state

    kernel = functools.partial(_corblock_rt_kernel, H=h, W=w, Cin=cin, Cout=cout,
                               K=k, has_input=has_input, add_state=add_state)
    out2d = pl.pallas_call(
        kernel,
        out_shape=jax.ShapeDtypeStruct((n, h * w, cout), out_dtype),
        grid_spec=pltpu.PrefetchScalarGridSpec(
            num_scalar_prefetch=0,
            grid=(n,),
            in_specs=in_specs,
            out_specs=pl.BlockSpec((1, h * w, cout), lambda i: (i, 0, 0))),
        compiler_params=pltpu.CompilerParams(
            dimension_semantics=("parallel",),          # megacore-shards the batch on v7x
            vmem_limit_bytes=vmem_limit),
        cost_estimate=pl.CostEstimate(flops=int(flops), transcendentals=int(2 * n * cout),
                                      bytes_accessed=int(bytes_acc)),
    )(*args)
    # TODO(synk): for Cout < 128 layers (e.g. CORnet V1 with 64 channels) the lane dim of the
    # state/output blocks is under-utilized; padding C to 128 or folding W onto the lane axis
    # would make the stores lane-dense.
    return out2d.reshape(n, h, w, cout)


def corblock_rt_forward(params, inp=None, state=None, batch_size=None, out_shape=None, stride=1):
    """Mirrors CORblock_RT.forward with PyTorch-style NCHW f32 tensors at the boundary.
    (A recurrent driver should call prepare_params once and corblock_rt_forward_nhwc directly so
    layout transposes / casts happen only at the model boundary.)"""
    prep = prepare_params(params)
    inp_nhwc = None if inp is None else jnp.transpose(inp, (0, 2, 3, 1))
    st_nhwc = None if state is None else jnp.transpose(state, (0, 2, 3, 1))
    out_nhwc = corblock_rt_forward_nhwc(prep, inp_nhwc, st_nhwc, batch_size=batch_size,
                                        out_shape=out_shape, stride=stride)
    return jnp.transpose(out_nhwc, (0, 3, 1, 2)).astype(jnp.float32)


def init_corblock_rt_params(key, in_channels, out_channels, kernel_size=3):
    """Deterministic synthetic parameters, shapes matching CORblock_RT.__init__ (PyTorch layout)."""
    assert out_channels % NUM_GROUPS == 0, "GroupNorm(32, C) needs C % 32 == 0"
    ks = jax.random.split(key, 7)
    return {
        'conv_input.weight': 0.10 * jax.random.normal(
            ks[0], (out_channels, in_channels, kernel_size, kernel_size), jnp.float32),
        'conv_input.bias': 0.10 * jax.random.normal(ks[1], (out_channels,), jnp.float32),
        'norm_input.weight': 1.0 + 0.10 * jax.random.normal(ks[2], (out_channels,), jnp.float32),
        'norm_input.bias': 0.10 * jax.random.normal(ks[3], (out_channels,), jnp.float32),
        'conv1.weight': 0.05 * jax.random.normal(
            ks[4], (out_channels, out_channels, 3, 3), jnp.float32),
        'norm1.weight': 1.0 + 0.10 * jax.random.normal(ks[5], (out_channels,), jnp.float32),
        'norm1.bias': 0.10 * jax.random.normal(ks[6], (out_channels,), jnp.float32),
    }


def _ref_forward(params, inp, state):
    """Pure-JAX reference (XLA convs, f32) for numerical verification."""
    def conv_nchw(x_nchw, w_oihw, b):
        x = jnp.transpose(x_nchw, (0, 2, 3, 1))
        w = jnp.transpose(w_oihw, (2, 3, 1, 0))
        y = lax.conv_general_dilated(x, w, (1, 1), 'SAME',
                                     dimension_numbers=('NHWC', 'HWIO', 'NHWC'))
        if b is not None:
            y = y + b.reshape(1, 1, 1, -1)
        return jnp.transpose(y, (0, 3, 1, 2))

    def gn(x_nchw, gamma, beta):
        n, c, h, w = x_nchw.shape
        g = NUM_GROUPS
        xg = x_nchw.reshape(n, g, c // g, h, w)
        mean = xg.mean(axis=(2, 3, 4), keepdims=True)
        var = ((xg - mean) ** 2).mean(axis=(2, 3, 4), keepdims=True)
        xn = ((xg - mean) / jnp.sqrt(var + EPS)).reshape(n, c, h, w)
        return xn * gamma.reshape(1, -1, 1, 1) + beta.reshape(1, -1, 1, 1)

    y = jax.nn.relu(gn(conv_nchw(inp, params['conv_input.weight'], params['conv_input.bias']),
                       params['norm_input.weight'], params['norm_input.bias']))
    skip = y + (state if state is not None else 0.0)
    y2 = jax.nn.relu(gn(conv_nchw(skip, params['conv1.weight'], None),
                        params['norm1.weight'], params['norm1.bias']))
    return y2


if __name__ == "__main__":
    key = jax.random.PRNGKey(0)
    kp, kx, ks = jax.random.split(key, 3)

    batch, in_channels, out_channels, spatial = 2, 4, 32, 16
    params = init_corblock_rt_params(kp, in_channels, out_channels, kernel_size=3)

    # PyTorch NCHW inputs.
    x = jax.random.normal(kx, (batch, in_channels, spatial, spatial), jnp.float32)
    state = 0.1 * jax.random.normal(ks, (batch, out_channels, spatial, spatial), jnp.float32)

    out = corblock_rt_forward(params, inp=x, state=state)
    out = jax.block_until_ready(out)

    assert out.shape == (batch, out_channels, spatial, spatial), out.shape
    ref = _ref_forward(params, x, state)
    # bf16 MXU operands / bf16 state & output streams (f32 accumulation and GN math) ->
    # tolerance loosened vs. a pure-f32 reference.
    if not bool(jnp.allclose(out, ref, atol=5e-2, rtol=5e-2)):
        max_err = float(jnp.max(jnp.abs(out - ref)))
        raise AssertionError(f"Pallas output mismatch vs reference, max abs err = {max_err}")

    print("KERNEL_OK")
</pallas_src>

<mosaic_0001>
module attributes {stable_mosaic.version = 11 : i64} {
  func.func @_corblock_rt_kernel(%arg0: i32, %arg1: memref<1x16x16x4xbf16, #tpu.memory_space<vmem>>, %arg2: memref<36x32xbf16, #tpu.memory_space<vmem>>, %arg3: memref<1x32xf32, #tpu.memory_space<vmem>>, %arg4: memref<1x32xf32, #tpu.memory_space<vmem>>, %arg5: memref<1x32xf32, #tpu.memory_space<vmem>>, %arg6: memref<288x32xbf16, #tpu.memory_space<vmem>>, %arg7: memref<1x32xf32, #tpu.memory_space<vmem>>, %arg8: memref<1x32xf32, #tpu.memory_space<vmem>>, %arg9: memref<32x1xf32, #tpu.memory_space<vmem>>, %arg10: memref<1x32xf32, #tpu.memory_space<vmem>>, %arg11: memref<1x256x32xbf16, #tpu.memory_space<vmem>>, %arg12: memref<1x256x32xbf16, #tpu.memory_space<vmem>>) attributes {dimension_semantics = [#tpu.dimension_semantics<parallel>], iteration_bounds = array<i64: 2>, scalar_prefetch = 0 : i64, scratch_operands = 0 : i64, tpu.core_type = #tpu.core_type<tc>, window_params = [{transform_indices = @transform_0, window_bounds = array<i64: 1, 16, 16, 4>}, {pipeline_mode = #tpu.pipeline_mode<synchronous>, transform_indices = @transform_1, window_bounds = array<i64: 36, 32>}, {pipeline_mode = #tpu.pipeline_mode<synchronous>, transform_indices = @transform_2, window_bounds = array<i64: 1, 32>}, {pipeline_mode = #tpu.pipeline_mode<synchronous>, transform_indices = @transform_3, window_bounds = array<i64: 1, 32>}, {pipeline_mode = #tpu.pipeline_mode<synchronous>, transform_indices = @transform_4, window_bounds = array<i64: 1, 32>}, {pipeline_mode = #tpu.pipeline_mode<synchronous>, transform_indices = @transform_5, window_bounds = array<i64: 288, 32>}, {pipeline_mode = #tpu.pipeline_mode<synchronous>, transform_indices = @transform_6, window_bounds = array<i64: 1, 32>}, {pipeline_mode = #tpu.pipeline_mode<synchronous>, transform_indices = @transform_7, window_bounds = array<i64: 1, 32>}, {pipeline_mode = #tpu.pipeline_mode<synchronous>, transform_indices = @transform_8, window_bounds = array<i64: 32, 1>}, {pipeline_mode = #tpu.pipeline_mode<synchronous>, transform_indices = @transform_9, window_bounds = array<i64: 1, 32>}, {transform_indices = @transform_10, window_bounds = array<i64: 1, 256, 32>}, {transform_indices = @transform_11, window_bounds = array<i64: 1, 256, 32>}]} {
    %c0 = arith.constant 0 : index
    %c0_0 = arith.constant 0 : index
    %0 = vector.load %arg9[%c0, %c0_0] : memref<32x1xf32, #tpu.memory_space<vmem>>, vector<32x1xf32>
    %c0_1 = arith.constant 0 : index
    %c0_2 = arith.constant 0 : index
    %1 = vector.load %arg10[%c0_1, %c0_2] : memref<1x32xf32, #tpu.memory_space<vmem>>, vector<1x32xf32>
    %2 = vector.broadcast %0 : vector<32x1xf32> to vector<32x32xf32>
    %3 = vector.broadcast %1 : vector<1x32xf32> to vector<32x32xf32>
    %4 = arith.cmpf oeq, %2, %3 : vector<32x32xf32>
    %cst = arith.constant 3.906250e-03 : f32
    %cst_3 = arith.constant 0.000000e+00 : f32
    %5 = vector.broadcast %cst : f32 to vector<32x32xf32>
    %6 = vector.broadcast %cst_3 : f32 to vector<32x32xf32>
    %7 = arith.select %4, %5, %6 : vector<32x32xi1>, vector<32x32xf32>
    %c0_4 = arith.constant 0 : index
    %c0_5 = arith.constant 0 : index
    %c0_6 = arith.constant 0 : index
    %c0_7 = arith.constant 0 : index
    %8 = vector.load %arg1[%c0_4, %c0_5, %c0_6, %c0_7] : memref<1x16x16x4xbf16, #tpu.memory_space<vmem>>, vector<1x16x16x4xbf16>
    %9 = vector.shape_cast %8 : vector<1x16x16x4xbf16> to vector<16x16x4xbf16>
    %cst_8 = arith.constant 0.000000e+00 : bf16
    %10 = vector.broadcast %cst_8 : bf16 to vector<16x1x4xbf16>
    %11 = tpu.concatenate %10, %9, %10 in 1 : vector<16x1x4xbf16>, vector<16x16x4xbf16>, vector<16x1x4xbf16> -> vector<16x18x4xbf16>
    %cst_9 = arith.constant 0.000000e+00 : bf16
    %12 = vector.broadcast %cst_9 : bf16 to vector<1x18x4xbf16>
    %13 = tpu.concatenate %12, %11, %12 in 0 : vector<1x18x4xbf16>, vector<16x18x4xbf16>, vector<1x18x4xbf16> -> vector<18x18x4xbf16>
    %14 = vector.extract_strided_slice %13 {offsets = [0, 0, 0], sizes = [16, 16, 4], strides = [1, 1, 1]} : vector<18x18x4xbf16> to vector<16x16x4xbf16>
    %15 = vector.extract_strided_slice %13 {offsets = [0, 1, 0], sizes = [16, 16, 4], strides = [1, 1, 1]} : vector<18x18x4xbf16> to vector<16x16x4xbf16>
    %16 = vector.extract_strided_slice %13 {offsets = [0, 2, 0], sizes = [16, 16, 4], strides = [1, 1, 1]} : vector<18x18x4xbf16> to vector<16x16x4xbf16>
    %17 = vector.extract_strided_slice %13 {offsets = [1, 0, 0], sizes = [16, 16, 4], strides = [1, 1, 1]} : vector<18x18x4xbf16> to vector<16x16x4xbf16>
    %18 = vector.extract_strided_slice %13 {offsets = [1, 1, 0], sizes = [16, 16, 4], strides = [1, 1, 1]} : vector<18x18x4xbf16> to vector<16x16x4xbf16>
    %19 = vector.extract_strided_slice %13 {offsets = [1, 2, 0], sizes = [16, 16, 4], strides = [1, 1, 1]} : vector<18x18x4xbf16> to vector<16x16x4xbf16>
    %20 = vector.extract_strided_slice %13 {offsets = [2, 0, 0], sizes = [16, 16, 4], strides = [1, 1, 1]} : vector<18x18x4xbf16> to vector<16x16x4xbf16>
    %21 = vector.extract_strided_slice %13 {offsets = [2, 1, 0], sizes = [16, 16, 4], strides = [1, 1, 1]} : vector<18x18x4xbf16> to vector<16x16x4xbf16>
    %22 = vector.extract_strided_slice %13 {offsets = [2, 2, 0], sizes = [16, 16, 4], strides = [1, 1, 1]} : vector<18x18x4xbf16> to vector<16x16x4xbf16>
    %23 = tpu.concatenate %14, %15, %16, %17, %18, %19, %20, %21, %22 in 2 : vector<16x16x4xbf16>, vector<16x16x4xbf16>, vector<16x16x4xbf16>, vector<16x16x4xbf16>, vector<16x16x4xbf16>, vector<16x16x4xbf16>, vector<16x16x4xbf16>, vector<16x16x4xbf16>, vector<16x16x4xbf16> -> vector<16x16x36xbf16>
    %24 = vector.shape_cast %23 : vector<16x16x36xbf16> to vector<256x36xbf16>
    %c0_10 = arith.constant 0 : index
    %c0_11 = arith.constant 0 : index
    %25 = vector.load %arg2[%c0_10, %c0_11] : memref<36x32xbf16, #tpu.memory_space<vmem>>, vector<36x32xbf16>
    %cst_12 = arith.constant dense<0.000000e+00> : vector<256x32xf32>
    %26 = tpu.matmul %24, %25, %cst_12 {dimension_numbers = #tpu.dot_dimension_numbers<[1], [0], [0], [1], [0, 0, 1, 1], [], []>} : vector<256x36xbf16>, vector<36x32xbf16>, vector<256x32xf32> -> vector<256x32xf32>
    %c0_13 = arith.constant 0 : index
    %c0_14 = arith.constant 0 : index
    %27 = vector.load %arg4[%c0_13, %c0_14] : memref<1x32xf32, #tpu.memory_space<vmem>>, vector<1x32xf32>
    %c0_15 = arith.constant 0 : index
    %c0_16 = arith.constant 0 : index
    %28 = vector.load %arg5[%c0_15, %c0_16] : memref<1x32xf32, #tpu.memory_space<vmem>>, vector<1x32xf32>
    %c0_17 = arith.constant 0 : index
    %c0_18 = arith.constant 0 : index
    %29 = vector.load %arg3[%c0_17, %c0_18] : memref<1x32xf32, #tpu.memory_space<vmem>>, vector<1x32xf32>
    %cst_19 = arith.constant dense<0.000000e+00> : vector<32xf32>
    %30 = vector.multi_reduction <add>, %26, %cst_19 [0] : vector<256x32xf32> to vector<32xf32>
    %31 = vector.shape_cast %30 : vector<32xf32> to vector<1x32xf32>
    %32 = arith.mulf %26, %26 : vector<256x32xf32>
    %cst_20 = arith.constant dense<0.000000e+00> : vector<32xf32>
    %33 = vector.multi_reduction <add>, %32, %cst_20 [0] : vector<256x32xf32> to vector<32xf32>
    %34 = vector.shape_cast %33 : vector<32xf32> to vector<1x32xf32>
    %cst_21 = arith.constant 2.000000e+00 : f32
    %35 = vector.broadcast %cst_21 : f32 to vector<1x32xf32>
    %36 = arith.mulf %35, %29 : vector<1x32xf32>
    %37 = arith.mulf %36, %31 : vector<1x32xf32>
    %38 = arith.addf %34, %37 : vector<1x32xf32>
    %cst_22 = arith.constant 2.560000e+02 : f32
    %39 = vector.broadcast %cst_22 : f32 to vector<1x32xf32>
    %40 = arith.mulf %39, %29 : vector<1x32xf32>
    %41 = arith.mulf %40, %29 : vector<1x32xf32>
    %42 = arith.addf %38, %41 : vector<1x32xf32>
    %cst_23 = arith.constant 2.560000e+02 : f32
    %43 = vector.broadcast %cst_23 : f32 to vector<1x32xf32>
    %44 = arith.mulf %43, %29 : vector<1x32xf32>
    %45 = arith.addf %31, %44 : vector<1x32xf32>
    %46 = tpu.concatenate %45, %42 in 0 : vector<1x32xf32>, vector<1x32xf32> -> vector<2x32xf32>
    %cst_24 = arith.constant dense<0.000000e+00> : vector<2x32xf32>
    %47 = tpu.matmul %46, %7, %cst_24 {dimension_numbers = #tpu.dot_dimension_numbers<[1], [0], [0], [1], [0, 0, 1, 1], [], []>} : vector<2x32xf32>, vector<32x32xf32>, vector<2x32xf32> -> vector<2x32xf32>
    %48 = vector.extract_strided_slice %47 {offsets = [0, 0], sizes = [1, 32], strides = [1, 1]} : vector<2x32xf32> to vector<1x32xf32>
    %49 = vector.extract_strided_slice %47 {offsets = [1, 0], sizes = [1, 32], strides = [1, 1]} : vector<2x32xf32> to vector<1x32xf32>
    %50 = arith.mulf %48, %48 : vector<1x32xf32>
    %51 = arith.subf %49, %50 : vector<1x32xf32>
    %cst_25 = arith.constant 0.000000e+00 : f32
    %52 = vector.broadcast %cst_25 : f32 to vector<1x32xf32>
    %53 = arith.maximumf %51, %52 : vector<1x32xf32>
    %cst_26 = arith.constant 9.99999974E-6 : f32
    %54 = vector.broadcast %cst_26 : f32 to vector<1x32xf32>
    %55 = arith.addf %53, %54 : vector<1x32xf32>
    %56 = math.rsqrt %55 : vector<1x32xf32>
    %57 = arith.mulf %27, %56 : vector<1x32xf32>
    %58 = arith.mulf %48, %57 : vector<1x32xf32>
    %59 = arith.subf %28, %58 : vector<1x32xf32>
    %60 = arith.mulf %29, %57 : vector<1x32xf32>
    %61 = arith.addf %59, %60 : vector<1x32xf32>
    %62 = vector.broadcast %57 : vector<1x32xf32> to vector<256x32xf32>
    %63 = arith.mulf %26, %62 : vector<256x32xf32>
    %64 = vector.broadcast %61 : vector<1x32xf32> to vector<256x32xf32>
    %65 = arith.addf %63, %64 : vector<256x32xf32>
    %cst_27 = arith.constant 0.000000e+00 : f32
    %66 = vector.broadcast %cst_27 : f32 to vector<256x32xf32>
    %67 = arith.maximumf %65, %66 : vector<256x32xf32>
    %c0_28 = arith.constant 0 : index
    %c0_29 = arith.constant 0 : index
    %c0_30 = arith.constant 0 : index
    %68 = vector.load %arg11[%c0_28, %c0_29, %c0_30] : memref<1x256x32xbf16, #tpu.memory_space<vmem>>, vector<1x256x32xbf16>
    %69 = vector.shape_cast %68 : vector<1x256x32xbf16> to vector<256x32xbf16>
    %70 = arith.extf %69 : vector<256x32xbf16> to vector<256x32xf32>
    %71 = arith.addf %67, %70 : vector<256x32xf32>
    %72 = vector.shape_cast %71 : vector<256x32xf32> to vector<16x16x32xf32>
    %73 = arith.truncf %72 : vector<16x16x32xf32> to vector<16x16x32xbf16>
    %cst_31 = arith.constant 0.000000e+00 : bf16
    %74 = vector.broadcast %cst_31 : bf16 to vector<16x1x32xbf16>
    %75 = tpu.concatenate %74, %73, %74 in 1 : vector<16x1x32xbf16>, vector<16x16x32xbf16>, vector<16x1x32xbf16> -> vector<16x18x32xbf16>
    %cst_32 = arith.constant 0.000000e+00 : bf16
    %76 = vector.broadcast %cst_32 : bf16 to vector<1x18x32xbf16>
    %77 = tpu.concatenate %76, %75, %76 in 0 : vector<1x18x32xbf16>, vector<16x18x32xbf16>, vector<1x18x32xbf16> -> vector<18x18x32xbf16>
    %78 = vector.extract_strided_slice %77 {offsets = [0, 0, 0], sizes = [16, 16, 32], strides = [1, 1, 1]} : vector<18x18x32xbf16> to vector<16x16x32xbf16>
    %79 = vector.extract_strided_slice %77 {offsets = [0, 1, 0], sizes = [16, 16, 32], strides = [1, 1, 1]} : vector<18x18x32xbf16> to vector<16x16x32xbf16>
    %80 = vector.extract_strided_slice %77 {offsets = [0, 2, 0], sizes = [16, 16, 32], strides = [1, 1, 1]} : vector<18x18x32xbf16> to vector<16x16x32xbf16>
    %81 = vector.extract_strided_slice %77 {offsets = [1, 0, 0], sizes = [16, 16, 32], strides = [1, 1, 1]} : vector<18x18x32xbf16> to vector<16x16x32xbf16>
    %82 = vector.extract_strided_slice %77 {offsets = [1, 1, 0], sizes = [16, 16, 32], strides = [1, 1, 1]} : vector<18x18x32xbf16> to vector<16x16x32xbf16>
    %83 = vector.extract_strided_slice %77 {offsets = [1, 2, 0], sizes = [16, 16, 32], strides = [1, 1, 1]} : vector<18x18x32xbf16> to vector<16x16x32xbf16>
    %84 = vector.extract_strided_slice %77 {offsets = [2, 0, 0], sizes = [16, 16, 32], strides = [1, 1, 1]} : vector<18x18x32xbf16> to vector<16x16x32xbf16>
    %85 = vector.extract_strided_slice %77 {offsets = [2, 1, 0], sizes = [16, 16, 32], strides = [1, 1, 1]} : vector<18x18x32xbf16> to vector<16x16x32xbf16>
    %86 = vector.extract_strided_slice %77 {offsets = [2, 2, 0], sizes = [16, 16, 32], strides = [1, 1, 1]} : vector<18x18x32xbf16> to vector<16x16x32xbf16>
    %87 = tpu.concatenate %78, %79, %80, %81, %82, %83, %84, %85, %86 in 2 : vector<16x16x32xbf16>, vector<16x16x32xbf16>, vector<16x16x32xbf16>, vector<16x16x32xbf16>, vector<16x16x32xbf16>, vector<16x16x32xbf16>, vector<16x16x32xbf16>, vector<16x16x32xbf16>, vector<16x16x32xbf16> -> vector<16x16x288xbf16>
    %88 = vector.shape_cast %87 : vector<16x16x288xbf16> to vector<256x288xbf16>
    %c0_33 = arith.constant 0 : index
    %c0_34 = arith.constant 0 : index
    %89 = vector.load %arg6[%c0_33, %c0_34] : memref<288x32xbf16, #tpu.memory_space<vmem>>, vector<288x32xbf16>
    %cst_35 = arith.constant dense<0.000000e+00> : vector<256x32xf32>
    %90 = tpu.matmul %88, %89, %cst_35 {dimension_numbers = #tpu.dot_dimension_numbers<[1], [0], [0], [1], [0, 0, 1, 1], [], []>} : vector<256x288xbf16>, vector<288x32xbf16>, vector<256x32xf32> -> vector<256x32xf32>
    %c0_36 = arith.constant 0 : index
    %c0_37 = arith.constant 0 : index
    %91 = vector.load %arg7[%c0_36, %c0_37] : memref<1x32xf32, #tpu.memory_space<vmem>>, vector<1x32xf32>
    %c0_38 = arith.constant 0 : index
    %c0_39 = arith.constant 0 : index
    %92 = vector.load %arg8[%c0_38, %c0_39] : memref<1x32xf32, #tpu.memory_space<vmem>>, vector<1x32xf32>
    %cst_40 = arith.constant dense<0.000000e+00> : vector<32xf32>
    %93 = vector.multi_reduction <add>, %90, %cst_40 [0] : vector<256x32xf32> to vector<32xf32>
    %94 = vector.shape_cast %93 : vector<32xf32> to vector<1x32xf32>
    %95 = arith.mulf %90, %90 : vector<256x32xf32>
    %cst_41 = arith.constant dense<0.000000e+00> : vector<32xf32>
    %96 = vector.multi_reduction <add>, %95, %cst_41 [0] : vector<256x32xf32> to vector<32xf32>
    %97 = vector.shape_cast %96 : vector<32xf32> to vector<1x32xf32>
    %98 = tpu.concatenate %94, %97 in 0 : vector<1x32xf32>, vector<1x32xf32> -> vector<2x32xf32>
    %cst_42 = arith.constant dense<0.000000e+00> : vector<2x32xf32>
    %99 = tpu.matmul %98, %7, %cst_42 {dimension_numbers = #tpu.dot_dimension_numbers<[1], [0], [0], [1], [0, 0, 1, 1], [], []>} : vector<2x32xf32>, vector<32x32xf32>, vector<2x32xf32> -> vector<2x32xf32>
    %100 = vector.extract_strided_slice %99 {offsets = [0, 0], sizes = [1, 32], strides = [1, 1]} : vector<2x32xf32> to vector<1x32xf32>
    %101 = vector.extract_strided_slice %99 {offsets = [1, 0], sizes = [1, 32], strides = [1, 1]} : vector<2x32xf32> to vector<1x32xf32>
    %102 = arith.mulf %100, %100 : vector<1x32xf32>
    %103 = arith.subf %101, %102 : vector<1x32xf32>
    %cst_43 = arith.constant 0.000000e+00 : f32
    %104 = vector.broadcast %cst_43 : f32 to vector<1x32xf32>
    %105 = arith.maximumf %103, %104 : vector<1x32xf32>
    %cst_44 = arith.constant 9.99999974E-6 : f32
    %106 = vector.broadcast %cst_44 : f32 to vector<1x32xf32>
    %107 = arith.addf %105, %106 : vector<1x32xf32>
    %108 = math.rsqrt %107 : vector<1x32xf32>
    %109 = arith.mulf %91, %108 : vector<1x32xf32>
    %110 = arith.mulf %100, %109 : vector<1x32xf32>
    %111 = arith.subf %92, %110 : vector<1x32xf32>
    %112 = vector.broadcast %109 : vector<1x32xf32> to vector<256x32xf32>
    %113 = arith.mulf %90, %112 : vector<256x32xf32>
    %114 = vector.broadcast %111 : vector<1x32xf32> to vector<256x32xf32>
    %115 = arith.addf %113, %114 : vector<256x32xf32>
    %cst_45 = arith.constant 0.000000e+00 : f32
    %116 = vector.broadcast %cst_45 : f32 to vector<256x32xf32>
    %117 = arith.maximumf %115, %116 : vector<256x32xf32>
    %118 = arith.truncf %117 : vector<256x32xf32> to vector<256x32xbf16>
    %c0_46 = arith.constant 0 : index
    %c0_47 = arith.constant 0 : index
    %c0_48 = arith.constant 0 : index
    %119 = vector.load %arg12[%c0_46, %c0_47, %c0_48] : memref<1x256x32xbf16, #tpu.memory_space<vmem>>, vector<1x256x32xbf16>
    %120 = vector.shape_cast %119 : vector<1x256x32xbf16> to vector<256x32xbf16>
    %121 = vector.shape_cast %118 : vector<256x32xbf16> to vector<1x256x32xbf16>
    tpu.vector_store %arg12[%c0_46, %c0_47, %c0_48], %121 {strides = array<i32>} : memref<1x256x32xbf16, #tpu.memory_space<vmem>>, vector<1x256x32xbf16>,
    return
  }
  func.func @transform_0(%arg0: i32) -> (i32, i32, i32, i32) {
    %c0_i32 = arith.constant 0 : i32
    %c0_i32_0 = arith.constant 0 : i32
    %c0_i32_1 = arith.constant 0 : i32
    %c0_i32_2 = arith.constant 0 : i32
    return %arg0, %c0_i32, %c0_i32_0, %c0_i32_1 : i32, i32, i32, i32
  }
  func.func @transform_1(%arg0: i32) -> (i32, i32) {
    %c0_i32 = arith.constant 0 : i32
    %c0_i32_0 = arith.constant 0 : i32
    %c0_i32_1 = arith.constant 0 : i32
    return %c0_i32, %c0_i32_0 : i32, i32
  }
  func.func @transform_2(%arg0: i32) -> (i32, i32) {
    %c0_i32 = arith.constant 0 : i32
    %c0_i32_0 = arith.constant 0 : i32
    %c0_i32_1 = arith.constant 0 : i32
    return %c0_i32, %c0_i32_0 : i32, i32
  }
  func.func @transform_3(%arg0: i32) -> (i32, i32) {
    %c0_i32 = arith.constant 0 : i32
    %c0_i32_0 = arith.constant 0 : i32
    %c0_i32_1 = arith.constant 0 : i32
    return %c0_i32, %c0_i32_0 : i32, i32
  }
  func.func @transform_4(%arg0: i32) -> (i32, i32) {
    %c0_i32 = arith.constant 0 : i32
    %c0_i32_0 = arith.constant 0 : i32
    %c0_i32_1 = arith.constant 0 : i32
    return %c0_i32, %c0_i32_0 : i32, i32
  }
  func.func @transform_5(%arg0: i32) -> (i32, i32) {
    %c0_i32 = arith.constant 0 : i32
    %c0_i32_0 = arith.constant 0 : i32
    %c0_i32_1 = arith.constant 0 : i32
    return %c0_i32, %c0_i32_0 : i32, i32
  }
  func.func @transform_6(%arg0: i32) -> (i32, i32) {
    %c0_i32 = arith.constant 0 : i32
    %c0_i32_0 = arith.constant 0 : i32
    %c0_i32_1 = arith.constant 0 : i32
    return %c0_i32, %c0_i32_0 : i32, i32
  }
  func.func @transform_7(%arg0: i32) -> (i32, i32) {
    %c0_i32 = arith.constant 0 : i32
    %c0_i32_0 = arith.constant 0 : i32
    %c0_i32_1 = arith.constant 0 : i32
    return %c0_i32, %c0_i32_0 : i32, i32
  }
  func.func @transform_8(%arg0: i32) -> (i32, i32) {
    %c0_i32 = arith.constant 0 : i32
    %c0_i32_0 = arith.constant 0 : i32
    %c0_i32_1 = arith.constant 0 : i32
    return %c0_i32, %c0_i32_0 : i32, i32
  }
  func.func @transform_9(%arg0: i32) -> (i32, i32) {
    %c0_i32 = arith.constant 0 : i32
    %c0_i32_0 = arith.constant 0 : i32
    %c0_i32_1 = arith.constant 0 : i32
    return %c0_i32, %c0_i32_0 : i32, i32
  }
  func.func @transform_10(%arg0: i32) -> (i32, i32, i32) {
    %c0_i32 = arith.constant 0 : i32
    %c0_i32_0 = arith.constant 0 : i32
    %c0_i32_1 = arith.constant 0 : i32
    return %arg0, %c0_i32, %c0_i32_0 : i32, i32, i32
  }
  func.func @transform_11(%arg0: i32) -> (i32, i32, i32) {
    %c0_i32 = arith.constant 0 : i32
    %c0_i32_0 = arith.constant 0 : i32
    %c0_i32_1 = arith.constant 0 : i32
    return %arg0, %c0_i32, %c0_i32_0 : i32, i32, i32
  }
}

</mosaic_0001>

<llo_original>
// kernel: tpu_custom_call.1
$region0: #{tpu_custom_call.1}
  #allocation0 [shape = 'u32[]', space=smem, size = 0x4, offset = 0x4, fixed_abs, tag = 'smem constant byte address 0x4 - core index']
  #allocation1 [shape = 'u32[144,128]{1,0:T(1,128)}', space=vmem, size = 0x12000, scoped, tag = 'internal scratch']
  %s0 = inlined_call_operand.vmem [shape: bf16[2,16,16,4], index: 0, kind: input, shape index: {}]
  %s1 = inlined_call_operand.vmem [shape: bf16[36,32], index: 1, kind: input, shape index: {}]
  %s2 = inlined_call_operand.vmem [shape: f32[1,32], index: 2, kind: input, shape index: {}]
  %s3 = inlined_call_operand.vmem [shape: f32[1,32], index: 3, kind: input, shape index: {}]
  %s4 = inlined_call_operand.vmem [shape: f32[1,32], index: 4, kind: input, shape index: {}]
  %s5 = inlined_call_operand.vmem [shape: bf16[288,32], index: 5, kind: input, shape index: {}]
  %s6 = inlined_call_operand.vmem [shape: f32[1,32], index: 6, kind: input, shape index: {}]
  %s7 = inlined_call_operand.vmem [shape: f32[1,32], index: 7, kind: input, shape index: {}]
  %s8 = inlined_call_operand.vmem [shape: f32[32,1], index: 8, kind: input, shape index: {}]
  %s9 = inlined_call_operand.vmem [shape: f32[1,32], index: 9, kind: input, shape index: {}]
  %s10 = inlined_call_operand.vmem [shape: bf16[2,256,32], index: 10, kind: input, shape index: {}]
  %s11 = inlined_call_operand.vmem [shape: bf16[2,256,32], index: 11, kind: output, shape index: {}]
  %s12 = sld [smem:[#allocation0]]
  $region77: #{tpu_custom_call.1} parent=0
    _
  %s14 = ssub.s32 1, %s12
  %s15 = scalar_select 0, %s14, %s12
  loop: start=0, step=1, limit=4
  $region2: #{tpu_custom_call.1} parent=0 // loop_pre_header
    _
  $region3: #{tpu_custom_call.1} parent=0 // loop_header
    %s17 = sphi 0, %s21
    %p18 = scmp.ge.s32.totalorder %s17, 4
    %s27 = sphi 0, %s29
    %s30 = sphi 0, %s27
    %s31 = sphi 0, %s30
    %s47 = sphi 0, %s31
    %s51 = sphi 0, %s51
    %s53 = sphi 0, %s51
    %s54 = sphi 0, %s53
    %s68 = sphi 0, %s54
    %s72 = sphi 0, %s72
    %s74 = sphi 0, %s72
    %s75 = sphi 0, %s74
    %s89 = sphi 0, %s75
    %s93 = sphi 0, %s93
    %s95 = sphi 0, %s93
    %s96 = sphi 0, %s95
    %s110 = sphi 0, %s96
    %s114 = sphi 0, %s114
    %s116 = sphi 0, %s114
    %s117 = sphi 0, %s116
    %s131 = sphi 0, %s117
    %s135 = sphi 0, %s135
    %s137 = sphi 0, %s135
    %s138 = sphi 0, %s137
    %s152 = sphi 0, %s138
    %s156 = sphi 0, %s156
    %s158 = sphi 0, %s156
    %s159 = sphi 0, %s158
    %s173 = sphi 0, %s159
    %s177 = sphi 0, %s177
    %s179 = sphi 0, %s177
    %s180 = sphi 0, %s179
    %s194 = sphi 0, %s180
    %s198 = sphi 0, %s198
    %s200 = sphi 0, %s198
    %s201 = sphi 0, %s200
    %s215 = sphi 0, %s201
    %s219 = sphi 0, %s219
    %s221 = sphi 0, %s219
    %s222 = sphi 0, %s221
    %s236 = sphi 0, %s222
    %s242 = sphi 0, %s244
    %s245 = sphi 0, %s242
    %s246 = sphi 0, %s245
    %s262 = sphi 0, %s246
    %s268 = sphi 0, %s270
    %s271 = sphi 0, %s268
    %s272 = sphi 0, %s271
    %s288 = sphi 0, %s272
  $region4: #{tpu_custom_call.1} parent=0 // loop_header_branch
    %20 = sbr.rel (%p18) target = $region8
  $region5: #{tpu_custom_call.1} parent=0 // loop_body
    %s22 = ssub.s32 %s17, 1
    %s23 = ssub.s32 %s17, 2
    %s24 = sadd.s32 %s17, 1
    %s25 = ssub.s32 %s17, %s24
    %p26 = scmp.eq.s32.totalorder %s25, 0
    %s28 = sadd.s32 %s27, 1
    %s29 = scalar_select %p26, %s27, %s28
    %p32 = pneg %p26
    %p33 = scmp.eq.s32.totalorder %s17, 1
    %p34 = por %p32, %p33
    %p35 = scmp.ne.s32.totalorder %s27, %s30
    %p36 = scmp.eq.s32.totalorder %s17, 0
    %p37 = por %p35, %p36
    %p38 = scmp.ne.s32.totalorder %s27, %s30
    %p39 = scmp.eq.s32.totalorder %s22, 1
    %p40 = por %p38, %p39
    %p41 = scmp.ne.s32.totalorder %s30, %s31
    %p42 = scmp.eq.s32.totalorder %s22, 0
    %p43 = por %p41, %p42
    %p44 = scmp.ne.s32.totalorder %s30, %s31
    %p45 = scmp.eq.s32.totalorder %s23, 1
    %p46 = por %p44, %p45
    %p48 = scmp.ne.s32.totalorder %s31, %s47
    %p49 = scmp.eq.s32.totalorder %s23, 0
    %p50 = por %p48, %p49
    %s52 = sadd.s32 %s51, 1
    %p55 = scmp.eq.s32.totalorder %s17, 1
    %p56 = scmp.ne.s32.totalorder %s51, %s53
    %p57 = scmp.eq.s32.totalorder %s17, 0
    %p58 = por %p56, %p57
    %p59 = scmp.ne.s32.totalorder %s51, %s53
    %p60 = scmp.eq.s32.totalorder %s22, 1
    %p61 = por %p59, %p60
    %p62 = scmp.ne.s32.totalorder %s53, %s54
    %p63 = scmp.eq.s32.totalorder %s22, 0
    %p64 = por %p62, %p63
    %p65 = scmp.ne.s32.totalorder %s53, %s54
    %p66 = scmp.eq.s32.totalorder %s23, 1
    %p67 = por %p65, %p66
    %p69 = scmp.ne.s32.totalorder %s54, %s68
    %p70 = scmp.eq.s32.totalorder %s23, 0
    %p71 = por %p69, %p70
    %s73 = sadd.s32 %s72, 1
    %p76 = scmp.eq.s32.totalorder %s17, 1
    %p77 = scmp.ne.s32.totalorder %s72, %s74
    %p78 = scmp.eq.s32.totalorder %s17, 0
    %p79 = por %p77, %p78
    %p80 = scmp.ne.s32.totalorder %s72, %s74
    %p81 = scmp.eq.s32.totalorder %s22, 1
    %p82 = por %p80, %p81
    %p83 = scmp.ne.s32.totalorder %s74, %s75
    %p84 = scmp.eq.s32.totalorder %s22, 0
    %p85 = por %p83, %p84
    %p86 = scmp.ne.s32.totalorder %s74, %s75
    %p87 = scmp.eq.s32.totalorder %s23, 1
    %p88 = por %p86, %p87
    %p90 = scmp.ne.s32.totalorder %s75, %s89
    %p91 = scmp.eq.s32.totalorder %s23, 0
    %p92 = por %p90, %p91
    %s94 = sadd.s32 %s93, 1
    %p97 = scmp.eq.s32.totalorder %s17, 1
    %p98 = scmp.ne.s32.totalorder %s93, %s95
    %p99 = scmp.eq.s32.totalorder %s17, 0
    %p100 = por %p98, %p99
    %p101 = scmp.ne.s32.totalorder %s93, %s95
    %p102 = scmp.eq.s32.totalorder %s22, 1
    %p103 = por %p101, %p102
    %p104 = scmp.ne.s32.totalorder %s95, %s96
    %p105 = scmp.eq.s32.totalorder %s22, 0
    %p106 = por %p104, %p105
    %p107 = scmp.ne.s32.totalorder %s95, %s96
    %p108 = scmp.eq.s32.totalorder %s23, 1
    %p109 = por %p107, %p108
    %p111 = scmp.ne.s32.totalorder %s96, %s110
    %p112 = scmp.eq.s32.totalorder %s23, 0
    %p113 = por %p111, %p112
    %s115 = sadd.s32 %s114, 1
    %p118 = scmp.eq.s32.totalorder %s17, 1
    %p119 = scmp.ne.s32.totalorder %s114, %s116
    %p120 = scmp.eq.s32.totalorder %s17, 0
    %p121 = por %p119, %p120
    %p122 = scmp.ne.s32.totalorder %s114, %s116
    %p123 = scmp.eq.s32.totalorder %s22, 1
    %p124 = por %p122, %p123
    %p125 = scmp.ne.s32.totalorder %s116, %s117
    %p126 = scmp.eq.s32.totalorder %s22, 0
    %p127 = por %p125, %p126
    %p128 = scmp.ne.s32.totalorder %s116, %s117
    %p129 = scmp.eq.s32.totalorder %s23, 1
    %p130 = por %p128, %p129
    %p132 = scmp.ne.s32.totalorder %s117, %s131
    %p133 = scmp.eq.s32.totalorder %s23, 0
    %p134 = por %p132, %p133
    %s136 = sadd.s32 %s135, 1
    %p139 = scmp.eq.s32.totalorder %s17, 1
    %p140 = scmp.ne.s32.totalorder %s135, %s137
    %p141 = scmp.eq.s32.totalorder %s17, 0
    %p142 = por %p140, %p141
    %p143 = scmp.ne.s32.totalorder %s135, %s137
    %p144 = scmp.eq.s32.totalorder %s22, 1
    %p145 = por %p143, %p144
    %p146 = scmp.ne.s32.totalorder %s137, %s138
    %p147 = scmp.eq.s32.totalorder %s22, 0
    %p148 = por %p146, %p147
    %p149 = scmp.ne.s32.totalorder %s137, %s138
    %p150 = scmp.eq.s32.totalorder %s23, 1
    %p151 = por %p149, %p150
    %p153 = scmp.ne.s32.totalorder %s138, %s152
    %p154 = scmp.eq.s32.totalorder %s23, 0
    %p155 = por %p153, %p154
    %s157 = sadd.s32 %s156, 1
    %p160 = scmp.eq.s32.totalorder %s17, 1
    %p161 = scmp.ne.s32.totalorder %s156, %s158
    %p162 = scmp.eq.s32.totalorder %s17, 0
    %p163 = por %p161, %p162
    %p164 = scmp.ne.s32.totalorder %s156, %s158
    %p165 = scmp.eq.s32.totalorder %s22, 1
    %p166 = por %p164, %p165
    %p167 = scmp.ne.s32.totalorder %s158, %s159
    %p168 = scmp.eq.s32.totalorder %s22, 0
    %p169 = por %p167, %p168
    %p170 = scmp.ne.s32.totalorder %s158, %s159
    %p171 = scmp.eq.s32.totalorder %s23, 1
    %p172 = por %p170, %p171
    %p174 = scmp.ne.s32.totalorder %s159, %s173
    %p175 = scmp.eq.s32.totalorder %s23, 0
    %p176 = por %p174, %p175
    %s178 = sadd.s32 %s177, 1
    %p181 = scmp.eq.s32.totalorder %s17, 1
    %p182 = scmp.ne.s32.totalorder %s177, %s179
    %p183 = scmp.eq.s32.totalorder %s17, 0
    %p184 = por %p182, %p183
    %p185 = scmp.ne.s32.totalorder %s177, %s179
    %p186 = scmp.eq.s32.totalorder %s22, 1
    %p187 = por %p185, %p186
    %p188 = scmp.ne.s32.totalorder %s179, %s180
    %p189 = scmp.eq.s32.totalorder %s22, 0
    %p190 = por %p188, %p189
    %p191 = scmp.ne.s32.totalorder %s179, %s180
    %p192 = scmp.eq.s32.totalorder %s23, 1
    %p193 = por %p191, %p192
    %p195 = scmp.ne.s32.totalorder %s180, %s194
    %p196 = scmp.eq.s32.totalorder %s23, 0
    %p197 = por %p195, %p196
    %s199 = sadd.s32 %s198, 1
    %p202 = scmp.eq.s32.totalorder %s17, 1
    %p203 = scmp.ne.s32.totalorder %s198, %s200
    %p204 = scmp.eq.s32.totalorder %s17, 0
    %p205 = por %p203, %p204
    %p206 = scmp.ne.s32.totalorder %s198, %s200
    %p207 = scmp.eq.s32.totalorder %s22, 1
    %p208 = por %p206, %p207
    %p209 = scmp.ne.s32.totalorder %s200, %s201
    %p210 = scmp.eq.s32.totalorder %s22, 0
    %p211 = por %p209, %p210
    %p212 = scmp.ne.s32.totalorder %s200, %s201
    %p213 = scmp.eq.s32.totalorder %s23, 1
    %p214 = por %p212, %p213
    %p216 = scmp.ne.s32.totalorder %s201, %s215
    %p217 = scmp.eq.s32.totalorder %s23, 0
    %p218 = por %p216, %p217
    %s220 = sadd.s32 %s219, 1
    %p223 = scmp.eq.s32.totalorder %s17, 1
    %p224 = scmp.ne.s32.totalorder %s219, %s221
    %p225 = scmp.eq.s32.totalorder %s17, 0
    %p226 = por %p224, %p225
    %p227 = scmp.ne.s32.totalorder %s219, %s221
    %p228 = scmp.eq.s32.totalorder %s22, 1
    %p229 = por %p227, %p228
    %p230 = scmp.ne.s32.totalorder %s221, %s222
    %p231 = scmp.eq.s32.totalorder %s22, 0
    %p232 = por %p230, %p231
    %p233 = scmp.ne.s32.totalorder %s221, %s222
    %p234 = scmp.eq.s32.totalorder %s23, 1
    %p235 = por %p233, %p234
    %p237 = scmp.ne.s32.totalorder %s222, %s236
    %p238 = scmp.eq.s32.totalorder %s23, 0
    %p239 = por %p237, %p238
    %s240 = ssub.s32 %s17, %s24
    %p241 = scmp.eq.s32.totalorder %s240, 0
    %s243 = sadd.s32 %s242, 1
    %s244 = scalar_select %p241, %s242, %s243
    %p247 = pneg %p241
    %p248 = scmp.eq.s32.totalorder %s17, 1
    %p249 = por %p247, %p248
    %p250 = scmp.ne.s32.totalorder %s242, %s245
    %p251 = scmp.eq.s32.totalorder %s17, 0
    %p252 = por %p250, %p251
    %p253 = scmp.ne.s32.totalorder %s242, %s245
    %p254 = scmp.eq.s32.totalorder %s22, 1
    %p255 = por %p253, %p254
    %p256 = scmp.ne.s32.totalorder %s245, %s246
    %p257 = scmp.eq.s32.totalorder %s22, 0
    %p258 = por %p256, %p257
    %p259 = scmp.ne.s32.totalorder %s245, %s246
    %p260 = scmp.eq.s32.totalorder %s23, 1
    %p261 = por %p259, %p260
    %p263 = scmp.ne.s32.totalorder %s246, %s262
    %p264 = scmp.eq.s32.totalorder %s23, 0
    %p265 = por %p263, %p264
    %s266 = ssub.s32 %s17, %s24
    %p267 = scmp.eq.s32.totalorder %s266, 0
    %s269 = sadd.s32 %s268, 1
    %s270 = scalar_select %p267, %s268, %s269
    %p273 = pneg %p267
    %p274 = scmp.eq.s32.totalorder %s17, 1
    %p275 = por %p273, %p274
    %p276 = scmp.ne.s32.totalorder %s268, %s271
    %p277 = scmp.eq.s32.totalorder %s17, 0
    %p278 = por %p276, %p277
    %p279 = scmp.ne.s32.totalorder %s268, %s271
    %p280 = scmp.eq.s32.totalorder %s22, 1
    %p281 = por %p279, %p280
    %p282 = scmp.ne.s32.totalorder %s271, %s272
    %p283 = scmp.eq.s32.totalorder %s22, 0
    %p284 = por %p282, %p283
    %p285 = scmp.ne.s32.totalorder %s271, %s272
    %p286 = scmp.eq.s32.totalorder %s23, 1
    %p287 = por %p285, %p286
    %p289 = scmp.ne.s32.totalorder %s272, %s288
    %p290 = scmp.eq.s32.totalorder %s23, 0
    %p291 = por %p289, %p290
    %p292 = scmp.le.s32.totalorder 1, %s17
    %p293 = scmp.lt.s32.totalorder %s17, 3
    %p294 = pnand %p292, %p293
    %p295 = pneg %p294
    // Predicated region
    $region9: #{tpu_custom_call.1} parent=5 // pred_check
      _
    $region10: #{tpu_custom_call.1} parent=5 // pred_check_branch
      %297 = sbr.rel (%p294) target = $region12
    $region11: #{tpu_custom_call.1} parent=5 // pred_region
      %s298 = ssub.s32 %s17, 1
      // Predicated region
      $region13: #{tpu_custom_call.1} parent=11 // pred_check
        %p299 = pneg %p64
      $region14: #{tpu_custom_call.1} parent=11 // pred_check_branch
        %301 = sbr.rel (%p299) target = $region16
      $region15: #{tpu_custom_call.1} parent=11 // pred_region
        _
      $region16: #{tpu_custom_call.1} parent=11 // pred_fallthru
        _
      // Predicated region
      $region17: #{tpu_custom_call.1} parent=11 // pred_check
        %p302 = pneg %p85
      $region18: #{tpu_custom_call.1} parent=11 // pred_check_branch
        %304 = sbr.rel (%p302) target = $region20
      $region19: #{tpu_custom_call.1} parent=11 // pred_region
        _
      $region20: #{tpu_custom_call.1} parent=11 // pred_fallthru
        _
      // Predicated region
      $region21: #{tpu_custom_call.1} parent=11 // pred_check
        %p305 = pneg %p106
      $region22: #{tpu_custom_call.1} parent=11 // pred_check_branch
        %307 = sbr.rel (%p305) target = $region24
      $region23: #{tpu_custom_call.1} parent=11 // pred_region
        _
      $region24: #{tpu_custom_call.1} parent=11 // pred_fallthru
        _
      // Predicated region
      $region25: #{tpu_custom_call.1} parent=11 // pred_check
        %p308 = pneg %p127
      $region26: #{tpu_custom_call.1} parent=11 // pred_check_branch
        %310 = sbr.rel (%p308) target = $region28
      $region27: #{tpu_custom_call.1} parent=11 // pred_region
        _
      $region28: #{tpu_custom_call.1} parent=11 // pred_fallthru
        _
      // Predicated region
      $region29: #{tpu_custom_call.1} parent=11 // pred_check
        %p311 = pneg %p148
      $region30: #{tpu_custom_call.1} parent=11 // pred_check_branch
        %313 = sbr.rel (%p311) target = $region32
      $region31: #{tpu_custom_call.1} parent=11 // pred_region
        _
      $region32: #{tpu_custom_call.1} parent=11 // pred_fallthru
        _
      // Predicated region
      $region33: #{tpu_custom_call.1} parent=11 // pred_check
        %p314 = pneg %p169
      $region34: #{tpu_custom_call.1} parent=11 // pred_check_branch
        %316 = sbr.rel (%p314) target = $region36
      $region35: #{tpu_custom_call.1} parent=11 // pred_region
        _
      $region36: #{tpu_custom_call.1} parent=11 // pred_fallthru
        _
      // Predicated region
      $region37: #{tpu_custom_call.1} parent=11 // pred_check
        %p317 = pneg %p190
      $region38: #{tpu_custom_call.1} parent=11 // pred_check_branch
        %319 = sbr.rel (%p317) target = $region40
      $region39: #{tpu_custom_call.1} parent=11 // pred_region
        _
      $region40: #{tpu_custom_call.1} parent=11 // pred_fallthru
        _
      // Predicated region
      $region41: #{tpu_custom_call.1} parent=11 // pred_check
        %p320 = pneg %p211
      $region42: #{tpu_custom_call.1} parent=11 // pred_check_branch
        %322 = sbr.rel (%p320) target = $region44
      $region43: #{tpu_custom_call.1} parent=11 // pred_region
        _
      $region44: #{tpu_custom_call.1} parent=11 // pred_fallthru
        _
      // Predicated region
      $region45: #{tpu_custom_call.1} parent=11 // pred_check
        %p323 = pneg %p232
      $region46: #{tpu_custom_call.1} parent=11 // pred_check_branch
        %325 = sbr.rel (%p323) target = $region48
      $region47: #{tpu_custom_call.1} parent=11 // pred_region
        _
      $region48: #{tpu_custom_call.1} parent=11 // pred_fallthru
        _
    $region12: #{tpu_custom_call.1} parent=5 // pred_fallthru
      _
    %p326 = scmp.lt.s32.totalorder %s17, 2
    // Predicated region
    $region49: #{tpu_custom_call.1} parent=5 // pred_check
      %p327 = pneg %p326
    $region50: #{tpu_custom_call.1} parent=5 // pred_check_branch
      %329 = sbr.rel (%p327) target = $region52
    $region51: #{tpu_custom_call.1} parent=5 // pred_region
      // Predicated region
      $region53: #{tpu_custom_call.1} parent=51 // pred_check
        %p330 = pneg %p37
      $region54: #{tpu_custom_call.1} parent=51 // pred_check_branch
        %332 = sbr.rel (%p330) target = $region56
      $region55: #{tpu_custom_call.1} parent=51 // pred_region
        %p333 = scmp.lt.s32.totalorder %s17, 1
        %s334 = scalar_select %p333, %s17, 1
        %s335 = smul.addr %s334, 32
        %s336 = smul.addr %s335, 4
        %s337 = scalar_lea.vmem %s0, %s336
      $region56: #{tpu_custom_call.1} parent=51 // pred_fallthru
        _
      // Predicated region
      $region57: #{tpu_custom_call.1} parent=51 // pred_check
        %p338 = pneg %p252
      $region58: #{tpu_custom_call.1} parent=51 // pred_check_branch
        %340 = sbr.rel (%p338) target = $region60
      $region59: #{tpu_custom_call.1} parent=51 // pred_region
        %p341 = scmp.lt.s32.totalorder %s17, 1
        %s342 = scalar_select %p341, %s17, 1
        %s343 = smul.addr %s342, 32
        %s344 = smul.addr %s343, 4
        %s345 = scalar_lea.vmem %s10, %s344
      $region60: #{tpu_custom_call.1} parent=51 // pred_fallthru
        _
    $region52: #{tpu_custom_call.1} parent=5 // pred_fallthru
      _
    %p346 = scmp.le.s32.totalorder 1, %s17
    %p347 = scmp.lt.s32.totalorder %s17, 3
    %p348 = pnand %p346, %p347
    %p349 = pneg %p348
    // Predicated region
    $region61: #{tpu_custom_call.1} parent=5 // pred_check
      _
    $region62: #{tpu_custom_call.1} parent=5 // pred_check_branch
      %351 = sbr.rel (%p348) target = $region64
    $region63: #{tpu_custom_call.1} parent=5 // pred_region
      %s352 = ssub.s32 %s17, 1
      %p353 = scmp.lt.s32.totalorder %s22, 1
      %s354 = scalar_select %p353, %s22, 1
      %s355 = smul.addr %s354, 32
      %s356 = smul.addr %s355, 4
      %s357 = scalar_lea.vmem %s0, %s356
      %p358 = pneg %p43
      %p359 = pneg %p40
      %p360 = pneg %p64
      %p361 = pneg %p61
      %p362 = pneg %p85
      %p363 = pneg %p82
      %p364 = pneg %p106
      %p365 = pneg %p103
      %p366 = pneg %p127
      %p367 = pneg %p124
      %p368 = pneg %p148
      %p369 = pneg %p145
      %p370 = pneg %p169
      %p371 = pneg %p166
      %p372 = pneg %p190
      %p373 = pneg %p187
      %p374 = pneg %p211
      %p375 = pneg %p208
      %p376 = pneg %p232
      %p377 = pneg %p229
      %p378 = scmp.lt.s32.totalorder %s22, 1
      %s379 = scalar_select %p378, %s22, 1
      %s380 = smul.addr %s379, 32
      %s381 = smul.addr %s380, 4
      %s382 = scalar_lea.vmem %s10, %s381
      %p383 = pneg %p258
      %p384 = pneg %p255
      %p385 = pneg %p284
      %p386 = pneg %p281
      %p387 = scmp.lt.s32.totalorder %s22, 1
      %s388 = scalar_select %p387, %s22, 1
      %s389 = smul.addr %s388, 32
      %s390 = smul.addr %s389, 4
      %s391 = scalar_lea.vmem %s11, %s390
      %p392 = scmp.lt.s32.totalorder %s22, 1
      %s393 = scalar_select %p392, %s22, 1
      %s394 = smul.addr %s393, 32
      %s395 = smul.addr %s394, 4
      %s396 = scalar_lea.vmem %s0, %s395
      %p397 = scmp.lt.s32.totalorder %s22, 1
      %s398 = scalar_select %p397, %s22, 1
      %s399 = smul.addr %s398, 32
      %s400 = smul.addr %s399, 4
      %s401 = scalar_lea.vmem %s10, %s400
      %p402 = scmp.lt.s32.totalorder %s22, 1
      %s403 = scalar_select %p402, %s22, 1
      %s404 = smul.addr %s403, 32
      %s405 = smul.addr %s404, 4
      %s406 = scalar_lea.vmem %s11, %s405
      %v408 = vld [vmem:[%s8] sm:$0xff]
      %v409 = vld [vmem:[%s8 + $0x8] sm:$0xff]
      %v410 = vld [vmem:[%s8 + $0x10] sm:$0xff]
      %v411 = vld [vmem:[%s8 + $0x18] sm:$0xff]
      %v412 = vld [vmem:[%s9] sm:$0x1]
      %414 = vset.pattern.permute.xlu0 0
      %415 = vperm.xlu0 %414, %v408
      %v416 = vpop.permute.xlu0 %415
      %419 = vset.pattern.permute.xlu0 0
      %420 = vperm.xlu0 %419, %v409
      %v421 = vpop.permute.xlu0 %420
      %424 = vset.pattern.permute.xlu0 0
      %425 = vperm.xlu0 %424, %v410
      %v426 = vpop.permute.xlu0 %425
      %429 = vset.pattern.permute.xlu0 0
      %430 = vperm.xlu0 %429, %v411
      %v431 = vpop.permute.xlu0 %430
      %v434 = vlaneseq
      %v435 = vshrl.u32 %v434, 7
      %v436 = vsub.s32 0, %v435
      %v437 = vrot.slane %v412, %v436
      %vm439 = vcmp.eq.f32.partialorder %v416, %v437
      %vm440 = vcmp.eq.f32.partialorder %v421, %v437
      %vm441 = vcmp.eq.f32.partialorder %v426, %v437
      %vm442 = vcmp.eq.f32.partialorder %v431, %v437
      %v443 = vsel %vm439, 0.00390625, 0.0
      %v444 = vsel %vm440, 0.00390625, 0.0
      %v445 = vsel %vm441, 0.00390625, 0.0
      %v446 = vsel %vm442, 0.00390625, 0.0
      %v447 = vld [vmem:[%s396] sm:$0xf]
      %v448 = vld [vmem:[%s396 + $0x4] sm:$0xf]
      %v449 = vld [vmem:[%s396 + $0x8] sm:$0xf]
      %v450 = vld [vmem:[%s396 + $0xc] sm:$0xf]
      %v451 = vld [vmem:[%s396 + $0x10] sm:$0xf]
      %v452 = vld [vmem:[%s396 + $0x14] sm:$0xf]
      %v453 = vld [vmem:[%s396 + $0x18] sm:$0xf]
      %v454 = vld [vmem:[%s396 + $0x1c] sm:$0xf]
      %v455 = vld [vmem:[%s396 + $0x20] sm:$0xf]
      %v456 = vld [vmem:[%s396 + $0x24] sm:$0xf]
      %v457 = vld [vmem:[%s396 + $0x28] sm:$0xf]
      %v458 = vld [vmem:[%s396 + $0x2c] sm:$0xf]
      %v459 = vld [vmem:[%s396 + $0x30] sm:$0xf]
      %v460 = vld [vmem:[%s396 + $0x34] sm:$0xf]
      %v461 = vld [vmem:[%s396 + $0x38] sm:$0xf]
      %v462 = vld [vmem:[%s396 + $0x3c] sm:$0xf]
      %v463 = vld [vmem:[%s396 + $0x40] sm:$0xf]
      %v464 = vld [vmem:[%s396 + $0x44] sm:$0xf]
      %v465 = vld [vmem:[%s396 + $0x48] sm:$0xf]
      %v466 = vld [vmem:[%s396 + $0x4c] sm:$0xf]
      %v467 = vld [vmem:[%s396 + $0x50] sm:$0xf]
      %v468 = vld [vmem:[%s396 + $0x54] sm:$0xf]
      %v469 = vld [vmem:[%s396 + $0x58] sm:$0xf]
      %v470 = vld [vmem:[%s396 + $0x5c] sm:$0xf]
      %v471 = vld [vmem:[%s396 + $0x60] sm:$0xf]
      %v472 = vld [vmem:[%s396 + $0x64] sm:$0xf]
      %v473 = vld [vmem:[%s396 + $0x68] sm:$0xf]
      %v474 = vld [vmem:[%s396 + $0x6c] sm:$0xf]
      %v475 = vld [vmem:[%s396 + $0x70] sm:$0xf]
      %v476 = vld [vmem:[%s396 + $0x74] sm:$0xf]
      %v477 = vld [vmem:[%s396 + $0x78] sm:$0xf]
      %v478 = vld [vmem:[%s396 + $0x7c] sm:$0xf]
      %v511 = vunpack.c.l.b16 %v447
      %v512 = vunpack.c.l.b16 %v448
      %v513 = vunpack.c.l.b16 %v449
      %v514 = vunpack.c.l.b16 %v450
      %v515 = vunpack.c.l.b16 %v451
      %v516 = vunpack.c.l.b16 %v452
      %v517 = vunpack.c.l.b16 %v453
      %v518 = vunpack.c.l.b16 %v454
      %v519 = vunpack.c.l.b16 %v455
      %v520 = vunpack.c.l.b16 %v456
      %v521 = vunpack.c.l.b16 %v457
      %v522 = vunpack.c.l.b16 %v458
      %v523 = vunpack.c.l.b16 %v459
      %v524 = vunpack.c.l.b16 %v460
      %v525 = vunpack.c.l.b16 %v461
      %v526 = vunpack.c.l.b16 %v462
      %v527 = vunpack.c.l.b16 %v463
      %v528 = vunpack.c.l.b16 %v464
      %v529 = vunpack.c.l.b16 %v465
      %v530 = vunpack.c.l.b16 %v466
      %v531 = vunpack.c.l.b16 %v467
      %v532 = vunpack.c.l.b16 %v468
      %v533 = vunpack.c.l.b16 %v469
      %v534 = vunpack.c.l.b16 %v470
      %v535 = vunpack.c.l.b16 %v471
      %v536 = vunpack.c.l.b16 %v472
      %v537 = vunpack.c.l.b16 %v473
      %v538 = vunpack.c.l.b16 %v474
      %v539 = vunpack.c.l.b16 %v475
      %v540 = vunpack.c.l.b16 %v476
      %v541 = vunpack.c.l.b16 %v477
      %v542 = vunpack.c.l.b16 %v478
      %v543 = vpack.c.b16 %v512, %v511
      %v544 = vpack.c.b16 %v514, %v513
      %v545 = vpack.c.b16 %v516, %v515
      %v546 = vpack.c.b16 %v518, %v517
      %v547 = vpack.c.b16 %v520, %v519
      %v548 = vpack.c.b16 %v522, %v521
      %v549 = vpack.c.b16 %v524, %v523
      %v550 = vpack.c.b16 %v526, %v525
      %v551 = vpack.c.b16 %v528, %v527
      %v552 = vpack.c.b16 %v530, %v529
      %v553 = vpack.c.b16 %v532, %v531
      %v554 = vpack.c.b16 %v534, %v533
      %v555 = vpack.c.b16 %v536, %v535
      %v556 = vpack.c.b16 %v538, %v537
      %v557 = vpack.c.b16 %v540, %v539
      %v558 = vpack.c.b16 %v542, %v541
      %v560 = vshrl.u32 %v543, 16
      %v562 = vrot.slane %v560, 7
      %v563 = vshll.u32 %v543, 16
      %v565 = vor.u32 %v562, %v563
      %v567 = vshrl.u32 %v544, 16
      %v569 = vrot.slane %v567, 7
      %v570 = vshll.u32 %v544, 16
      %v572 = vor.u32 %v569, %v570
      %v574 = vshrl.u32 %v545, 16
      %v576 = vrot.slane %v574, 7
      %v577 = vshll.u32 %v545, 16
      %v579 = vor.u32 %v576, %v577
      %v581 = vshrl.u32 %v546, 16
      %v583 = vrot.slane %v581, 7
      %v584 = vshll.u32 %v546, 16
      %v586 = vor.u32 %v583, %v584
      %v588 = vshrl.u32 %v547, 16
      %v590 = vrot.slane %v588, 7
      %v591 = vshll.u32 %v547, 16
      %v593 = vor.u32 %v590, %v591
      %v595 = vshrl.u32 %v548, 16
      %v597 = vrot.slane %v595, 7
      %v598 = vshll.u32 %v548, 16
      %v600 = vor.u32 %v597, %v598
      %v602 = vshrl.u32 %v549, 16
      %v604 = vrot.slane %v602, 7
      %v605 = vshll.u32 %v549, 16
      %v607 = vor.u32 %v604, %v605
      %v609 = vshrl.u32 %v550, 16
      %v611 = vrot.slane %v609, 7
      %v612 = vshll.u32 %v550, 16
      %v614 = vor.u32 %v611, %v612
      %v616 = vshrl.u32 %v551, 16
      %v618 = vrot.slane %v616, 7
      %v619 = vshll.u32 %v551, 16
      %v621 = vor.u32 %v618, %v619
      %v623 = vshrl.u32 %v552, 16
      %v625 = vrot.slane %v623, 7
      %v626 = vshll.u32 %v552, 16
      %v628 = vor.u32 %v625, %v626
      %v630 = vshrl.u32 %v553, 16
      %v632 = vrot.slane %v630, 7
      %v633 = vshll.u32 %v553, 16
      %v635 = vor.u32 %v632, %v633
      %v637 = vshrl.u32 %v554, 16
      %v639 = vrot.slane %v637, 7
      %v640 = vshll.u32 %v554, 16
      %v642 = vor.u32 %v639, %v640
      %v644 = vshrl.u32 %v555, 16
      %v646 = vrot.slane %v644, 7
      %v647 = vshll.u32 %v555, 16
      %v649 = vor.u32 %v646, %v647
      %v651 = vshrl.u32 %v556, 16
      %v653 = vrot.slane %v651, 7
      %v654 = vshll.u32 %v556, 16
      %v656 = vor.u32 %v653, %v654
      %v658 = vshrl.u32 %v557, 16
      %v660 = vrot.slane %v658, 7
      %v661 = vshll.u32 %v557, 16
      %v663 = vor.u32 %v660, %v661
      %v665 = vshrl.u32 %v558, 16
      %v667 = vrot.slane %v665, 7
      %v668 = vshll.u32 %v558, 16
      %v670 = vor.u32 %v667, %v668
      %vm703 = vcmask 1040384
      %vm704 = vsmask.f32 256
      %vm705 = vmand %vm703, %vm704
      %v706 = vsel %vm705, 0, %v565
      %v707 = vsel %vm705, 0, %v572
      %v708 = vsel %vm705, 0, %v579
      %v709 = vsel %vm705, 0, %v586
      %v710 = vsel %vm705, 0, %v593
      %v711 = vsel %vm705, 0, %v600
      %v712 = vsel %vm705, 0, %v607
      %v713 = vsel %vm705, 0, %v614
      %v714 = vsel %vm705, 0, %v621
      %v715 = vsel %vm705, 0, %v628
      %v716 = vsel %vm705, 0, %v635
      %v717 = vsel %vm705, 0, %v642
      %v718 = vsel %vm705, 0, %v649
      %v719 = vsel %vm705, 0, %v656
      %v720 = vsel %vm705, 0, %v663
      %v721 = vsel %vm705, 0, %v670
      %v722 = vsel %vm705, %v562, 0
      %v723 = vsel %vm705, %v569, 0
      %v724 = vsel %vm705, %v576, 0
      %v725 = vsel %vm705, %v583, 0
      %v726 = vsel %vm705, %v590, 0
      %v727 = vsel %vm705, %v597, 0
      %v728 = vsel %vm705, %v604, 0
      %v729 = vsel %vm705, %v611, 0
      %v730 = vsel %vm705, %v618, 0
      %v731 = vsel %vm705, %v625, 0
      %v732 = vsel %vm705, %v632, 0
      %v733 = vsel %vm705, %v639, 0
      %v734 = vsel %vm705, %v646, 0
      %v735 = vsel %vm705, %v653, 0
      %v736 = vsel %vm705, %v660, 0
      %v737 = vsel %vm705, %v667, 0
      %vm738 = vsmask.f32 7424
      %v740 = vshrl.u32 0, 16
      %v742 = vshll.u32 0, 16
      %v744 = vrot.slane %v742, 1
      %v745 = vor.u32 %v740, %v744
      %v746 = vsel %vm738, %v745, %v744
      %v748 = vshrl.u32 %v706, 16
      %v750 = vshll.u32 %v706, 16
      %v752 = vrot.slane %v750, 1
      %v753 = vor.u32 %v748, %v752
      %v755 = vshll.u32 %v722, 16
      %v757 = vrot.slane %v755, 1
      %v758 = vsel %vm738, %v753, %v757
      %v760 = vshrl.u32 %v707, 16
      %v762 = vshll.u32 %v707, 16
      %v764 = vrot.slane %v762, 1
      %v765 = vor.u32 %v760, %v764
      %v767 = vshll.u32 %v723, 16
      %v769 = vrot.slane %v767, 1
      %v770 = vsel %vm738, %v765, %v769
      %v772 = vshrl.u32 %v708, 16
      %v774 = vshll.u32 %v708, 16
      %v776 = vrot.slane %v774, 1
      %v777 = vor.u32 %v772, %v776
      %v779 = vshll.u32 %v724, 16
      %v781 = vrot.slane %v779, 1
      %v782 = vsel %vm738, %v777, %v781
      %v784 = vshrl.u32 %v709, 16
      %v786 = vshll.u32 %v709, 16
      %v788 = vrot.slane %v786, 1
      %v789 = vor.u32 %v784, %v788
      %v791 = vshll.u32 %v725, 16
      %v793 = vrot.slane %v791, 1
      %v794 = vsel %vm738, %v789, %v793
      %v796 = vshrl.u32 %v710, 16
      %v798 = vshll.u32 %v710, 16
      %v800 = vrot.slane %v798, 1
      %v801 = vor.u32 %v796, %v800
      %v803 = vshll.u32 %v726, 16
      %v805 = vrot.slane %v803, 1
      %v806 = vsel %vm738, %v801, %v805
      %v808 = vshrl.u32 %v711, 16
      %v810 = vshll.u32 %v711, 16
      %v812 = vrot.slane %v810, 1
      %v813 = vor.u32 %v808, %v812
      %v815 = vshll.u32 %v727, 16
      %v817 = vrot.slane %v815, 1
      %v818 = vsel %vm738, %v813, %v817
      %v820 = vshrl.u32 %v712, 16
      %v822 = vshll.u32 %v712, 16
      %v824 = vrot.slane %v822, 1
      %v825 = vor.u32 %v820, %v824
      %v827 = vshll.u32 %v728, 16
      %v829 = vrot.slane %v827, 1
      %v830 = vsel %vm738, %v825, %v829
      %v832 = vshrl.u32 %v713, 16
      %v834 = vshll.u32 %v713, 16
      %v836 = vrot.slane %v834, 1
      %v837 = vor.u32 %v832, %v836
      %v839 = vshll.u32 %v729, 16
      %v841 = vrot.slane %v839, 1
      %v842 = vsel %vm738, %v837, %v841
      %v844 = vshrl.u32 %v714, 16
      %v846 = vshll.u32 %v714, 16
      %v848 = vrot.slane %v846, 1
      %v849 = vor.u32 %v844, %v848
      %v851 = vshll.u32 %v730, 16
      %v853 = vrot.slane %v851, 1
      %v854 = vsel %vm738, %v849, %v853
      %v856 = vshrl.u32 %v715, 16
      %v858 = vshll.u32 %v715, 16
      %v860 = vrot.slane %v858, 1
      %v861 = vor.u32 %v856, %v860
      %v863 = vshll.u32 %v731, 16
      %v865 = vrot.slane %v863, 1
      %v866 = vsel %vm738, %v861, %v865
      %v868 = vshrl.u32 %v716, 16
      %v870 = vshll.u32 %v716, 16
      %v872 = vrot.slane %v870, 1
      %v873 = vor.u32 %v868, %v872
      %v875 = vshll.u32 %v732, 16
      %v877 = vrot.slane %v875, 1
      %v878 = vsel %vm738, %v873, %v877
      %v880 = vshrl.u32 %v717, 16
      %v882 = vshll.u32 %v717, 16
      %v884 = vrot.slane %v882, 1
      %v885 = vor.u32 %v880, %v884
      %v887 = vshll.u32 %v733, 16
      %v889 = vrot.slane %v887, 1
      %v890 = vsel %vm738, %v885, %v889
      %v892 = vshrl.u32 %v718, 16
      %v894 = vshll.u32 %v718, 16
      %v896 = vrot.slane %v894, 1
      %v897 = vor.u32 %v892, %v896
      %v899 = vshll.u32 %v734, 16
      %v901 = vrot.slane %v899, 1
      %v902 = vsel %vm738, %v897, %v901
      %v904 = vshrl.u32 %v719, 16
      %v906 = vshll.u32 %v719, 16
      %v908 = vrot.slane %v906, 1
      %v909 = vor.u32 %v904, %v908
      %v911 = vshll.u32 %v735, 16
      %v913 = vrot.slane %v911, 1
      %v914 = vsel %vm738, %v909, %v913
      %v916 = vshrl.u32 %v720, 16
      %v918 = vshll.u32 %v720, 16
      %v920 = vrot.slane %v918, 1
      %v921 = vor.u32 %v916, %v920
      %v923 = vshll.u32 %v736, 16
      %v925 = vrot.slane %v923, 1
      %v926 = vsel %vm738, %v921, %v925
      %927 = vrot.lane.b32.xlu0 %v746, 4
      %v928 = vpop.permute.xlu0 %927
      %929 = vrot.lane.b32.xlu0 %v758, 4
      %v930 = vpop.permute.xlu0 %929
      %931 = vrot.lane.b32.xlu0 %v770, 4
      %v932 = vpop.permute.xlu0 %931
      %933 = vrot.lane.b32.xlu0 %v782, 4
      %v934 = vpop.permute.xlu0 %933
      %935 = vrot.lane.b32.xlu0 %v794, 4
      %v936 = vpop.permute.xlu0 %935
      %937 = vrot.lane.b32.xlu0 %v806, 4
      %v938 = vpop.permute.xlu0 %937
      %939 = vrot.lane.b32.xlu0 %v818, 4
      %v940 = vpop.permute.xlu0 %939
      %941 = vrot.lane.b32.xlu0 %v830, 4
      %v942 = vpop.permute.xlu0 %941
      %943 = vrot.lane.b32.xlu0 %v842, 4
      %v944 = vpop.permute.xlu0 %943
      %945 = vrot.lane.b32.xlu0 %v854, 4
      %v946 = vpop.permute.xlu0 %945
      %947 = vrot.lane.b32.xlu0 %v866, 4
      %v948 = vpop.permute.xlu0 %947
      %949 = vrot.lane.b32.xlu0 %v878, 4
      %v950 = vpop.permute.xlu0 %949
      %951 = vrot.lane.b32.xlu0 %v890, 4
      %v952 = vpop.permute.xlu0 %951
      %953 = vrot.lane.b32.xlu0 %v902, 4
      %v954 = vpop.permute.xlu0 %953
      %955 = vrot.lane.b32.xlu0 %v914, 4
      %v956 = vpop.permute.xlu0 %955
      %957 = vrot.lane.b32.xlu0 %v926, 4
      %v958 = vpop.permute.xlu0 %957
      %vm990 = vcmask 1046528
      %v991 = vrot.slane 0, 1
      %v992 = vsel %vm990, %v991, %v991
      %v993 = vrot.slane %v706, 1
      %v994 = vrot.slane %v722, 1
      %v995 = vsel %vm990, %v993, %v994
      %v996 = vrot.slane %v707, 1
      %v997 = vrot.slane %v723, 1
      %v998 = vsel %vm990, %v996, %v997
      %v999 = vrot.slane %v708, 1
      %v1000 = vrot.slane %v724, 1
      %v1001 = vsel %vm990, %v999, %v1000
      %v1002 = vrot.slane %v709, 1
      %v1003 = vrot.slane %v725, 1
      %v1004 = vsel %vm990, %v1002, %v1003
      %v1005 = vrot.slane %v710, 1
      %v1006 = vrot.slane %v726, 1
      %v1007 = vsel %vm990, %v1005, %v1006
      %v1008 = vrot.slane %v711, 1
      %v1009 = vrot.slane %v727, 1
      %v1010 = vsel %vm990, %v1008, %v1009
      %v1011 = vrot.slane %v712, 1
      %v1012 = vrot.slane %v728, 1
      %v1013 = vsel %vm990, %v1011, %v1012
      %v1014 = vrot.slane %v713, 1
      %v1015 = vrot.slane %v729, 1
      %v1016 = vsel %vm990, %v1014, %v1015
      %v1017 = vrot.slane %v714, 1
      %v1018 = vrot.slane %v730, 1
      %v1019 = vsel %vm990, %v1017, %v1018
      %v1020 = vrot.slane %v715, 1
      %v1021 = vrot.slane %v731, 1
      %v1022 = vsel %vm990, %v1020, %v1021
      %v1023 = vrot.slane %v716, 1
      %v1024 = vrot.slane %v732, 1
      %v1025 = vsel %vm990, %v1023, %v1024
      %v1026 = vrot.slane %v717, 1
      %v1027 = vrot.slane %v733, 1
      %v1028 = vsel %vm990, %v1026, %v1027
      %v1029 = vrot.slane %v718, 1
      %v1030 = vrot.slane %v734, 1
      %v1031 = vsel %vm990, %v1029, %v1030
      %v1032 = vrot.slane %v719, 1
      %v1033 = vrot.slane %v735, 1
      %v1034 = vsel %vm990, %v1032, %v1033
      %v1035 = vrot.slane %v720, 1
      %v1036 = vrot.slane %v736, 1
      %v1037 = vsel %vm990, %v1035, %v1036
      %1038 = vrot.lane.b32.xlu0 %v992, 8
      %v1039 = vpop.permute.xlu0 %1038
      %1040 = vrot.lane.b32.xlu0 %v995, 8
      %v1041 = vpop.permute.xlu0 %1040
      %1042 = vrot.lane.b32.xlu0 %v998, 8
      %v1043 = vpop.permute.xlu0 %1042
      %1044 = vrot.lane.b32.xlu0 %v1001, 8
      %v1045 = vpop.permute.xlu0 %1044
      %1046 = vrot.lane.b32.xlu0 %v1004, 8
      %v1047 = vpop.permute.xlu0 %1046
      %1048 = vrot.lane.b32.xlu0 %v1007, 8
      %v1049 = vpop.permute.xlu0 %1048
      %1050 = vrot.lane.b32.xlu0 %v1010, 8
      %v1051 = vpop.permute.xlu0 %1050
      %1052 = vrot.lane.b32.xlu0 %v1013, 8
      %v1053 = vpop.permute.xlu0 %1052
      %1054 = vrot.lane.b32.xlu0 %v1016, 8
      %v1055 = vpop.permute.xlu0 %1054
      %1056 = vrot.lane.b32.xlu0 %v1019, 8
      %v1057 = vpop.permute.xlu0 %1056
      %1058 = vrot.lane.b32.xlu0 %v1022, 8
      %v1059 = vpop.permute.xlu0 %1058
      %1060 = vrot.lane.b32.xlu0 %v1025, 8
      %v1061 = vpop.permute.xlu0 %1060
      %1062 = vrot.lane.b32.xlu0 %v1028, 8
      %v1063 = vpop.permute.xlu0 %1062
      %1064 = vrot.lane.b32.xlu0 %v1031, 8
      %v1065 = vpop.permute.xlu0 %1064
      %1066 = vrot.lane.b32.xlu0 %v1034, 8
      %v1067 = vpop.permute.xlu0 %1066
      %1068 = vrot.lane.b32.xlu0 %v1037, 8
      %v1069 = vpop.permute.xlu0 %1068
      %1071 = vrot.lane.b32.xlu0 %v706, 12
      %v1072 = vpop.permute.xlu0 %1071
      %1073 = vrot.lane.b32.xlu0 %v707, 12
      %v1074 = vpop.permute.xlu0 %1073
      %1075 = vrot.lane.b32.xlu0 %v708, 12
      %v1076 = vpop.permute.xlu0 %1075
      %1077 = vrot.lane.b32.xlu0 %v709, 12
      %v1078 = vpop.permute.xlu0 %1077
      %1079 = vrot.lane.b32.xlu0 %v710, 12
      %v1080 = vpop.permute.xlu0 %1079
      %1081 = vrot.lane.b32.xlu0 %v711, 12
      %v1082 = vpop.permute.xlu0 %1081
      %1083 = vrot.lane.b32.xlu0 %v712, 12
      %v1084 = vpop.permute.xlu0 %1083
      %1085 = vrot.lane.b32.xlu0 %v713, 12
      %v1086 = vpop.permute.xlu0 %1085
      %1087 = vrot.lane.b32.xlu0 %v714, 12
      %v1088 = vpop.permute.xlu0 %1087
      %1089 = vrot.lane.b32.xlu0 %v715, 12
      %v1090 = vpop.permute.xlu0 %1089
      %1091 = vrot.lane.b32.xlu0 %v716, 12
      %v1092 = vpop.permute.xlu0 %1091
      %1093 = vrot.lane.b32.xlu0 %v717, 12
      %v1094 = vpop.permute.xlu0 %1093
      %1095 = vrot.lane.b32.xlu0 %v718, 12
      %v1096 = vpop.permute.xlu0 %1095
      %1097 = vrot.lane.b32.xlu0 %v719, 12
      %v1098 = vpop.permute.xlu0 %1097
      %1099 = vrot.lane.b32.xlu0 %v720, 12
      %v1100 = vpop.permute.xlu0 %1099
      %1101 = vrot.lane.b32.xlu0 %v721, 12
      %v1102 = vpop.permute.xlu0 %1101
      %v1104 = vshrl.u32 %v721, 16
      %v1106 = vshll.u32 %v721, 16
      %v1108 = vrot.slane %v1106, 1
      %v1109 = vor.u32 %v1104, %v1108
      %v1111 = vshll.u32 %v737, 16
      %v1113 = vrot.slane %v1111, 1
      %v1114 = vsel %vm738, %v1109, %v1113
      %1115 = vrot.lane.b32.xlu0 %v758, 16
      %v1116 = vpop.permute.xlu0 %1115
      %1117 = vrot.lane.b32.xlu0 %v770, 16
      %v1118 = vpop.permute.xlu0 %1117
      %1119 = vrot.lane.b32.xlu0 %v782, 16
      %v1120 = vpop.permute.xlu0 %1119
      %1121 = vrot.lane.b32.xlu0 %v794, 16
      %v1122 = vpop.permute.xlu0 %1121
      %1123 = vrot.lane.b32.xlu0 %v806, 16
      %v1124 = vpop.permute.xlu0 %1123
      %1125 = vrot.lane.b32.xlu0 %v818, 16
      %v1126 = vpop.permute.xlu0 %1125
      %1127 = vrot.lane.b32.xlu0 %v830, 16
      %v1128 = vpop.permute.xlu0 %1127
      %1129 = vrot.lane.b32.xlu0 %v842, 16
      %v1130 = vpop.permute.xlu0 %1129
      %1131 = vrot.lane.b32.xlu0 %v854, 16
      %v1132 = vpop.permute.xlu0 %1131
      %1133 = vrot.lane.b32.xlu0 %v866, 16
      %v1134 = vpop.permute.xlu0 %1133
      %1135 = vrot.lane.b32.xlu0 %v878, 16
      %v1136 = vpop.permute.xlu0 %1135
      %1137 = vrot.lane.b32.xlu0 %v890, 16
      %v1138 = vpop.permute.xlu0 %1137
      %1139 = vrot.lane.b32.xlu0 %v902, 16
      %v1140 = vpop.permute.xlu0 %1139
      %1141 = vrot.lane.b32.xlu0 %v914, 16
      %v1142 = vpop.permute.xlu0 %1141
      %1143 = vrot.lane.b32.xlu0 %v926, 16
      %v1144 = vpop.permute.xlu0 %1143
      %1145 = vrot.lane.b32.xlu0 %v1114, 16
      %v1146 = vpop.permute.xlu0 %1145
      %v1148 = vrot.slane %v721, 1
      %v1149 = vrot.slane %v737, 1
      %v1150 = vsel %vm990, %v1148, %v1149
      %1151 = vrot.lane.b32.xlu0 %v995, 20
      %v1152 = vpop.permute.xlu0 %1151
      %1153 = vrot.lane.b32.xlu0 %v998, 20
      %v1154 = vpop.permute.xlu0 %1153
      %1155 = vrot.lane.b32.xlu0 %v1001, 20
      %v1156 = vpop.permute.xlu0 %1155
      %1157 = vrot.lane.b32.xlu0 %v1004, 20
      %v1158 = vpop.permute.xlu0 %1157
      %1159 = vrot.lane.b32.xlu0 %v1007, 20
      %v1160 = vpop.permute.xlu0 %1159
      %1161 = vrot.lane.b32.xlu0 %v1010, 20
      %v1162 = vpop.permute.xlu0 %1161
      %1163 = vrot.lane.b32.xlu0 %v1013, 20
      %v1164 = vpop.permute.xlu0 %1163
      %1165 = vrot.lane.b32.xlu0 %v1016, 20
      %v1166 = vpop.permute.xlu0 %1165
      %1167 = vrot.lane.b32.xlu0 %v1019, 20
      %v1168 = vpop.permute.xlu0 %1167
      %1169 = vrot.lane.b32.xlu0 %v1022, 20
      %v1170 = vpop.permute.xlu0 %1169
      %1171 = vrot.lane.b32.xlu0 %v1025, 20
      %v1172 = vpop.permute.xlu0 %1171
      %1173 = vrot.lane.b32.xlu0 %v1028, 20
      %v1174 = vpop.permute.xlu0 %1173
      %1175 = vrot.lane.b32.xlu0 %v1031, 20
      %v1176 = vpop.permute.xlu0 %1175
      %1177 = vrot.lane.b32.xlu0 %v1034, 20
      %v1178 = vpop.permute.xlu0 %1177
      %1179 = vrot.lane.b32.xlu0 %v1037, 20
      %v1180 = vpop.permute.xlu0 %1179
      %1181 = vrot.lane.b32.xlu0 %v1150, 20
      %v1182 = vpop.permute.xlu0 %1181
      %1183 = vrot.lane.b32.xlu0 %v707, 24
      %v1184 = vpop.permute.xlu0 %1183
      %1185 = vrot.lane.b32.xlu0 %v708, 24
      %v1186 = vpop.permute.xlu0 %1185
      %1187 = vrot.lane.b32.xlu0 %v709, 24
      %v1188 = vpop.permute.xlu0 %1187
      %1189 = vrot.lane.b32.xlu0 %v710, 24
      %v1190 = vpop.permute.xlu0 %1189
      %1191 = vrot.lane.b32.xlu0 %v711, 24
      %v1192 = vpop.permute.xlu0 %1191
      %1193 = vrot.lane.b32.xlu0 %v712, 24
      %v1194 = vpop.permute.xlu0 %1193
      %1195 = vrot.lane.b32.xlu0 %v713, 24
      %v1196 = vpop.permute.xlu0 %1195
      %1197 = vrot.lane.b32.xlu0 %v714, 24
      %v1198 = vpop.permute.xlu0 %1197
      %1199 = vrot.lane.b32.xlu0 %v715, 24
      %v1200 = vpop.permute.xlu0 %1199
      %1201 = vrot.lane.b32.xlu0 %v716, 24
      %v1202 = vpop.permute.xlu0 %1201
      %1203 = vrot.lane.b32.xlu0 %v717, 24
      %v1204 = vpop.permute.xlu0 %1203
      %1205 = vrot.lane.b32.xlu0 %v718, 24
      %v1206 = vpop.permute.xlu0 %1205
      %1207 = vrot.lane.b32.xlu0 %v719, 24
      %v1208 = vpop.permute.xlu0 %1207
      %1209 = vrot.lane.b32.xlu0 %v720, 24
      %v1210 = vpop.permute.xlu0 %1209
      %1211 = vrot.lane.b32.xlu0 %v721, 24
      %v1212 = vpop.permute.xlu0 %1211
      %1213 = vrot.lane.b32.xlu0 0, 24
      %v1214 = vpop.permute.xlu0 %1213
      %1215 = vrot.lane.b32.xlu0 %v770, 28
      %v1216 = vpop.permute.xlu0 %1215
      %1217 = vrot.lane.b32.xlu0 %v782, 28
      %v1218 = vpop.permute.xlu0 %1217
      %1219 = vrot.lane.b32.xlu0 %v794, 28
      %v1220 = vpop.permute.xlu0 %1219
      %1221 = vrot.lane.b32.xlu0 %v806, 28
      %v1222 = vpop.permute.xlu0 %1221
      %1223 = vrot.lane.b32.xlu0 %v818, 28
      %v1224 = vpop.permute.xlu0 %1223
      %1225 = vrot.lane.b32.xlu0 %v830, 28
      %v1226 = vpop.permute.xlu0 %1225
      %1227 = vrot.lane.b32.xlu0 %v842, 28
      %v1228 = vpop.permute.xlu0 %1227
      %1229 = vrot.lane.b32.xlu0 %v854, 28
      %v1230 = vpop.permute.xlu0 %1229
      %1231 = vrot.lane.b32.xlu0 %v866, 28
      %v1232 = vpop.permute.xlu0 %1231
      %1233 = vrot.lane.b32.xlu0 %v878, 28
      %v1234 = vpop.permute.xlu0 %1233
      %1235 = vrot.lane.b32.xlu0 %v890, 28
      %v1236 = vpop.permute.xlu0 %1235
      %1237 = vrot.lane.b32.xlu0 %v902, 28
      %v1238 = vpop.permute.xlu0 %1237
      %1239 = vrot.lane.b32.xlu0 %v914, 28
      %v1240 = vpop.permute.xlu0 %1239
      %1241 = vrot.lane.b32.xlu0 %v926, 28
      %v1242 = vpop.permute.xlu0 %1241
      %1243 = vrot.lane.b32.xlu0 %v1114, 28
      %v1244 = vpop.permute.xlu0 %1243
      %1245 = vrot.lane.b32.xlu0 %v746, 28
      %v1246 = vpop.permute.xlu0 %1245
      %1247 = vrot.lane.b32.xlu0 %v998, 32
      %v1248 = vpop.permute.xlu0 %1247
      %1249 = vrot.lane.b32.xlu0 %v1001, 32
      %v1250 = vpop.permute.xlu0 %1249
      %1251 = vrot.lane.b32.xlu0 %v1004, 32
      %v1252 = vpop.permute.xlu0 %1251
      %1253 = vrot.lane.b32.xlu0 %v1007, 32
      %v1254 = vpop.permute.xlu0 %1253
      %1255 = vrot.lane.b32.xlu0 %v1010, 32
      %v1256 = vpop.permute.xlu0 %1255
      %1257 = vrot.lane.b32.xlu0 %v1013, 32
      %v1258 = vpop.permute.xlu0 %1257
      %1259 = vrot.lane.b32.xlu0 %v1016, 32
      %v1260 = vpop.permute.xlu0 %1259
      %1261 = vrot.lane.b32.xlu0 %v1019, 32
      %v1262 = vpop.permute.xlu0 %1261
      %1263 = vrot.lane.b32.xlu0 %v1022, 32
      %v1264 = vpop.permute.xlu0 %1263
      %1265 = vrot.lane.b32.xlu0 %v1025, 32
      %v1266 = vpop.permute.xlu0 %1265
      %1267 = vrot.lane.b32.xlu0 %v1028, 32
      %v1268 = vpop.permute.xlu0 %1267
      %1269 = vrot.lane.b32.xlu0 %v1031, 32
      %v1270 = vpop.permute.xlu0 %1269
      %1271 = vrot.lane.b32.xlu0 %v1034, 32
      %v1272 = vpop.permute.xlu0 %1271
      %1273 = vrot.lane.b32.xlu0 %v1037, 32
      %v1274 = vpop.permute.xlu0 %1273
      %1275 = vrot.lane.b32.xlu0 %v1150, 32
      %v1276 = vpop.permute.xlu0 %1275
      %1277 = vrot.lane.b32.xlu0 %v992, 32
      %v1278 = vpop.permute.xlu0 %1277
      %vm1279 = vcmask 31744
      %v1281 = vsel %vm1279, 0, %v928
      %v1283 = vsel %vm1279, %v706, %v930
      %v1285 = vsel %vm1279, %v707, %v932
      %v1287 = vsel %vm1279, %v708, %v934
      %v1289 = vsel %vm1279, %v709, %v936
      %v1291 = vsel %vm1279, %v710, %v938
      %v1293 = vsel %vm1279, %v711, %v940
      %v1295 = vsel %vm1279, %v712, %v942
      %v1297 = vsel %vm1279, %v713, %v944
      %v1299 = vsel %vm1279, %v714, %v946
      %v1301 = vsel %vm1279, %v715, %v948
      %v1303 = vsel %vm1279, %v716, %v950
      %v1305 = vsel %vm1279, %v717, %v952
      %v1307 = vsel %vm1279, %v718, %v954
      %v1309 = vsel %vm1279, %v719, %v956
      %v1311 = vsel %vm1279, %v720, %v958
      %vm1312 = vcmask 64512
      %v1314 = vsel %vm1312, %v1281, %v1039
      %v1316 = vsel %vm1312, %v1283, %v1041
      %v1318 = vsel %vm1312, %v1285, %v1043
      %v1320 = vsel %vm1312, %v1287, %v1045
      %v1322 = vsel %vm1312, %v1289, %v1047
      %v1324 = vsel %vm1312, %v1291, %v1049
      %v1326 = vsel %vm1312, %v1293, %v1051
      %v1328 = vsel %vm1312, %v1295, %v1053
      %v1330 = vsel %vm1312, %v1297, %v1055
      %v1332 = vsel %vm1312, %v1299, %v1057
      %v1334 = vsel %vm1312, %v1301, %v1059
      %v1336 = vsel %vm1312, %v1303, %v1061
      %v1338 = vsel %vm1312, %v1305, %v1063
      %v1340 = vsel %vm1312, %v1307, %v1065
      %v1342 = vsel %vm1312, %v1309, %v1067
      %v1344 = vsel %vm1312, %v1311, %v1069
      %vm1345 = vcmask 97280
      %v1347 = vsel %vm1345, %v1314, %v1072
      %v1349 = vsel %vm1345, %v1316, %v1074
      %v1351 = vsel %vm1345, %v1318, %v1076
      %v1353 = vsel %vm1345, %v1320, %v1078
      %v1355 = vsel %vm1345, %v1322, %v1080
      %v1357 = vsel %vm1345, %v1324, %v1082
      %v1359 = vsel %vm1345, %v1326, %v1084
      %v1361 = vsel %vm1345, %v1328, %v1086
      %v1363 = vsel %vm1345, %v1330, %v1088
      %v1365 = vsel %vm1345, %v1332, %v1090
      %v1367 = vsel %vm1345, %v1334, %v1092
      %v1369 = vsel %vm1345, %v1336, %v1094
      %v1371 = vsel %vm1345, %v1338, %v1096
      %v1373 = vsel %vm1345, %v1340, %v1098
      %v1375 = vsel %vm1345, %v1342, %v1100
      %v1377 = vsel %vm1345, %v1344, %v1102
      %vm1378 = vcmask 130048
      %v1380 = vsel %vm1378, %v1347, %v1116
      %v1382 = vsel %vm1378, %v1349, %v1118
      %v1384 = vsel %vm1378, %v1351, %v1120
      %v1386 = vsel %vm1378, %v1353, %v1122
      %v1388 = vsel %vm1378, %v1355, %v1124
      %v1390 = vsel %vm1378, %v1357, %v1126
      %v1392 = vsel %vm1378, %v1359, %v1128
      %v1394 = vsel %vm1378, %v1361, %v1130
      %v1396 = vsel %vm1378, %v1363, %v1132
      %v1398 = vsel %vm1378, %v1365, %v1134
      %v1400 = vsel %vm1378, %v1367, %v1136
      %v1402 = vsel %vm1378, %v1369, %v1138
      %v1404 = vsel %vm1378, %v1371, %v1140
      %v1406 = vsel %vm1378, %v1373, %v1142
      %v1408 = vsel %vm1378, %v1375, %v1144
      %v1410 = vsel %vm1378, %v1377, %v1146
      %vm1411 = vcmask 162816
      %v1413 = vsel %vm1411, %v1380, %v1152
      %v1415 = vsel %vm1411, %v1382, %v1154
      %v1417 = vsel %vm1411, %v1384, %v1156
      %v1419 = vsel %vm1411, %v1386, %v1158
      %v1421 = vsel %vm1411, %v1388, %v1160
      %v1423 = vsel %vm1411, %v1390, %v1162
      %v1425 = vsel %vm1411, %v1392, %v1164
      %v1427 = vsel %vm1411, %v1394, %v1166
      %v1429 = vsel %vm1411, %v1396, %v1168
      %v1431 = vsel %vm1411, %v1398, %v1170
      %v1433 = vsel %vm1411, %v1400, %v1172
      %v1435 = vsel %vm1411, %v1402, %v1174
      %v1437 = vsel %vm1411, %v1404, %v1176
      %v1439 = vsel %vm1411, %v1406, %v1178
      %v1441 = vsel %vm1411, %v1408, %v1180
      %v1443 = vsel %vm1411, %v1410, %v1182
      %vm1444 = vcmask 195584
      %v1446 = vsel %vm1444, %v1413, %v1184
      %v1448 = vsel %vm1444, %v1415, %v1186
      %v1450 = vsel %vm1444, %v1417, %v1188
      %v1452 = vsel %vm1444, %v1419, %v1190
      %v1454 = vsel %vm1444, %v1421, %v1192
      %v1456 = vsel %vm1444, %v1423, %v1194
      %v1458 = vsel %vm1444, %v1425, %v1196
      %v1460 = vsel %vm1444, %v1427, %v1198
      %v1462 = vsel %vm1444, %v1429, %v1200
      %v1464 = vsel %vm1444, %v1431, %v1202
      %v1466 = vsel %vm1444, %v1433, %v1204
      %v1468 = vsel %vm1444, %v1435, %v1206
      %v1470 = vsel %vm1444, %v1437, %v1208
      %v1472 = vsel %vm1444, %v1439, %v1210
      %v1474 = vsel %vm1444, %v1441, %v1212
      %v1476 = vsel %vm1444, %v1443, %v1214
      %vm1477 = vcmask 228352
      %v1479 = vsel %vm1477, %v1446, %v1216
      %v1481 = vsel %vm1477, %v1448, %v1218
      %v1483 = vsel %vm1477, %v1450, %v1220
      %v1485 = vsel %vm1477, %v1452, %v1222
      %v1487 = vsel %vm1477, %v1454, %v1224
      %v1489 = vsel %vm1477, %v1456, %v1226
      %v1491 = vsel %vm1477, %v1458, %v1228
      %v1493 = vsel %vm1477, %v1460, %v1230
      %v1495 = vsel %vm1477, %v1462, %v1232
      %v1497 = vsel %vm1477, %v1464, %v1234
      %v1499 = vsel %vm1477, %v1466, %v1236
      %v1501 = vsel %vm1477, %v1468, %v1238
      %v1503 = vsel %vm1477, %v1470, %v1240
      %v1505 = vsel %vm1477, %v1472, %v1242
      %v1507 = vsel %vm1477, %v1474, %v1244
      %v1509 = vsel %vm1477, %v1476, %v1246
      %vm1510 = vcmask 261120
      %v1512 = vsel %vm1510, %v1479, %v1248
      %v1514 = vsel %vm1510, %v1481, %v1250
      %v1516 = vsel %vm1510, %v1483, %v1252
      %v1518 = vsel %vm1510, %v1485, %v1254
      %v1520 = vsel %vm1510, %v1487, %v1256
      %v1522 = vsel %vm1510, %v1489, %v1258
      %v1524 = vsel %vm1510, %v1491, %v1260
      %v1526 = vsel %vm1510, %v1493, %v1262
      %v1528 = vsel %vm1510, %v1495, %v1264
      %v1530 = vsel %vm1510, %v1497, %v1266
      %v1532 = vsel %vm1510, %v1499, %v1268
      %v1534 = vsel %vm1510, %v1501, %v1270
      %v1536 = vsel %vm1510, %v1503, %v1272
      %v1538 = vsel %vm1510, %v1505, %v1274
      %v1540 = vsel %vm1510, %v1507, %v1276
      %v1542 = vsel %vm1510, %v1509, %v1278
      %v1543 = vld [vmem:[%s1] sm:$0xf]
      %v1544 = vld [vmem:[%s1 + $0x4] sm:$0xf]
      %v1545 = vld [vmem:[%s1 + $0x8] sm:$0xf]
      %v1546 = vld [vmem:[%s1 + $0xc] sm:$0xf]
      %v1547 = vld [vmem:[%s1 + $0x10] sm:$0x3]
      %v1553 = vunpack.c.l.b16 %v1543
      %v1554 = vunpack.c.l.b16 %v1544
      %v1555 = vunpack.c.l.b16 %v1545
      %v1556 = vunpack.c.l.b16 %v1546
      %v1557 = vunpack.c.l.b16 %v1547
      %v1558 = vpack.c.b16 %v1554, %v1553
      %v1559 = vpack.c.b16 %v1556, %v1555
      %v1560 = vpack.c.b16 %v1557, %v1557
      %vm1563 = vcmask 293888
      %v1564 = vsel %vm1563, %v1512, 0
      %v1566 = vsel %vm1563, %v1514, 0
      %v1568 = vsel %vm1563, %v1516, 0
      %v1570 = vsel %vm1563, %v1518, 0
      %v1572 = vsel %vm1563, %v1520, 0
      %v1574 = vsel %vm1563, %v1522, 0
      %v1576 = vsel %vm1563, %v1524, 0
      %v1578 = vsel %vm1563, %v1526, 0
      %v1580 = vsel %vm1563, %v1528, 0
      %v1582 = vsel %vm1563, %v1530, 0
      %v1584 = vsel %vm1563, %v1532, 0
      %v1586 = vsel %vm1563, %v1534, 0
      %v1588 = vsel %vm1563, %v1536, 0
      %v1590 = vsel %vm1563, %v1538, 0
      %v1592 = vsel %vm1563, %v1540, 0
      %v1594 = vsel %vm1563, %v1542, 0
      %vm1596 = vcmask 1041408
      %v1598 = vsel %vm1596, %v1560, 0
      %1600 = vmatprep.subr.bf16.mxu0 0
      %1601 = vmatpush1.bf16.msra.mxu0 %v1558
      %1602 = vmatprep.subr.bf16.mxu0 0
      %1603 = vmatpush1.bf16.msra.mxu0 %v1559
      %1604 = vmatprep.subr.bf16.mxu0 0
      %1605 = vmatpush1.bf16.msra.mxu0 %v1598
      %1606 = vmatprep.subr.bf16.mxu0 0
      %1607 = vmatpush1.bf16.msra.mxu0 0
      %1608 = vmatprep.subr.bf16.mxu0 0
      %1609 = vmatpush1.bf16.msra.mxu0 0
      %1610 = vmatprep.subr.bf16.mxu0 0
      %1611 = vmatpush1.bf16.msra.mxu0 0
      %1612 = vmatprep.subr.bf16.mxu0 0
      %1613 = vmatpush1.bf16.msra.mxu0 0
      %1614 = vmatprep.subr.bf16.mxu0 0
      %1615 = vmatpush1.bf16.msra.mxu0 0
      %1616 = vmatprep.subr.bf16.mxu0 0
      %1617 = vmatpush1.bf16.msra.mxu0 0
      %1618 = vmatprep.subr.bf16.mxu0 0
      %1619 = vmatpush1.bf16.msra.mxu0 0
      %1620 = vmatprep.subr.bf16.mxu0 0
      %1621 = vmatpush1.bf16.msra.mxu0 0
      %1622 = vmatprep.subr.bf16.mxu0 0
      %1623 = vmatpush1.bf16.msra.mxu0 0
      %1624 = vmatprep.subr.bf16.mxu0 0
      %1625 = vmatpush1.bf16.msra.mxu0 0
      %1626 = vmatprep.subr.bf16.mxu0 0
      %1627 = vmatpush1.bf16.msra.mxu0 0
      %1628 = vmatprep.subr.bf16.mxu0 0
      %1629 = vmatpush1.bf16.msra.mxu0 0
      %1630 = vmatprep.subr.bf16.mxu0 0
      %1631 = vmatpush1.bf16.msra.mxu0 0
      %1632 = vmatprep.mubr.bf16.mxu0 0
      %1633 = vmatmul.mubr.bf16.gmra.mrb[0].mxu0 %v1564
      %v1634 = vpop.f32.mrb[0].mxu0
      %v1635 = vadd.f32 0.0, %v1634
      %v1636 = vpop.f32.mrb[0].mxu0
      %v1637 = vpop.f32.mrb[0].mxu0
      %v1638 = vadd.f32 0.0, %v1637
      %v1639 = vpop.f32.mrb[0].mxu0
      %1640 = vmatprep.mubr.bf16.mxu0 0
      %1641 = vmatmul.mubr.bf16.gmra.mrb[0].mxu0 %v1566
      %v1642 = vpop.f32.mrb[0].mxu0
      %v1643 = vadd.f32 0.0, %v1642
      %v1644 = vpop.f32.mrb[0].mxu0
      %v1645 = vpop.f32.mrb[0].mxu0
      %v1646 = vadd.f32 0.0, %v1645
      %v1647 = vpop.f32.mrb[0].mxu0
      %1648 = vmatprep.mubr.bf16.mxu0 0
      %1649 = vmatmul.mubr.bf16.gmra.mrb[0].mxu0 %v1568
      %v1650 = vpop.f32.mrb[0].mxu0
      %v1651 = vadd.f32 0.0, %v1650
      %v1652 = vpop.f32.mrb[0].mxu0
      %v1653 = vpop.f32.mrb[0].mxu0
      %v1654 = vadd.f32 0.0, %v1653
      %v1655 = vpop.f32.mrb[0].mxu0
      %1656 = vmatprep.mubr.bf16.mxu0 0
      %1657 = vmatmul.mubr.bf16.gmra.mrb[0].mxu0 %v1570
      %v1658 = vpop.f32.mrb[0].mxu0
      %v1659 = vadd.f32 0.0, %v1658
      %v1660 = vpop.f32.mrb[0].mxu0
      %v1661 = vpop.f32.mrb[0].mxu0
      %v1662 = vadd.f32 0.0, %v1661
      %v1663 = vpop.f32.mrb[0].mxu0
      %1664 = vmatprep.mubr.bf16.mxu0 0
      %1665 = vmatmul.mubr.bf16.gmra.mrb[0].mxu0 %v1572
      %v1666 = vpop.f32.mrb[0].mxu0
      %v1667 = vadd.f32 0.0, %v1666
      %v1668 = vpop.f32.mrb[0].mxu0
      %v1669 = vpop.f32.mrb[0].mxu0
      %v1670 = vadd.f32 0.0, %v1669
      %v1671 = vpop.f32.mrb[0].mxu0
      %1672 = vmatprep.mubr.bf16.mxu0 0
      %1673 = vmatmul.mubr.bf16.gmra.mrb[0].mxu0 %v1574
      %v1674 = vpop.f32.mrb[0].mxu0
      %v1675 = vadd.f32 0.0, %v1674
      %v1676 = vpop.f32.mrb[0].mxu0
      %v1677 = vpop.f32.mrb[0].mxu0
      %v1678 = vadd.f32 0.0, %v1677
      %v1679 = vpop.f32.mrb[0].mxu0
      %1680 = vmatprep.mubr.bf16.mxu0 0
      %1681 = vmatmul.mubr.bf16.gmra.mrb[0].mxu0 %v1576
      %v1682 = vpop.f32.mrb[0].mxu0
      %v1683 = vadd.f32 0.0, %v1682
      %v1684 = vpop.f32.mrb[0].mxu0
      %v1685 = vpop.f32.mrb[0].mxu0
      %v1686 = vadd.f32 0.0, %v1685
      %v1687 = vpop.f32.mrb[0].mxu0
      %1688 = vmatprep.mubr.bf16.mxu0 0
      %1689 = vmatmul.mubr.bf16.gmra.mrb[0].mxu0 %v1578
      %v1690 = vpop.f32.mrb[0].mxu0
      %v1691 = vadd.f32 0.0, %v1690
      %v1692 = vpop.f32.mrb[0].mxu0
      %v1693 = vpop.f32.mrb[0].mxu0
      %v1694 = vadd.f32 0.0, %v1693
      %v1695 = vpop.f32.mrb[0].mxu0
      %1696 = vmatprep.mubr.bf16.mxu0 0
      %1697 = vmatmul.mubr.bf16.gmra.mrb[0].mxu0 %v1580
      %v1698 = vpop.f32.mrb[0].mxu0
      %v1699 = vadd.f32 0.0, %v1698
      %v1700 = vpop.f32.mrb[0].mxu0
      %v1701 = vpop.f32.mrb[0].mxu0
      %v1702 = vadd.f32 0.0, %v1701
      %v1703 = vpop.f32.mrb[0].mxu0
      %1704 = vmatprep.mubr.bf16.mxu0 0
      %1705 = vmatmul.mubr.bf16.gmra.mrb[0].mxu0 %v1582
      %v1706 = vpop.f32.mrb[0].mxu0
      %v1707 = vadd.f32 0.0, %v1706
      %v1708 = vpop.f32.mrb[0].mxu0
      %v1709 = vpop.f32.mrb[0].mxu0
      %v1710 = vadd.f32 0.0, %v1709
      %v1711 = vpop.f32.mrb[0].mxu0
      %1712 = vmatprep.mubr.bf16.mxu0 0
      %1713 = vmatmul.mubr.bf16.gmra.mrb[0].mxu0 %v1584
      %v1714 = vpop.f32.mrb[0].mxu0
      %v1715 = vadd.f32 0.0, %v1714
      %v1716 = vpop.f32.mrb[0].mxu0
      %v1717 = vpop.f32.mrb[0].mxu0
      %v1718 = vadd.f32 0.0, %v1717
      %v1719 = vpop.f32.mrb[0].mxu0
      %1720 = vmatprep.mubr.bf16.mxu0 0
      %1721 = vmatmul.mubr.bf16.gmra.mrb[0].mxu0 %v1586
      %v1722 = vpop.f32.mrb[0].mxu0
      %v1723 = vadd.f32 0.0, %v1722
      %v1724 = vpop.f32.mrb[0].mxu0
      %v1725 = vpop.f32.mrb[0].mxu0
      %v1726 = vadd.f32 0.0, %v1725
      %v1727 = vpop.f32.mrb[0].mxu0
      %1728 = vmatprep.mubr.bf16.mxu0 0
      %1729 = vmatmul.mubr.bf16.gmra.mrb[0].mxu0 %v1588
      %v1730 = vpop.f32.mrb[0].mxu0
      %v1731 = vadd.f32 0.0, %v1730
      %v1732 = vpop.f32.mrb[0].mxu0
      %v1733 = vpop.f32.mrb[0].mxu0
      %v1734 = vadd.f32 0.0, %v1733
      %v1735 = vpop.f32.mrb[0].mxu0
      %1736 = vmatprep.mubr.bf16.mxu0 0
      %1737 = vmatmul.mubr.bf16.gmra.mrb[0].mxu0 %v1590
      %v1738 = vpop.f32.mrb[0].mxu0
      %v1739 = vadd.f32 0.0, %v1738
      %v1740 = vpop.f32.mrb[0].mxu0
      %v1741 = vpop.f32.mrb[0].mxu0
      %v1742 = vadd.f32 0.0, %v1741
      %v1743 = vpop.f32.mrb[0].mxu0
      %1744 = vmatprep.mubr.bf16.mxu0 0
      %1745 = vmatmul.mubr.bf16.gmra.mrb[0].mxu0 %v1592
      %v1746 = vpop.f32.mrb[0].mxu0
      %v1747 = vadd.f32 0.0, %v1746
      %v1748 = vpop.f32.mrb[0].mxu0
      %v1749 = vpop.f32.mrb[0].mxu0
      %v1750 = vadd.f32 0.0, %v1749
      %v1751 = vpop.f32.mrb[0].mxu0
      %1752 = vmatprep.mubr.bf16.mxu0 0
      %1753 = vmatmul.mubr.bf16.gmra.mrb[0].mxu0 %v1594
      %v1754 = vpop.f32.mrb[0].mxu0
      %v1755 = vadd.f32 0.0, %v1754
      %v1756 = vpop.f32.mrb[0].mxu0
      %v1757 = vpop.f32.mrb[0].mxu0
      %v1758 = vadd.f32 0.0, %v1757
      %v1759 = vpop.f32.mrb[0].mxu0
      %1760 = vdwg.mxu0
      %v1761 = vld [vmem:[%s3] sm:$0x1]
      %v1762 = vld [vmem:[%s4] sm:$0x1]
      %v1763 = vld [vmem:[%s2] sm:$0x1]
      %v1764 = vsel %vm1510, %v1635, 0.0
      %v1765 = vsel %vm1510, %v1638, 0.0
      %v1766 = vadd.f32 %v1764, %v1765
      %v1767 = vsel %vm1510, %v1643, 0.0
      %v1768 = vadd.f32 %v1766, %v1767
      %v1769 = vsel %vm1510, %v1646, 0.0
      %v1770 = vadd.f32 %v1768, %v1769
      %v1771 = vsel %vm1510, %v1651, 0.0
      %v1772 = vadd.f32 %v1770, %v1771
      %v1773 = vsel %vm1510, %v1654, 0.0
      %v1774 = vadd.f32 %v1772, %v1773
      %v1775 = vsel %vm1510, %v1659, 0.0
      %v1776 = vadd.f32 %v1774, %v1775
      %v1777 = vsel %vm1510, %v1662, 0.0
      %v1778 = vadd.f32 %v1776, %v1777
      %v1779 = vsel %vm1510, %v1667, 0.0
      %v1780 = vadd.f32 %v1778, %v1779
      %v1781 = vsel %vm1510, %v1670, 0.0
      %v1782 = vadd.f32 %v1780, %v1781
      %v1783 = vsel %vm1510, %v1675, 0.0
      %v1784 = vadd.f32 %v1782, %v1783
      %v1785 = vsel %vm1510, %v1678, 0.0
      %v1786 = vadd.f32 %v1784, %v1785
      %v1787 = vsel %vm1510, %v1683, 0.0
      %v1788 = vadd.f32 %v1786, %v1787
      %v1789 = vsel %vm1510, %v1686, 0.0
      %v1790 = vadd.f32 %v1788, %v1789
      %v1791 = vsel %vm1510, %v1691, 0.0
      %v1792 = vadd.f32 %v1790, %v1791
      %v1793 = vsel %vm1510, %v1694, 0.0
      %v1794 = vadd.f32 %v1792, %v1793
      %v1795 = vsel %vm1510, %v1699, 0.0
      %v1796 = vadd.f32 %v1794, %v1795
      %v1797 = vsel %vm1510, %v1702, 0.0
      %v1798 = vadd.f32 %v1796, %v1797
      %v1799 = vsel %vm1510, %v1707, 0.0
      %v1800 = vadd.f32 %v1798, %v1799
      %v1801 = vsel %vm1510, %v1710, 0.0
      %v1802 = vadd.f32 %v1800, %v1801
      %v1803 = vsel %vm1510, %v1715, 0.0
      %v1804 = vadd.f32 %v1802, %v1803
      %v1805 = vsel %vm1510, %v1718, 0.0
      %v1806 = vadd.f32 %v1804, %v1805
      %v1807 = vsel %vm1510, %v1723, 0.0
      %v1808 = vadd.f32 %v1806, %v1807
      %v1809 = vsel %vm1510, %v1726, 0.0
      %v1810 = vadd.f32 %v1808, %v1809
      %v1811 = vsel %vm1510, %v1731, 0.0
      %v1812 = vadd.f32 %v1810, %v1811
      %v1813 = vsel %vm1510, %v1734, 0.0
      %v1814 = vadd.f32 %v1812, %v1813
      %v1815 = vsel %vm1510, %v1739, 0.0
      %v1816 = vadd.f32 %v1814, %v1815
      %v1817 = vsel %vm1510, %v1742, 0.0
      %v1818 = vadd.f32 %v1816, %v1817
      %v1819 = vsel %vm1510, %v1747, 0.0
      %v1820 = vadd.f32 %v1818, %v1819
      %v1821 = vsel %vm1510, %v1750, 0.0
      %v1822 = vadd.f32 %v1820, %v1821
      %v1823 = vsel %vm1510, %v1755, 0.0
      %v1824 = vadd.f32 %v1822, %v1823
      %v1825 = vsel %vm1510, %v1758, 0.0
      %v1826 = vadd.f32 %v1824, %v1825
      %v1827 = vrot.slane %v1826, 4
      %v1828 = vadd.f32 %v1826, %v1827
      %v1829 = vrot.slane %v1828, 2
      %v1830 = vadd.f32 %v1828, %v1829
      %v1831 = vrot.slane %v1830, 1
      %v1832 = vadd.f32 %v1830, %v1831
      %v1833 = vmul.f32 %v1635, %v1635
      %v1834 = vmul.f32 %v1638, %v1638
      %v1835 = vmul.f32 %v1643, %v1643
      %v1836 = vmul.f32 %v1646, %v1646
      %v1837 = vmul.f32 %v1651, %v1651
      %v1838 = vmul.f32 %v1654, %v1654
      %v1839 = vmul.f32 %v1659, %v1659
      %v1840 = vmul.f32 %v1662, %v1662
      %v1841 = vmul.f32 %v1667, %v1667
      %v1842 = vmul.f32 %v1670, %v1670
      %v1843 = vmul.f32 %v1675, %v1675
      %v1844 = vmul.f32 %v1678, %v1678
      %v1845 = vmul.f32 %v1683, %v1683
      %v1846 = vmul.f32 %v1686, %v1686
      %v1847 = vmul.f32 %v1691, %v1691
      %v1848 = vmul.f32 %v1694, %v1694
      %v1849 = vmul.f32 %v1699, %v1699
      %v1850 = vmul.f32 %v1702, %v1702
      %v1851 = vmul.f32 %v1707, %v1707
      %v1852 = vmul.f32 %v1710, %v1710
      %v1853 = vmul.f32 %v1715, %v1715
      %v1854 = vmul.f32 %v1718, %v1718
      %v1855 = vmul.f32 %v1723, %v1723
      %v1856 = vmul.f32 %v1726, %v1726
      %v1857 = vmul.f32 %v1731, %v1731
      %v1858 = vmul.f32 %v1734, %v1734
      %v1859 = vmul.f32 %v1739, %v1739
      %v1860 = vmul.f32 %v1742, %v1742
      %v1861 = vmul.f32 %v1747, %v1747
      %v1862 = vmul.f32 %v1750, %v1750
      %v1863 = vmul.f32 %v1755, %v1755
      %v1864 = vmul.f32 %v1758, %v1758
      %v1865 = vsel %vm1510, %v1833, 0.0
      %v1866 = vsel %vm1510, %v1834, 0.0
      %v1867 = vadd.f32 %v1865, %v1866
      %v1868 = vsel %vm1510, %v1835, 0.0
      %v1869 = vadd.f32 %v1867, %v1868
      %v1870 = vsel %vm1510, %v1836, 0.0
      %v1871 = vadd.f32 %v1869, %v1870
      %v1872 = vsel %vm1510, %v1837, 0.0
      %v1873 = vadd.f32 %v1871, %v1872
      %v1874 = vsel %vm1510, %v1838, 0.0
      %v1875 = vadd.f32 %v1873, %v1874
      %v1876 = vsel %vm1510, %v1839, 0.0
      %v1877 = vadd.f32 %v1875, %v1876
      %v1878 = vsel %vm1510, %v1840, 0.0
      %v1879 = vadd.f32 %v1877, %v1878
      %v1880 = vsel %vm1510, %v1841, 0.0
      %v1881 = vadd.f32 %v1879, %v1880
      %v1882 = vsel %vm1510, %v1842, 0.0
      %v1883 = vadd.f32 %v1881, %v1882
      %v1884 = vsel %vm1510, %v1843, 0.0
      %v1885 = vadd.f32 %v1883, %v1884
      %v1886 = vsel %vm1510, %v1844, 0.0
      %v1887 = vadd.f32 %v1885, %v1886
      %v1888 = vsel %vm1510, %v1845, 0.0
      %v1889 = vadd.f32 %v1887, %v1888
      %v1890 = vsel %vm1510, %v1846, 0.0
      %v1891 = vadd.f32 %v1889, %v1890
      %v1892 = vsel %vm1510, %v1847, 0.0
      %v1893 = vadd.f32 %v1891, %v1892
      %v1894 = vsel %vm1510, %v1848, 0.0
      %v1895 = vadd.f32 %v1893, %v1894
      %v1896 = vsel %vm1510, %v1849, 0.0
      %v1897 = vadd.f32 %v1895, %v1896
      %v1898 = vsel %vm1510, %v1850, 0.0
      %v1899 = vadd.f32 %v1897, %v1898
      %v1900 = vsel %vm1510, %v1851, 0.0
      %v1901 = vadd.f32 %v1899, %v1900
      %v1902 = vsel %vm1510, %v1852, 0.0
      %v1903 = vadd.f32 %v1901, %v1902
      %v1904 = vsel %vm1510, %v1853, 0.0
      %v1905 = vadd.f32 %v1903, %v1904
      %v1906 = vsel %vm1510, %v1854, 0.0
      %v1907 = vadd.f32 %v1905, %v1906
      %v1908 = vsel %vm1510, %v1855, 0.0
      %v1909 = vadd.f32 %v1907, %v1908
      %v1910 = vsel %vm1510, %v1856, 0.0
      %v1911 = vadd.f32 %v1909, %v1910
      %v1912 = vsel %vm1510, %v1857, 0.0
      %v1913 = vadd.f32 %v1911, %v1912
      %v1914 = vsel %vm1510, %v1858, 0.0
      %v1915 = vadd.f32 %v1913, %v1914
      %v1916 = vsel %vm1510, %v1859, 0.0
      %v1917 = vadd.f32 %v1915, %v1916
      %v1918 = vsel %vm1510, %v1860, 0.0
      %v1919 = vadd.f32 %v1917, %v1918
      %v1920 = vsel %vm1510, %v1861, 0.0
      %v1921 = vadd.f32 %v1919, %v1920
      %v1922 = vsel %vm1510, %v1862, 0.0
      %v1923 = vadd.f32 %v1921, %v1922
      %v1924 = vsel %vm1510, %v1863, 0.0
      %v1925 = vadd.f32 %v1923, %v1924
      %v1926 = vsel %vm1510, %v1864, 0.0
      %v1927 = vadd.f32 %v1925, %v1926
      %v1928 = vrot.slane %v1927, 4
      %v1929 = vadd.f32 %v1927, %v1928
      %v1930 = vrot.slane %v1929, 2
      %v1931 = vadd.f32 %v1929, %v1930
      %v1932 = vrot.slane %v1931, 1
      %v1933 = vadd.f32 %v1931, %v1932
      %v1934 = vmul.f32 %v1763, 2.0
      %v1935 = vmul.f32 %v1934, %v1832
      %v1936 = vadd.f32 %v1933, %v1935
      %v1937 = vmul.f32 %v1763, 256.0
      %v1938 = vmul.f32 %v1937, %v1763
      %v1939 = vadd.f32 %v1936, %v1938
      %v1940 = vadd.f32 %v1832, %v1937
      %v1942 = vrot.slane %v1939, 7
      %vm1944 = vcmask 1040384
      %v1945 = vsel %vm1944, %v1940, %v1942
      %v1947 = vsel %vm1510, %v1945, 0
      %1949 = vmatprep.subr.mxu0 0.0
      %1950 = vmatpush1.msra.mxu0 %v443
      %1951 = vmatprep.subr.mxu0 0.0
      %1952 = vmatpush1.msra.mxu0 %v444
      %1953 = vmatprep.subr.mxu0 0.0
      %1954 = vmatpush1.msra.mxu0 %v445
      %1955 = vmatprep.subr.mxu0 0.0
      %1956 = vmatpush1.msra.mxu0 %v446
      %1957 = vmatprep.subr.mxu0 0.0
      %1958 = vmatpush1.msra.mxu0 0.0
      %1959 = vmatprep.subr.mxu0 0.0
      %1960 = vmatpush1.msra.mxu0 0.0
      %1961 = vmatprep.subr.mxu0 0.0
      %1962 = vmatpush1.msra.mxu0 0.0
      %1963 = vmatprep.subr.mxu0 0.0
      %1964 = vmatpush1.msra.mxu0 0.0
      %1965 = vmatprep.subr.mxu0 0.0
      %1966 = vmatpush1.msra.mxu0 0.0
      %1967 = vmatprep.subr.mxu0 0.0
      %1968 = vmatpush1.msra.mxu0 0.0
      %1969 = vmatprep.subr.mxu0 0.0
      %1970 = vmatpush1.msra.mxu0 0.0
      %1971 = vmatprep.subr.mxu0 0.0
      %1972 = vmatpush1.msra.mxu0 0.0
      %1973 = vmatprep.subr.mxu0 0.0
      %1974 = vmatpush1.msra.mxu0 0.0
      %1975 = vmatprep.subr.mxu0 0.0
      %1976 = vmatpush1.msra.mxu0 0.0
      %1977 = vmatprep.subr.mxu0 0.0
      %1978 = vmatpush1.msra.mxu0 0.0
      %1979 = vmatprep.subr.mxu0 0.0
      %1980 = vmatpush1.msra.mxu0 0.0
      %1981 = vmatprep.subr.mxu0 0.0
      %1982 = vmatpush1.msra.mxu0 0.0
      %1983 = vmatprep.subr.mxu0 0.0
      %1984 = vmatpush1.msra.mxu0 0.0
      %1985 = vmatprep.subr.mxu0 0.0
      %1986 = vmatpush1.msra.mxu0 0.0
      %1987 = vmatprep.subr.mxu0 0.0
      %1988 = vmatpush1.msra.mxu0 0.0
      %1989 = vmatprep.subr.mxu0 0.0
      %1990 = vmatpush1.msra.mxu0 0.0
      %1991 = vmatprep.subr.mxu0 0.0
      %1992 = vmatpush1.msra.mxu0 0.0
      %1993 = vmatprep.subr.mxu0 0.0
      %1994 = vmatpush1.msra.mxu0 0.0
      %1995 = vmatprep.subr.mxu0 0.0
      %1996 = vmatpush1.msra.mxu0 0.0
      %1997 = vmatprep.subr.mxu0 0.0
      %1998 = vmatpush1.msra.mxu0 0.0
      %1999 = vmatprep.subr.mxu0 0.0
      %2000 = vmatpush1.msra.mxu0 0.0
      %2001 = vmatprep.subr.mxu0 0.0
      %2002 = vmatpush1.msra.mxu0 0.0
      %2003 = vmatprep.subr.mxu0 0.0
      %2004 = vmatpush1.msra.mxu0 0.0
      %2005 = vmatprep.subr.mxu0 0.0
      %2006 = vmatpush1.msra.mxu0 0.0
      %2007 = vmatprep.subr.mxu0 0.0
      %2008 = vmatpush1.msra.mxu0 0.0
      %2009 = vmatprep.subr.mxu0 0.0
      %2010 = vmatpush1.msra.mxu0 0.0
      %2011 = vmatprep.subr.mxu0 0.0
      %2012 = vmatpush1.msra.mxu0 0.0
      %2013 = vmatprep.mubr.f32.mxu0 0.0
      %2014 = vmatmul.mubr.f32.gmra.mrb[0].mxu0 %v1947
      %v2015 = vpop.f32.mrb[0].mxu0
      %v2016 = vadd.f32 0.0, %v2015
      %v2017 = vpop.f32.mrb[0].mxu0
      %2018 = vdwg.mxu0
      %v2019 = vmul.f32 %v2016, %v2016
      %v2021 = vrot.slane %v2019, 7
      %v2023 = vsub.f32 %v2016, %v2021
      %v2024 = vmax.f32 %v2023, 0.0
      %v2025 = vadd.f32 %v2024, 1e-05
      %v2026 = vrsqrt.pop %v2025
      %v2029 = vunpack.c.l.s4 1966171168
      %v2030 = vunpack.c.0.s8 %v2029
      %v2031 = vlaneseq
      %v2032 = vshrl.u32 %v2031, 7
      %v2033 = vsub.s32 %v2030, %v2032
      %v2034 = vrot.slane %v2026, %v2033
      %v2035 = vcombine.high %v2034, %v2034
      %v2037 = vunpack.c.l.s4 1966171168
      %v2038 = vunpack.c.0.s8 %v2037
      %v2039 = vlaneseq
      %v2040 = vshrl.u32 %v2039, 7
      %v2041 = vsub.s32 %v2038, %v2040
      %v2042 = vrot.slane %v2035, %v2041
      %v2044 = vmul.f32 %v1761, %v2042
      %v2045 = vmul.f32 %v2016, %v2044
      %v2046 = vsub.f32 %v1762, %v2045
      %v2047 = vmul.f32 %v1763, %v2044
      %v2048 = vadd.f32 %v2046, %v2047
      %v2050 = vlaneseq
      %v2051 = vshrl.u32 %v2050, 7
      %v2052 = vsub.s32 0, %v2051
      %v2053 = vrot.slane %v2044, %v2052
      %v2055 = vmul.f32 %v1635, %v2053
      %v2056 = vmul.f32 %v1638, %v2053
      %v2057 = vmul.f32 %v1643, %v2053
      %v2058 = vmul.f32 %v1646, %v2053
      %v2059 = vmul.f32 %v1651, %v2053
      %v2060 = vmul.f32 %v1654, %v2053
      %v2061 = vmul.f32 %v1659, %v2053
      %v2062 = vmul.f32 %v1662, %v2053
      %v2063 = vmul.f32 %v1667, %v2053
      %v2064 = vmul.f32 %v1670, %v2053
      %v2065 = vmul.f32 %v1675, %v2053
      %v2066 = vmul.f32 %v1678, %v2053
      %v2067 = vmul.f32 %v1683, %v2053
      %v2068 = vmul.f32 %v1686, %v2053
      %v2069 = vmul.f32 %v1691, %v2053
      %v2070 = vmul.f32 %v1694, %v2053
      %v2071 = vmul.f32 %v1699, %v2053
      %v2072 = vmul.f32 %v1702, %v2053
      %v2073 = vmul.f32 %v1707, %v2053
      %v2074 = vmul.f32 %v1710, %v2053
      %v2075 = vmul.f32 %v1715, %v2053
      %v2076 = vmul.f32 %v1718, %v2053
      %v2077 = vmul.f32 %v1723, %v2053
      %v2078 = vmul.f32 %v1726, %v2053
      %v2079 = vmul.f32 %v1731, %v2053
      %v2080 = vmul.f32 %v1734, %v2053
      %v2081 = vmul.f32 %v1739, %v2053
      %v2082 = vmul.f32 %v1742, %v2053
      %v2083 = vmul.f32 %v1747, %v2053
      %v2084 = vmul.f32 %v1750, %v2053
      %v2085 = vmul.f32 %v1755, %v2053
      %v2086 = vmul.f32 %v1758, %v2053
      %v2088 = vlaneseq
      %v2089 = vshrl.u32 %v2088, 7
      %v2090 = vsub.s32 0, %v2089
      %v2091 = vrot.slane %v2048, %v2090
      %v2093 = vadd.f32 %v2055, %v2091
      %v2094 = vadd.f32 %v2056, %v2091
      %v2095 = vadd.f32 %v2057, %v2091
      %v2096 = vadd.f32 %v2058, %v2091
      %v2097 = vadd.f32 %v2059, %v2091
      %v2098 = vadd.f32 %v2060, %v2091
      %v2099 = vadd.f32 %v2061, %v2091
      %v2100 = vadd.f32 %v2062, %v2091
      %v2101 = vadd.f32 %v2063, %v2091
      %v2102 = vadd.f32 %v2064, %v2091
      %v2103 = vadd.f32 %v2065, %v2091
      %v2104 = vadd.f32 %v2066, %v2091
      %v2105 = vadd.f32 %v2067, %v2091
      %v2106 = vadd.f32 %v2068, %v2091
      %v2107 = vadd.f32 %v2069, %v2091
      %v2108 = vadd.f32 %v2070, %v2091
      %v2109 = vadd.f32 %v2071, %v2091
      %v2110 = vadd.f32 %v2072, %v2091
      %v2111 = vadd.f32 %v2073, %v2091
      %v2112 = vadd.f32 %v2074, %v2091
      %v2113 = vadd.f32 %v2075, %v2091
      %v2114 = vadd.f32 %v2076, %v2091
      %v2115 = vadd.f32 %v2077, %v2091
      %v2116 = vadd.f32 %v2078, %v2091
      %v2117 = vadd.f32 %v2079, %v2091
      %v2118 = vadd.f32 %v2080, %v2091
      %v2119 = vadd.f32 %v2081, %v2091
      %v2120 = vadd.f32 %v2082, %v2091
      %v2121 = vadd.f32 %v2083, %v2091
      %v2122 = vadd.f32 %v2084, %v2091
      %v2123 = vadd.f32 %v2085, %v2091
      %v2124 = vadd.f32 %v2086, %v2091
      %v2125 = vmax.f32 %v2093, 0.0
      %v2126 = vmax.f32 %v2094, 0.0
      %v2127 = vmax.f32 %v2095, 0.0
      %v2128 = vmax.f32 %v2096, 0.0
      %v2129 = vmax.f32 %v2097, 0.0
      %v2130 = vmax.f32 %v2098, 0.0
      %v2131 = vmax.f32 %v2099, 0.0
      %v2132 = vmax.f32 %v2100, 0.0
      %v2133 = vmax.f32 %v2101, 0.0
      %v2134 = vmax.f32 %v2102, 0.0
      %v2135 = vmax.f32 %v2103, 0.0
      %v2136 = vmax.f32 %v2104, 0.0
      %v2137 = vmax.f32 %v2105, 0.0
      %v2138 = vmax.f32 %v2106, 0.0
      %v2139 = vmax.f32 %v2107, 0.0
      %v2140 = vmax.f32 %v2108, 0.0
      %v2141 = vmax.f32 %v2109, 0.0
      %v2142 = vmax.f32 %v2110, 0.0
      %v2143 = vmax.f32 %v2111, 0.0
      %v2144 = vmax.f32 %v2112, 0.0
      %v2145 = vmax.f32 %v2113, 0.0
      %v2146 = vmax.f32 %v2114, 0.0
      %v2147 = vmax.f32 %v2115, 0.0
      %v2148 = vmax.f32 %v2116, 0.0
      %v2149 = vmax.f32 %v2117, 0.0
      %v2150 = vmax.f32 %v2118, 0.0
      %v2151 = vmax.f32 %v2119, 0.0
      %v2152 = vmax.f32 %v2120, 0.0
      %v2153 = vmax.f32 %v2121, 0.0
      %v2154 = vmax.f32 %v2122, 0.0
      %v2155 = vmax.f32 %v2123, 0.0
      %v2156 = vmax.f32 %v2124, 0.0
      %v2157 = vld [vmem:[%s401] sm:$0xf]
      %v2158 = vld [vmem:[%s401 + $0x4] sm:$0xf]
      %v2159 = vld [vmem:[%s401 + $0x8] sm:$0xf]
      %v2160 = vld [vmem:[%s401 + $0xc] sm:$0xf]
      %v2161 = vld [vmem:[%s401 + $0x10] sm:$0xf]
      %v2162 = vld [vmem:[%s401 + $0x14] sm:$0xf]
      %v2163 = vld [vmem:[%s401 + $0x18] sm:$0xf]
      %v2164 = vld [vmem:[%s401 + $0x1c] sm:$0xf]
      %v2165 = vld [vmem:[%s401 + $0x20] sm:$0xf]
      %v2166 = vld [vmem:[%s401 + $0x24] sm:$0xf]
      %v2167 = vld [vmem:[%s401 + $0x28] sm:$0xf]
      %v2168 = vld [vmem:[%s401 + $0x2c] sm:$0xf]
      %v2169 = vld [vmem:[%s401 + $0x30] sm:$0xf]
      %v2170 = vld [vmem:[%s401 + $0x34] sm:$0xf]
      %v2171 = vld [vmem:[%s401 + $0x38] sm:$0xf]
      %v2172 = vld [vmem:[%s401 + $0x3c] sm:$0xf]
      %v2173 = vld [vmem:[%s401 + $0x40] sm:$0xf]
      %v2174 = vld [vmem:[%s401 + $0x44] sm:$0xf]
      %v2175 = vld [vmem:[%s401 + $0x48] sm:$0xf]
      %v2176 = vld [vmem:[%s401 + $0x4c] sm:$0xf]
      %v2177 = vld [vmem:[%s401 + $0x50] sm:$0xf]
      %v2178 = vld [vmem:[%s401 + $0x54] sm:$0xf]
      %v2179 = vld [vmem:[%s401 + $0x58] sm:$0xf]
      %v2180 = vld [vmem:[%s401 + $0x5c] sm:$0xf]
      %v2181 = vld [vmem:[%s401 + $0x60] sm:$0xf]
      %v2182 = vld [vmem:[%s401 + $0x64] sm:$0xf]
      %v2183 = vld [vmem:[%s401 + $0x68] sm:$0xf]
      %v2184 = vld [vmem:[%s401 + $0x6c] sm:$0xf]
      %v2185 = vld [vmem:[%s401 + $0x70] sm:$0xf]
      %v2186 = vld [vmem:[%s401 + $0x74] sm:$0xf]
      %v2187 = vld [vmem:[%s401 + $0x78] sm:$0xf]
      %v2188 = vld [vmem:[%s401 + $0x7c] sm:$0xf]
      %v2189 = vunpack.c.l.bf16 %v2157
      %v2190 = vunpack.c.l.bf16 %v2158
      %v2191 = vunpack.c.l.bf16 %v2159
      %v2192 = vunpack.c.l.bf16 %v2160
      %v2193 = vunpack.c.l.bf16 %v2161
      %v2194 = vunpack.c.l.bf16 %v2162
      %v2195 = vunpack.c.l.bf16 %v2163
      %v2196 = vunpack.c.l.bf16 %v2164
      %v2197 = vunpack.c.l.bf16 %v2165
      %v2198 = vunpack.c.l.bf16 %v2166
      %v2199 = vunpack.c.l.bf16 %v2167
      %v2200 = vunpack.c.l.bf16 %v2168
      %v2201 = vunpack.c.l.bf16 %v2169
      %v2202 = vunpack.c.l.bf16 %v2170
      %v2203 = vunpack.c.l.bf16 %v2171
      %v2204 = vunpack.c.l.bf16 %v2172
      %v2205 = vunpack.c.l.bf16 %v2173
      %v2206 = vunpack.c.l.bf16 %v2174
      %v2207 = vunpack.c.l.bf16 %v2175
      %v2208 = vunpack.c.l.bf16 %v2176
      %v2209 = vunpack.c.l.bf16 %v2177
      %v2210 = vunpack.c.l.bf16 %v2178
      %v2211 = vunpack.c.l.bf16 %v2179
      %v2212 = vunpack.c.l.bf16 %v2180
      %v2213 = vunpack.c.l.bf16 %v2181
      %v2214 = vunpack.c.l.bf16 %v2182
      %v2215 = vunpack.c.l.bf16 %v2183
      %v2216 = vunpack.c.l.bf16 %v2184
      %v2217 = vunpack.c.l.bf16 %v2185
      %v2218 = vunpack.c.l.bf16 %v2186
      %v2219 = vunpack.c.l.bf16 %v2187
      %v2220 = vunpack.c.l.bf16 %v2188
      %v2221 = vadd.f32 %v2125, %v2189
      %v2222 = vadd.f32 %v2126, %v2190
      %v2223 = vadd.f32 %v2127, %v2191
      %v2224 = vadd.f32 %v2128, %v2192
      %v2225 = vadd.f32 %v2129, %v2193
      %v2226 = vadd.f32 %v2130, %v2194
      %v2227 = vadd.f32 %v2131, %v2195
      %v2228 = vadd.f32 %v2132, %v2196
      %v2229 = vadd.f32 %v2133, %v2197
      %v2230 = vadd.f32 %v2134, %v2198
      %v2231 = vadd.f32 %v2135, %v2199
      %v2232 = vadd.f32 %v2136, %v2200
      %v2233 = vadd.f32 %v2137, %v2201
      %v2234 = vadd.f32 %v2138, %v2202
      %v2235 = vadd.f32 %v2139, %v2203
      %v2236 = vadd.f32 %v2140, %v2204
      %v2237 = vadd.f32 %v2141, %v2205
      %v2238 = vadd.f32 %v2142, %v2206
      %v2239 = vadd.f32 %v2143, %v2207
      %v2240 = vadd.f32 %v2144, %v2208
      %v2241 = vadd.f32 %v2145, %v2209
      %v2242 = vadd.f32 %v2146, %v2210
      %v2243 = vadd.f32 %v2147, %v2211
      %v2244 = vadd.f32 %v2148, %v2212
      %v2245 = vadd.f32 %v2149, %v2213
      %v2246 = vadd.f32 %v2150, %v2214
      %v2247 = vadd.f32 %v2151, %v2215
      %v2248 = vadd.f32 %v2152, %v2216
      %v2249 = vadd.f32 %v2153, %v2217
      %v2250 = vadd.f32 %v2154, %v2218
      %v2251 = vadd.f32 %v2155, %v2219
      %v2252 = vadd.f32 %v2156, %v2220
      %v2253 = vpack.c.bf16 %v2222, %v2221
      %v2254 = vpack.c.bf16 %v2224, %v2223
      %v2255 = vpack.c.bf16 %v2226, %v2225
      %v2256 = vpack.c.bf16 %v2228, %v2227
      %v2257 = vpack.c.bf16 %v2230, %v2229
      %v2258 = vpack.c.bf16 %v2232, %v2231
      %v2259 = vpack.c.bf16 %v2234, %v2233
      %v2260 = vpack.c.bf16 %v2236, %v2235
      %v2261 = vpack.c.bf16 %v2238, %v2237
      %v2262 = vpack.c.bf16 %v2240, %v2239
      %v2263 = vpack.c.bf16 %v2242, %v2241
      %v2264 = vpack.c.bf16 %v2244, %v2243
      %v2265 = vpack.c.bf16 %v2246, %v2245
      %v2266 = vpack.c.bf16 %v2248, %v2247
      %v2267 = vpack.c.bf16 %v2250, %v2249
      %v2268 = vpack.c.bf16 %v2252, %v2251
      %v2270 = vshrl.u32 %v2253, 16
      %v2272 = vrot.slane %v2270, 7
      %v2273 = vshll.u32 %v2253, 16
      %v2275 = vor.u32 %v2272, %v2273
      %v2277 = vshrl.u32 %v2254, 16
      %v2279 = vrot.slane %v2277, 7
      %v2280 = vshll.u32 %v2254, 16
      %v2282 = vor.u32 %v2279, %v2280
      %v2284 = vshrl.u32 %v2255, 16
      %v2286 = vrot.slane %v2284, 7
      %v2287 = vshll.u32 %v2255, 16
      %v2289 = vor.u32 %v2286, %v2287
      %v2291 = vshrl.u32 %v2256, 16
      %v2293 = vrot.slane %v2291, 7
      %v2294 = vshll.u32 %v2256, 16
      %v2296 = vor.u32 %v2293, %v2294
      %v2298 = vshrl.u32 %v2257, 16
      %v2300 = vrot.slane %v2298, 7
      %v2301 = vshll.u32 %v2257, 16
      %v2303 = vor.u32 %v2300, %v2301
      %v2305 = vshrl.u32 %v2258, 16
      %v2307 = vrot.slane %v2305, 7
      %v2308 = vshll.u32 %v2258, 16
      %v2310 = vor.u32 %v2307, %v2308
      %v2312 = vshrl.u32 %v2259, 16
      %v2314 = vrot.slane %v2312, 7
      %v2315 = vshll.u32 %v2259, 16
      %v2317 = vor.u32 %v2314, %v2315
      %v2319 = vshrl.u32 %v2260, 16
      %v2321 = vrot.slane %v2319, 7
      %v2322 = vshll.u32 %v2260, 16
      %v2324 = vor.u32 %v2321, %v2322
      %v2326 = vshrl.u32 %v2261, 16
      %v2328 = vrot.slane %v2326, 7
      %v2329 = vshll.u32 %v2261, 16
      %v2331 = vor.u32 %v2328, %v2329
      %v2333 = vshrl.u32 %v2262, 16
      %v2335 = vrot.slane %v2333, 7
      %v2336 = vshll.u32 %v2262, 16
      %v2338 = vor.u32 %v2335, %v2336
      %v2340 = vshrl.u32 %v2263, 16
      %v2342 = vrot.slane %v2340, 7
      %v2343 = vshll.u32 %v2263, 16
      %v2345 = vor.u32 %v2342, %v2343
      %v2347 = vshrl.u32 %v2264, 16
      %v2349 = vrot.slane %v2347, 7
      %v2350 = vshll.u32 %v2264, 16
      %v2352 = vor.u32 %v2349, %v2350
      %v2354 = vshrl.u32 %v2265, 16
      %v2356 = vrot.slane %v2354, 7
      %v2357 = vshll.u32 %v2265, 16
      %v2359 = vor.u32 %v2356, %v2357
      %v2361 = vshrl.u32 %v2266, 16
      %v2363 = vrot.slane %v2361, 7
      %v2364 = vshll.u32 %v2266, 16
      %v2366 = vor.u32 %v2363, %v2364
      %v2368 = vshrl.u32 %v2267, 16
      %v2370 = vrot.slane %v2368, 7
      %v2371 = vshll.u32 %v2267, 16
      %v2373 = vor.u32 %v2370, %v2371
      %v2375 = vshrl.u32 %v2268, 16
      %v2377 = vrot.slane %v2375, 7
      %v2378 = vshll.u32 %v2268, 16
      %v2380 = vor.u32 %v2377, %v2378
      %v2413 = vsel %vm705, 0, %v2275
      %v2414 = vsel %vm705, 0, %v2282
      %v2415 = vsel %vm705, 0, %v2289
      %v2416 = vsel %vm705, 0, %v2296
      %v2417 = vsel %vm705, 0, %v2303
      %v2418 = vsel %vm705, 0, %v2310
      %v2419 = vsel %vm705, 0, %v2317
      %v2420 = vsel %vm705, 0, %v2324
      %v2421 = vsel %vm705, 0, %v2331
      %v2422 = vsel %vm705, 0, %v2338
      %v2423 = vsel %vm705, 0, %v2345
      %v2424 = vsel %vm705, 0, %v2352
      %v2425 = vsel %vm705, 0, %v2359
      %v2426 = vsel %vm705, 0, %v2366
      %v2427 = vsel %vm705, 0, %v2373
      %v2428 = vsel %vm705, 0, %v2380
      %v2429 = vsel %vm705, %v2272, 0
      %v2430 = vsel %vm705, %v2279, 0
      %v2431 = vsel %vm705, %v2286, 0
      %v2432 = vsel %vm705, %v2293, 0
      %v2433 = vsel %vm705, %v2300, 0
      %v2434 = vsel %vm705, %v2307, 0
      %v2435 = vsel %vm705, %v2314, 0
      %v2436 = vsel %vm705, %v2321, 0
      %v2437 = vsel %vm705, %v2328, 0
      %v2438 = vsel %vm705, %v2335, 0
      %v2439 = vsel %vm705, %v2342, 0
      %v2440 = vsel %vm705, %v2349, 0
      %v2441 = vsel %vm705, %v2356, 0
      %v2442 = vsel %vm705, %v2363, 0
      %v2443 = vsel %vm705, %v2370, 0
      %v2444 = vsel %vm705, %v2377, 0
      %v2446 = vshrl.u32 %v2413, 16
      %v2448 = vshll.u32 %v2413, 16
      %v2450 = vrot.slane %v2448, 1
      %v2451 = vor.u32 %v2446, %v2450
      %v2453 = vshll.u32 %v2429, 16
      %v2455 = vrot.slane %v2453, 1
      %v2456 = vsel %vm738, %v2451, %v2455
      %v2458 = vshrl.u32 %v2414, 16
      %v2460 = vshll.u32 %v2414, 16
      %v2462 = vrot.slane %v2460, 1
      %v2463 = vor.u32 %v2458, %v2462
      %v2465 = vshll.u32 %v2430, 16
      %v2467 = vrot.slane %v2465, 1
      %v2468 = vsel %vm738, %v2463, %v2467
      %v2470 = vshrl.u32 %v2415, 16
      %v2472 = vshll.u32 %v2415, 16
      %v2474 = vrot.slane %v2472, 1
      %v2475 = vor.u32 %v2470, %v2474
      %v2477 = vshll.u32 %v2431, 16
      %v2479 = vrot.slane %v2477, 1
      %v2480 = vsel %vm738, %v2475, %v2479
      %v2482 = vshrl.u32 %v2416, 16
      %v2484 = vshll.u32 %v2416, 16
      %v2486 = vrot.slane %v2484, 1
      %v2487 = vor.u32 %v2482, %v2486
      %v2489 = vshll.u32 %v2432, 16
      %v2491 = vrot.slane %v2489, 1
      %v2492 = vsel %vm738, %v2487, %v2491
      %v2494 = vshrl.u32 %v2417, 16
      %v2496 = vshll.u32 %v2417, 16
      %v2498 = vrot.slane %v2496, 1
      %v2499 = vor.u32 %v2494, %v2498
      %v2501 = vshll.u32 %v2433, 16
      %v2503 = vrot.slane %v2501, 1
      %v2504 = vsel %vm738, %v2499, %v2503
      %v2506 = vshrl.u32 %v2418, 16
      %v2508 = vshll.u32 %v2418, 16
      %v2510 = vrot.slane %v2508, 1
      %v2511 = vor.u32 %v2506, %v2510
      %v2513 = vshll.u32 %v2434, 16
      %v2515 = vrot.slane %v2513, 1
      %v2516 = vsel %vm738, %v2511, %v2515
      %v2518 = vshrl.u32 %v2419, 16
      %v2520 = vshll.u32 %v2419, 16
      %v2522 = vrot.slane %v2520, 1
      %v2523 = vor.u32 %v2518, %v2522
      %v2525 = vshll.u32 %v2435, 16
      %v2527 = vrot.slane %v2525, 1
      %v2528 = vsel %vm738, %v2523, %v2527
      %v2530 = vshrl.u32 %v2420, 16
      %v2532 = vshll.u32 %v2420, 16
      %v2534 = vrot.slane %v2532, 1
      %v2535 = vor.u32 %v2530, %v2534
      %v2537 = vshll.u32 %v2436, 16
      %v2539 = vrot.slane %v2537, 1
      %v2540 = vsel %vm738, %v2535, %v2539
      %v2542 = vshrl.u32 %v2421, 16
      %v2544 = vshll.u32 %v2421, 16
      %v2546 = vrot.slane %v2544, 1
      %v2547 = vor.u32 %v2542, %v2546
      %v2549 = vshll.u32 %v2437, 16
      %v2551 = vrot.slane %v2549, 1
      %v2552 = vsel %vm738, %v2547, %v2551
      %v2554 = vshrl.u32 %v2422, 16
      %v2556 = vshll.u32 %v2422, 16
      %v2558 = vrot.slane %v2556, 1
      %v2559 = vor.u32 %v2554, %v2558
      %v2561 = vshll.u32 %v2438, 16
      %v2563 = vrot.slane %v2561, 1
      %v2564 = vsel %vm738, %v2559, %v2563
      %v2566 = vshrl.u32 %v2423, 16
      %v2568 = vshll.u32 %v2423, 16
      %v2570 = vrot.slane %v2568, 1
      %v2571 = vor.u32 %v2566, %v2570
      %v2573 = vshll.u32 %v2439, 16
      %v2575 = vrot.slane %v2573, 1
      %v2576 = vsel %vm738, %v2571, %v2575
      %v2578 = vshrl.u32 %v2424, 16
      %v2580 = vshll.u32 %v2424, 16
      %v2582 = vrot.slane %v2580, 1
      %v2583 = vor.u32 %v2578, %v2582
      %v2585 = vshll.u32 %v2440, 16
      %v2587 = vrot.slane %v2585, 1
      %v2588 = vsel %vm738, %v2583, %v2587
      %v2590 = vshrl.u32 %v2425, 16
      %v2592 = vshll.u32 %v2425, 16
      %v2594 = vrot.slane %v2592, 1
      %v2595 = vor.u32 %v2590, %v2594
      %v2597 = vshll.u32 %v2441, 16
      %v2599 = vrot.slane %v2597, 1
      %v2600 = vsel %vm738, %v2595, %v2599
      %v2602 = vshrl.u32 %v2426, 16
      %v2604 = vshll.u32 %v2426, 16
      %v2606 = vrot.slane %v2604, 1
      %v2607 = vor.u32 %v2602, %v2606
      %v2609 = vshll.u32 %v2442, 16
      %v2611 = vrot.slane %v2609, 1
      %v2612 = vsel %vm738, %v2607, %v2611
      %v2614 = vshrl.u32 %v2427, 16
      %v2616 = vshll.u32 %v2427, 16
      %v2618 = vrot.slane %v2616, 1
      %v2619 = vor.u32 %v2614, %v2618
      %v2621 = vshll.u32 %v2443, 16
      %v2623 = vrot.slane %v2621, 1
      %v2624 = vsel %vm738, %v2619, %v2623
      %2625 = vrot.lane.b32.xlu0 %v746, 32
      %v2626 = vpop.permute.xlu0 %2625
      %2627 = vrot.lane.b32.xlu0 %v2456, 32
      %v2628 = vpop.permute.xlu0 %2627
      %2629 = vrot.lane.b32.xlu0 %v2468, 32
      %v2630 = vpop.permute.xlu0 %2629
      %2631 = vrot.lane.b32.xlu0 %v2480, 32
      %v2632 = vpop.permute.xlu0 %2631
      %2633 = vrot.lane.b32.xlu0 %v2492, 32
      %v2634 = vpop.permute.xlu0 %2633
      %2635 = vrot.lane.b32.xlu0 %v2504, 32
      %v2636 = vpop.permute.xlu0 %2635
      %2637 = vrot.lane.b32.xlu0 %v2516, 32
      %v2638 = vpop.permute.xlu0 %2637
      %2639 = vrot.lane.b32.xlu0 %v2528, 32
      %v2640 = vpop.permute.xlu0 %2639
      %2641 = vrot.lane.b32.xlu0 %v2540, 32
      %v2642 = vpop.permute.xlu0 %2641
      %2643 = vrot.lane.b32.xlu0 %v2552, 32
      %v2644 = vpop.permute.xlu0 %2643
      %2645 = vrot.lane.b32.xlu0 %v2564, 32
      %v2646 = vpop.permute.xlu0 %2645
      %2647 = vrot.lane.b32.xlu0 %v2576, 32
      %v2648 = vpop.permute.xlu0 %2647
      %2649 = vrot.lane.b32.xlu0 %v2588, 32
      %v2650 = vpop.permute.xlu0 %2649
      %2651 = vrot.lane.b32.xlu0 %v2600, 32
      %v2652 = vpop.permute.xlu0 %2651
      %2653 = vrot.lane.b32.xlu0 %v2612, 32
      %v2654 = vpop.permute.xlu0 %2653
      %2655 = vrot.lane.b32.xlu0 %v2624, 32
      %v2656 = vpop.permute.xlu0 %2655
      %v2687 = vrot.slane %v2413, 1
      %v2688 = vrot.slane %v2429, 1
      %v2689 = vsel %vm990, %v2687, %v2688
      %v2690 = vrot.slane %v2414, 1
      %v2691 = vrot.slane %v2430, 1
      %v2692 = vsel %vm990, %v2690, %v2691
      %v2693 = vrot.slane %v2415, 1
      %v2694 = vrot.slane %v2431, 1
      %v2695 = vsel %vm990, %v2693, %v2694
      %v2696 = vrot.slane %v2416, 1
      %v2697 = vrot.slane %v2432, 1
      %v2698 = vsel %vm990, %v2696, %v2697
      %v2699 = vrot.slane %v2417, 1
      %v2700 = vrot.slane %v2433, 1
      %v2701 = vsel %vm990, %v2699, %v2700
      %v2702 = vrot.slane %v2418, 1
      %v2703 = vrot.slane %v2434, 1
      %v2704 = vsel %vm990, %v2702, %v2703
      %v2705 = vrot.slane %v2419, 1
      %v2706 = vrot.slane %v2435, 1
      %v2707 = vsel %vm990, %v2705, %v2706
      %v2708 = vrot.slane %v2420, 1
      %v2709 = vrot.slane %v2436, 1
      %v2710 = vsel %vm990, %v2708, %v2709
      %v2711 = vrot.slane %v2421, 1
      %v2712 = vrot.slane %v2437, 1
      %v2713 = vsel %vm990, %v2711, %v2712
      %v2714 = vrot.slane %v2422, 1
      %v2715 = vrot.slane %v2438, 1
      %v2716 = vsel %vm990, %v2714, %v2715
      %v2717 = vrot.slane %v2423, 1
      %v2718 = vrot.slane %v2439, 1
      %v2719 = vsel %vm990, %v2717, %v2718
      %v2720 = vrot.slane %v2424, 1
      %v2721 = vrot.slane %v2440, 1
      %v2722 = vsel %vm990, %v2720, %v2721
      %v2723 = vrot.slane %v2425, 1
      %v2724 = vrot.slane %v2441, 1
      %v2725 = vsel %vm990, %v2723, %v2724
      %v2726 = vrot.slane %v2426, 1
      %v2727 = vrot.slane %v2442, 1
      %v2728 = vsel %vm990, %v2726, %v2727
      %v2729 = vrot.slane %v2427, 1
      %v2730 = vrot.slane %v2443, 1
      %v2731 = vsel %vm990, %v2729, %v2730
      %2732 = vrot.lane.b32.xlu0 %v992, 64
      %v2733 = vpop.permute.xlu0 %2732
      %2734 = vrot.lane.b32.xlu0 %v2689, 64
      %v2735 = vpop.permute.xlu0 %2734
      %2736 = vrot.lane.b32.xlu0 %v2692, 64
      %v2737 = vpop.permute.xlu0 %2736
      %2738 = vrot.lane.b32.xlu0 %v2695, 64
      %v2739 = vpop.permute.xlu0 %2738
      %2740 = vrot.lane.b32.xlu0 %v2698, 64
      %v2741 = vpop.permute.xlu0 %2740
      %2742 = vrot.lane.b32.xlu0 %v2701, 64
      %v2743 = vpop.permute.xlu0 %2742
      %2744 = vrot.lane.b32.xlu0 %v2704, 64
      %v2745 = vpop.permute.xlu0 %2744
      %2746 = vrot.lane.b32.xlu0 %v2707, 64
      %v2747 = vpop.permute.xlu0 %2746
      %2748 = vrot.lane.b32.xlu0 %v2710, 64
      %v2749 = vpop.permute.xlu0 %2748
      %2750 = vrot.lane.b32.xlu0 %v2713, 64
      %v2751 = vpop.permute.xlu0 %2750
      %2752 = vrot.lane.b32.xlu0 %v2716, 64
      %v2753 = vpop.permute.xlu0 %2752
      %2754 = vrot.lane.b32.xlu0 %v2719, 64
      %v2755 = vpop.permute.xlu0 %2754
      %2756 = vrot.lane.b32.xlu0 %v2722, 64
      %v2757 = vpop.permute.xlu0 %2756
      %2758 = vrot.lane.b32.xlu0 %v2725, 64
      %v2759 = vpop.permute.xlu0 %2758
      %2760 = vrot.lane.b32.xlu0 %v2728, 64
      %v2761 = vpop.permute.xlu0 %2760
      %2762 = vrot.lane.b32.xlu0 %v2731, 64
      %v2763 = vpop.permute.xlu0 %2762
      %2765 = vrot.lane.b32.xlu0 %v2413, 96
      %v2766 = vpop.permute.xlu0 %2765
      %2767 = vrot.lane.b32.xlu0 %v2414, 96
      %v2768 = vpop.permute.xlu0 %2767
      %2769 = vrot.lane.b32.xlu0 %v2415, 96
      %v2770 = vpop.permute.xlu0 %2769
      %2771 = vrot.lane.b32.xlu0 %v2416, 96
      %v2772 = vpop.permute.xlu0 %2771
      %2773 = vrot.lane.b32.xlu0 %v2417, 96
      %v2774 = vpop.permute.xlu0 %2773
      %2775 = vrot.lane.b32.xlu0 %v2418, 96
      %v2776 = vpop.permute.xlu0 %2775
      %2777 = vrot.lane.b32.xlu0 %v2419, 96
      %v2778 = vpop.permute.xlu0 %2777
      %2779 = vrot.lane.b32.xlu0 %v2420, 96
      %v2780 = vpop.permute.xlu0 %2779
      %2781 = vrot.lane.b32.xlu0 %v2421, 96
      %v2782 = vpop.permute.xlu0 %2781
      %2783 = vrot.lane.b32.xlu0 %v2422, 96
      %v2784 = vpop.permute.xlu0 %2783
      %2785 = vrot.lane.b32.xlu0 %v2423, 96
      %v2786 = vpop.permute.xlu0 %2785
      %2787 = vrot.lane.b32.xlu0 %v2424, 96
      %v2788 = vpop.permute.xlu0 %2787
      %2789 = vrot.lane.b32.xlu0 %v2425, 96
      %v2790 = vpop.permute.xlu0 %2789
      %2791 = vrot.lane.b32.xlu0 %v2426, 96
      %v2792 = vpop.permute.xlu0 %2791
      %2793 = vrot.lane.b32.xlu0 %v2427, 96
      %v2794 = vpop.permute.xlu0 %2793
      %2795 = vrot.lane.b32.xlu0 %v2428, 96
      %v2796 = vpop.permute.xlu0 %2795
      %v2798 = vshrl.u32 %v2428, 16
      %v2800 = vshll.u32 %v2428, 16
      %v2802 = vrot.slane %v2800, 1
      %v2803 = vor.u32 %v2798, %v2802
      %v2805 = vshll.u32 %v2444, 16
      %v2807 = vrot.slane %v2805, 1
      %v2808 = vsel %vm738, %v2803, %v2807
      %v2810 = vrot.slane %v2428, 1
      %v2811 = vrot.slane %v2444, 1
      %v2812 = vsel %vm990, %v2810, %v2811
      %2813 = vrot.lane.b32.xlu0 %v2689, 32
      %v2814 = vpop.permute.xlu0 %2813
      %2815 = vrot.lane.b32.xlu0 %v2692, 32
      %v2816 = vpop.permute.xlu0 %2815
      %2817 = vrot.lane.b32.xlu0 %v2695, 32
      %v2818 = vpop.permute.xlu0 %2817
      %2819 = vrot.lane.b32.xlu0 %v2698, 32
      %v2820 = vpop.permute.xlu0 %2819
      %2821 = vrot.lane.b32.xlu0 %v2701, 32
      %v2822 = vpop.permute.xlu0 %2821
      %2823 = vrot.lane.b32.xlu0 %v2704, 32
      %v2824 = vpop.permute.xlu0 %2823
      %2825 = vrot.lane.b32.xlu0 %v2707, 32
      %v2826 = vpop.permute.xlu0 %2825
      %2827 = vrot.lane.b32.xlu0 %v2710, 32
      %v2828 = vpop.permute.xlu0 %2827
      %2829 = vrot.lane.b32.xlu0 %v2713, 32
      %v2830 = vpop.permute.xlu0 %2829
      %2831 = vrot.lane.b32.xlu0 %v2716, 32
      %v2832 = vpop.permute.xlu0 %2831
      %2833 = vrot.lane.b32.xlu0 %v2719, 32
      %v2834 = vpop.permute.xlu0 %2833
      %2835 = vrot.lane.b32.xlu0 %v2722, 32
      %v2836 = vpop.permute.xlu0 %2835
      %2837 = vrot.lane.b32.xlu0 %v2725, 32
      %v2838 = vpop.permute.xlu0 %2837
      %2839 = vrot.lane.b32.xlu0 %v2728, 32
      %v2840 = vpop.permute.xlu0 %2839
      %2841 = vrot.lane.b32.xlu0 %v2731, 32
      %v2842 = vpop.permute.xlu0 %2841
      %2843 = vrot.lane.b32.xlu0 %v2812, 32
      %v2844 = vpop.permute.xlu0 %2843
      %2845 = vrot.lane.b32.xlu0 %v2414, 64
      %v2846 = vpop.permute.xlu0 %2845
      %2847 = vrot.lane.b32.xlu0 %v2415, 64
      %v2848 = vpop.permute.xlu0 %2847
      %2849 = vrot.lane.b32.xlu0 %v2416, 64
      %v2850 = vpop.permute.xlu0 %2849
      %2851 = vrot.lane.b32.xlu0 %v2417, 64
      %v2852 = vpop.permute.xlu0 %2851
      %2853 = vrot.lane.b32.xlu0 %v2418, 64
      %v2854 = vpop.permute.xlu0 %2853
      %2855 = vrot.lane.b32.xlu0 %v2419, 64
      %v2856 = vpop.permute.xlu0 %2855
      %2857 = vrot.lane.b32.xlu0 %v2420, 64
      %v2858 = vpop.permute.xlu0 %2857
      %2859 = vrot.lane.b32.xlu0 %v2421, 64
      %v2860 = vpop.permute.xlu0 %2859
      %2861 = vrot.lane.b32.xlu0 %v2422, 64
      %v2862 = vpop.permute.xlu0 %2861
      %2863 = vrot.lane.b32.xlu0 %v2423, 64
      %v2864 = vpop.permute.xlu0 %2863
      %2865 = vrot.lane.b32.xlu0 %v2424, 64
      %v2866 = vpop.permute.xlu0 %2865
      %2867 = vrot.lane.b32.xlu0 %v2425, 64
      %v2868 = vpop.permute.xlu0 %2867
      %2869 = vrot.lane.b32.xlu0 %v2426, 64
      %v2870 = vpop.permute.xlu0 %2869
      %2871 = vrot.lane.b32.xlu0 %v2427, 64
      %v2872 = vpop.permute.xlu0 %2871
      %2873 = vrot.lane.b32.xlu0 %v2428, 64
      %v2874 = vpop.permute.xlu0 %2873
      %2875 = vrot.lane.b32.xlu0 0, 64
      %v2876 = vpop.permute.xlu0 %2875
      %2877 = vrot.lane.b32.xlu0 %v2468, 96
      %v2878 = vpop.permute.xlu0 %2877
      %2879 = vrot.lane.b32.xlu0 %v2480, 96
      %v2880 = vpop.permute.xlu0 %2879
      %2881 = vrot.lane.b32.xlu0 %v2492, 96
      %v2882 = vpop.permute.xlu0 %2881
      %2883 = vrot.lane.b32.xlu0 %v2504, 96
      %v2884 = vpop.permute.xlu0 %2883
      %2885 = vrot.lane.b32.xlu0 %v2516, 96
      %v2886 = vpop.permute.xlu0 %2885
      %2887 = vrot.lane.b32.xlu0 %v2528, 96
      %v2888 = vpop.permute.xlu0 %2887
      %2889 = vrot.lane.b32.xlu0 %v2540, 96
      %v2890 = vpop.permute.xlu0 %2889
      %2891 = vrot.lane.b32.xlu0 %v2552, 96
      %v2892 = vpop.permute.xlu0 %2891
      %2893 = vrot.lane.b32.xlu0 %v2564, 96
      %v2894 = vpop.permute.xlu0 %2893
      %2895 = vrot.lane.b32.xlu0 %v2576, 96
      %v2896 = vpop.permute.xlu0 %2895
      %2897 = vrot.lane.b32.xlu0 %v2588, 96
      %v2898 = vpop.permute.xlu0 %2897
      %2899 = vrot.lane.b32.xlu0 %v2600, 96
      %v2900 = vpop.permute.xlu0 %2899
      %2901 = vrot.lane.b32.xlu0 %v2612, 96
      %v2902 = vpop.permute.xlu0 %2901
      %2903 = vrot.lane.b32.xlu0 %v2624, 96
      %v2904 = vpop.permute.xlu0 %2903
      %2905 = vrot.lane.b32.xlu0 %v2808, 96
      %v2906 = vpop.permute.xlu0 %2905
      %2907 = vrot.lane.b32.xlu0 %v746, 96
      %v2908 = vpop.permute.xlu0 %2907
      %v2910 = vsel %vm1510, 0, %v2626
      %v2912 = vsel %vm1510, %v2413, %v2628
      %v2914 = vsel %vm1510, %v2414, %v2630
      %v2916 = vsel %vm1510, %v2415, %v2632
      %v2918 = vsel %vm1510, %v2416, %v2634
      %v2920 = vsel %vm1510, %v2417, %v2636
      %v2922 = vsel %vm1510, %v2418, %v2638
      %v2924 = vsel %vm1510, %v2419, %v2640
      %v2926 = vsel %vm1510, %v2420, %v2642
      %v2928 = vsel %vm1510, %v2421, %v2644
      %v2930 = vsel %vm1510, %v2422, %v2646
      %v2932 = vsel %vm1510, %v2423, %v2648
      %v2934 = vsel %vm1510, %v2424, %v2650
      %v2936 = vsel %vm1510, %v2425, %v2652
      %v2938 = vsel %vm1510, %v2426, %v2654
      %v2940 = vsel %vm1510, %v2427, %v2656
      %vm2941 = vcmask 523264
      %v2943 = vsel %vm2941, %v2910, %v2733
      %v2945 = vsel %vm2941, %v2912, %v2735
      %v2947 = vsel %vm2941, %v2914, %v2737
      %v2949 = vsel %vm2941, %v2916, %v2739
      %v2951 = vsel %vm2941, %v2918, %v2741
      %v2953 = vsel %vm2941, %v2920, %v2743
      %v2955 = vsel %vm2941, %v2922, %v2745
      %v2957 = vsel %vm2941, %v2924, %v2747
      %v2959 = vsel %vm2941, %v2926, %v2749
      %v2961 = vsel %vm2941, %v2928, %v2751
      %v2963 = vsel %vm2941, %v2930, %v2753
      %v2965 = vsel %vm2941, %v2932, %v2755
      %v2967 = vsel %vm2941, %v2934, %v2757
      %v2969 = vsel %vm2941, %v2936, %v2759
      %v2971 = vsel %vm2941, %v2938, %v2761
      %v2973 = vsel %vm2941, %v2940, %v2763
      %vm2974 = vcmask 785408
      %v2976 = vsel %vm2974, %v2943, %v2766
      %v2979 = vsel %vm2974, %v2945, %v2768
      %v2982 = vsel %vm2974, %v2947, %v2770
      %v2985 = vsel %vm2974, %v2949, %v2772
      %v2988 = vsel %vm2974, %v2951, %v2774
      %v2991 = vsel %vm2974, %v2953, %v2776
      %v2994 = vsel %vm2974, %v2955, %v2778
      %v2997 = vsel %vm2974, %v2957, %v2780
      %v3000 = vsel %vm2974, %v2959, %v2782
      %v3003 = vsel %vm2974, %v2961, %v2784
      %v3006 = vsel %vm2974, %v2963, %v2786
      %v3009 = vsel %vm2974, %v2965, %v2788
      %v3012 = vsel %vm2974, %v2967, %v2790
      %v3015 = vsel %vm2974, %v2969, %v2792
      %v3018 = vsel %vm2974, %v2971, %v2794
      %v3021 = vsel %vm2974, %v2973, %v2796
      %v3025 = vsel %vm1510, %v2456, %v2814
      %v3028 = vsel %vm1510, %v2468, %v2816
      %v3031 = vsel %vm1510, %v2480, %v2818
      %v3034 = vsel %vm1510, %v2492, %v2820
      %v3037 = vsel %vm1510, %v2504, %v2822
      %v3040 = vsel %vm1510, %v2516, %v2824
      %v3043 = vsel %vm1510, %v2528, %v2826
      %v3046 = vsel %vm1510, %v2540, %v2828
      %v3049 = vsel %vm1510, %v2552, %v2830
      %v3052 = vsel %vm1510, %v2564, %v2832
      %v3055 = vsel %vm1510, %v2576, %v2834
      %v3058 = vsel %vm1510, %v2588, %v2836
      %v3061 = vsel %vm1510, %v2600, %v2838
      %v3064 = vsel %vm1510, %v2612, %v2840
      %v3067 = vsel %vm1510, %v2624, %v2842
      %v3070 = vsel %vm1510, %v2808, %v2844
      %v3072 = vsel %vm2941, %v3025, %v2846
      %v3074 = vsel %vm2941, %v3028, %v2848
      %v3076 = vsel %vm2941, %v3031, %v2850
      %v3078 = vsel %vm2941, %v3034, %v2852
      %v3080 = vsel %vm2941, %v3037, %v2854
      %v3082 = vsel %vm2941, %v3040, %v2856
      %v3084 = vsel %vm2941, %v3043, %v2858
      %v3086 = vsel %vm2941, %v3046, %v2860
      %v3088 = vsel %vm2941, %v3049, %v2862
      %v3090 = vsel %vm2941, %v3052, %v2864
      %v3092 = vsel %vm2941, %v3055, %v2866
      %v3094 = vsel %vm2941, %v3058, %v2868
      %v3096 = vsel %vm2941, %v3061, %v2870
      %v3098 = vsel %vm2941, %v3064, %v2872
      %v3100 = vsel %vm2941, %v3067, %v2874
      %v3102 = vsel %vm2941, %v3070, %v2876
      %v3104 = vsel %vm2974, %v3072, %v2878
      %v3107 = vsel %vm2974, %v3074, %v2880
      %v3110 = vsel %vm2974, %v3076, %v2882
      %v3113 = vsel %vm2974, %v3078, %v2884
      %v3116 = vsel %vm2974, %v3080, %v2886
      %v3119 = vsel %vm2974, %v3082, %v2888
      %v3122 = vsel %vm2974, %v3084, %v2890
      %v3125 = vsel %vm2974, %v3086, %v2892
      %v3128 = vsel %vm2974, %v3088, %v2894
      %v3131 = vsel %vm2974, %v3090, %v2896
      %v3134 = vsel %vm2974, %v3092, %v2898
      %v3137 = vsel %vm2974, %v3094, %v2900
      %v3140 = vsel %vm2974, %v3096, %v2902
      %v3143 = vsel %vm2974, %v3098, %v2904
      %v3146 = vsel %vm2974, %v3100, %v2906
      %v3149 = vsel %vm2974, %v3102, %v2908
      %v3151 = vld [vmem:[%s5] sm:$0xf]
      %v3152 = vld [vmem:[%s5 + $0x4] sm:$0xf]
      %v3153 = vld [vmem:[%s5 + $0x8] sm:$0xf]
      %v3154 = vld [vmem:[%s5 + $0xc] sm:$0xf]
      %v3155 = vld [vmem:[%s5 + $0x10] sm:$0xf]
      %v3156 = vld [vmem:[%s5 + $0x14] sm:$0xf]
      %v3157 = vld [vmem:[%s5 + $0x18] sm:$0xf]
      %v3158 = vld [vmem:[%s5 + $0x1c] sm:$0xf]
      %v3159 = vld [vmem:[%s5 + $0x20] sm:$0xf]
      %v3160 = vld [vmem:[%s5 + $0x24] sm:$0xf]
      %v3161 = vld [vmem:[%s5 + $0x28] sm:$0xf]
      %v3162 = vld [vmem:[%s5 + $0x2c] sm:$0xf]
      %v3163 = vld [vmem:[%s5 + $0x30] sm:$0xf]
      %v3164 = vld [vmem:[%s5 + $0x34] sm:$0xf]
      %v3165 = vld [vmem:[%s5 + $0x38] sm:$0xf]
      %v3166 = vld [vmem:[%s5 + $0x3c] sm:$0xf]
      %v3167 = vld [vmem:[%s5 + $0x40] sm:$0xf]
      %v3168 = vld [vmem:[%s5 + $0x44] sm:$0xf]
      %v3169 = vld [vmem:[%s5 + $0x48] sm:$0xf]
      %v3170 = vld [vmem:[%s5 + $0x4c] sm:$0xf]
      %v3171 = vld [vmem:[%s5 + $0x50] sm:$0xf]
      %v3172 = vld [vmem:[%s5 + $0x54] sm:$0xf]
      %v3173 = vld [vmem:[%s5 + $0x58] sm:$0xf]
      %v3174 = vld [vmem:[%s5 + $0x5c] sm:$0xf]
      %v3175 = vld [vmem:[%s5 + $0x60] sm:$0xf]
      %v3176 = vld [vmem:[%s5 + $0x64] sm:$0xf]
      %v3177 = vld [vmem:[%s5 + $0x68] sm:$0xf]
      %v3178 = vld [vmem:[%s5 + $0x6c] sm:$0xf]
      %v3179 = vld [vmem:[%s5 + $0x70] sm:$0xf]
      %v3180 = vld [vmem:[%s5 + $0x74] sm:$0xf]
      %v3181 = vld [vmem:[%s5 + $0x78] sm:$0xf]
      %v3182 = vld [vmem:[%s5 + $0x7c] sm:$0xf]
      %v3183 = vld [vmem:[%s5 + $0x80] sm:$0xf]
      %v3184 = vld [vmem:[%s5 + $0x84] sm:$0xf]
      %v3185 = vld [vmem:[%s5 + $0x88] sm:$0xf]
      %v3186 = vld [vmem:[%s5 + $0x8c] sm:$0xf]
      %v3223 = vunpack.c.l.b16 %v3151
      %v3224 = vunpack.c.l.b16 %v3152
      %v3225 = vunpack.c.l.b16 %v3153
      %v3226 = vunpack.c.l.b16 %v3154
      %v3227 = vunpack.c.l.b16 %v3155
      %v3228 = vunpack.c.l.b16 %v3156
      %v3229 = vunpack.c.l.b16 %v3157
      %v3230 = vunpack.c.l.b16 %v3158
      %v3231 = vunpack.c.l.b16 %v3159
      %v3232 = vunpack.c.l.b16 %v3160
      %v3233 = vunpack.c.l.b16 %v3161
      %v3234 = vunpack.c.l.b16 %v3162
      %v3235 = vunpack.c.l.b16 %v3163
      %v3236 = vunpack.c.l.b16 %v3164
      %v3237 = vunpack.c.l.b16 %v3165
      %v3238 = vunpack.c.l.b16 %v3166
      %v3239 = vunpack.c.l.b16 %v3167
      %v3240 = vunpack.c.l.b16 %v3168
      %v3241 = vunpack.c.l.b16 %v3169
      %v3242 = vunpack.c.l.b16 %v3170
      %v3243 = vunpack.c.l.b16 %v3171
      %v3244 = vunpack.c.l.b16 %v3172
      %v3245 = vunpack.c.l.b16 %v3173
      %v3246 = vunpack.c.l.b16 %v3174
      %v3247 = vunpack.c.l.b16 %v3175
      %v3248 = vunpack.c.l.b16 %v3176
      %v3249 = vunpack.c.l.b16 %v3177
      %v3250 = vunpack.c.l.b16 %v3178
      %v3251 = vunpack.c.l.b16 %v3179
      %v3252 = vunpack.c.l.b16 %v3180
      %v3253 = vunpack.c.l.b16 %v3181
      %v3254 = vunpack.c.l.b16 %v3182
      %v3255 = vunpack.c.l.b16 %v3183
      %v3256 = vunpack.c.l.b16 %v3184
      %v3257 = vunpack.c.l.b16 %v3185
      %v3258 = vunpack.c.l.b16 %v3186
      %v3259 = vpack.c.b16 %v3224, %v3223
      %v3260 = vpack.c.b16 %v3226, %v3225
      %v3261 = vpack.c.b16 %v3228, %v3227
      %v3262 = vpack.c.b16 %v3230, %v3229
      %v3263 = vpack.c.b16 %v3232, %v3231
      %v3264 = vpack.c.b16 %v3234, %v3233
      %v3265 = vpack.c.b16 %v3236, %v3235
      %v3266 = vpack.c.b16 %v3238, %v3237
      %v3267 = vpack.c.b16 %v3240, %v3239
      %v3268 = vpack.c.b16 %v3242, %v3241
      %v3269 = vpack.c.b16 %v3244, %v3243
      %v3270 = vpack.c.b16 %v3246, %v3245
      %v3271 = vpack.c.b16 %v3248, %v3247
      %v3272 = vpack.c.b16 %v3250, %v3249
      %v3273 = vpack.c.b16 %v3252, %v3251
      %v3274 = vpack.c.b16 %v3254, %v3253
      %v3275 = vpack.c.b16 %v3256, %v3255
      %v3276 = vpack.c.b16 %v3258, %v3257
      %v3296 = vsel %vm1510, %v2692, 0
      %v3299 = vsel %vm1510, %v2695, 0
      %v3302 = vsel %vm1510, %v2698, 0
      %v3305 = vsel %vm1510, %v2701, 0
      %v3308 = vsel %vm1510, %v2704, 0
      %v3311 = vsel %vm1510, %v2707, 0
      %v3314 = vsel %vm1510, %v2710, 0
      %v3317 = vsel %vm1510, %v2713, 0
      %v3320 = vsel %vm1510, %v2716, 0
      %v3323 = vsel %vm1510, %v2719, 0
      %v3326 = vsel %vm1510, %v2722, 0
      %v3329 = vsel %vm1510, %v2725, 0
      %v3332 = vsel %vm1510, %v2728, 0
      %v3335 = vsel %vm1510, %v2731, 0
      %v3338 = vsel %vm1510, %v2812, 0
      %v3341 = vsel %vm1510, %v992, 0
      %3343 = vmatprep.subr.bf16.mxu0 0
      %3344 = vmatpush1.bf16.msra.mxu0 %v3259
      %3345 = vmatprep.subr.bf16.mxu0 0
      %3346 = vmatpush1.bf16.msra.mxu0 %v3260
      %3347 = vmatprep.subr.bf16.mxu0 0
      %3348 = vmatpush1.bf16.msra.mxu0 %v3261
      %3349 = vmatprep.subr.bf16.mxu0 0
      %3350 = vmatpush1.bf16.msra.mxu0 %v3262
      %3351 = vmatprep.subr.bf16.mxu0 0
      %3352 = vmatpush1.bf16.msra.mxu0 %v3263
      %3353 = vmatprep.subr.bf16.mxu0 0
      %3354 = vmatpush1.bf16.msra.mxu0 %v3264
      %3355 = vmatprep.subr.bf16.mxu0 0
      %3356 = vmatpush1.bf16.msra.mxu0 %v3265
      %3357 = vmatprep.subr.bf16.mxu0 0
      %3358 = vmatpush1.bf16.msra.mxu0 %v3266
      %3359 = vmatprep.subr.bf16.mxu0 0
      %3360 = vmatpush1.bf16.msra.mxu0 %v3267
      %3361 = vmatprep.subr.bf16.mxu0 0
      %3362 = vmatpush1.bf16.msra.mxu0 %v3268
      %3363 = vmatprep.subr.bf16.mxu0 0
      %3364 = vmatpush1.bf16.msra.mxu0 %v3269
      %3365 = vmatprep.subr.bf16.mxu0 0
      %3366 = vmatpush1.bf16.msra.mxu0 %v3270
      %3367 = vmatprep.subr.bf16.mxu0 0
      %3368 = vmatpush1.bf16.msra.mxu0 %v3271
      %3369 = vmatprep.subr.bf16.mxu0 0
      %3370 = vmatpush1.bf16.msra.mxu0 %v3272
      %3371 = vmatprep.subr.bf16.mxu0 0
      %3372 = vmatpush1.bf16.msra.mxu0 %v3273
      %3373 = vmatprep.subr.bf16.mxu0 0
      %3374 = vmatpush1.bf16.msra.mxu0 %v3274
      %3375 = vmatprep.mubr.bf16.mxu0 %v3104
      %3376 = vmatmul.mubr.bf16.gmra.mrb[0].mxu0 %v2976
      %v3377 = vpop.f32.mrb[0].mxu0
      %v3378 = vadd.f32 0.0, %v3377
      %v3379 = vpop.f32.mrb[0].mxu0
      %v3380 = vpop.f32.mrb[0].mxu0
      %v3381 = vadd.f32 0.0, %v3380
      %v3382 = vpop.f32.mrb[0].mxu0
      %3383 = vmatprep.mubr.bf16.mxu0 %v3107
      %3384 = vmatmul.mubr.bf16.gmra.mrb[0].mxu0 %v2979
      %v3385 = vpop.f32.mrb[0].mxu0
      %v3386 = vadd.f32 0.0, %v3385
      %v3387 = vpop.f32.mrb[0].mxu0
      %v3388 = vpop.f32.mrb[0].mxu0
      %v3389 = vadd.f32 0.0, %v3388
      %v3390 = vpop.f32.mrb[0].mxu0
      %3391 = vmatprep.mubr.bf16.mxu0 %v3110
      %3392 = vmatmul.mubr.bf16.gmra.mrb[0].mxu0 %v2982
      %v3393 = vpop.f32.mrb[0].mxu0
      %v3394 = vadd.f32 0.0, %v3393
      %v3395 = vpop.f32.mrb[0].mxu0
      %v3396 = vpop.f32.mrb[0].mxu0
      %v3397 = vadd.f32 0.0, %v3396
      %v3398 = vpop.f32.mrb[0].mxu0
      %3399 = vmatprep.mubr.bf16.mxu0 %v3113
      %3400 = vmatmul.mubr.bf16.gmra.mrb[0].mxu0 %v2985
      %v3401 = vpop.f32.mrb[0].mxu0
      %v3402 = vadd.f32 0.0, %v3401
      %v3403 = vpop.f32.mrb[0].mxu0
      %v3404 = vpop.f32.mrb[0].mxu0
      %v3405 = vadd.f32 0.0, %v3404
      %v3406 = vpop.f32.mrb[0].mxu0
      %3407 = vmatprep.mubr.bf16.mxu0 %v3116
      %3408 = vmatmul.mubr.bf16.gmra.mrb[0].mxu0 %v2988
      %v3409 = vpop.f32.mrb[0].mxu0
      %v3410 = vadd.f32 0.0, %v3409
      %v3411 = vpop.f32.mrb[0].mxu0
      %v3412 = vpop.f32.mrb[0].mxu0
      %v3413 = vadd.f32 0.0, %v3412
      %v3414 = vpop.f32.mrb[0].mxu0
      %3415 = vmatprep.mubr.bf16.mxu0 %v3119
      %3416 = vmatmul.mubr.bf16.gmra.mrb[0].mxu0 %v2991
      %v3417 = vpop.f32.mrb[0].mxu0
      %v3418 = vadd.f32 0.0, %v3417
      %v3419 = vpop.f32.mrb[0].mxu0
      %v3420 = vpop.f32.mrb[0].mxu0
      %v3421 = vadd.f32 0.0, %v3420
      %v3422 = vpop.f32.mrb[0].mxu0
      %3423 = vmatprep.mubr.bf16.mxu0 %v3122
      %3424 = vmatmul.mubr.bf16.gmra.mrb[0].mxu0 %v2994
      %v3425 = vpop.f32.mrb[0].mxu0
      %v3426 = vadd.f32 0.0, %v3425
      %v3427 = vpop.f32.mrb[0].mxu0
      %v3428 = vpop.f32.mrb[0].mxu0
      %v3429 = vadd.f32 0.0, %v3428
      %v3430 = vpop.f32.mrb[0].mxu0
      %3431 = vmatprep.mubr.bf16.mxu0 %v3125
      %3432 = vmatmul.mubr.bf16.gmra.mrb[0].mxu0 %v2997
      %v3433 = vpop.f32.mrb[0].mxu0
      %v3434 = vadd.f32 0.0, %v3433
      %v3435 = vpop.f32.mrb[0].mxu0
      %v3436 = vpop.f32.mrb[0].mxu0
      %v3437 = vadd.f32 0.0, %v3436
      %v3438 = vpop.f32.mrb[0].mxu0
      %3439 = vmatprep.mubr.bf16.mxu0 %v3128
      %3440 = vmatmul.mubr.bf16.gmra.mrb[0].mxu0 %v3000
      %v3441 = vpop.f32.mrb[0].mxu0
      %v3442 = vadd.f32 0.0, %v3441
      %v3443 = vpop.f32.mrb[0].mxu0
      %v3444 = vpop.f32.mrb[0].mxu0
      %v3445 = vadd.f32 0.0, %v3444
      %v3446 = vpop.f32.mrb[0].mxu0
      %3447 = vmatprep.mubr.bf16.mxu0 %v3131
      %3448 = vmatmul.mubr.bf16.gmra.mrb[0].mxu0 %v3003
      %v3449 = vpop.f32.mrb[0].mxu0
      %v3450 = vadd.f32 0.0, %v3449
      %v3451 = vpop.f32.mrb[0].mxu0
      %v3452 = vpop.f32.mrb[0].mxu0
      %v3453 = vadd.f32 0.0, %v3452
      %v3454 = vpop.f32.mrb[0].mxu0
      %3455 = vmatprep.mubr.bf16.mxu0 %v3134
      %3456 = vmatmul.mubr.bf16.gmra.mrb[0].mxu0 %v3006
      %v3457 = vpop.f32.mrb[0].mxu0
      %v3458 = vadd.f32 0.0, %v3457
      %v3459 = vpop.f32.mrb[0].mxu0
      %v3460 = vpop.f32.mrb[0].mxu0
      %v3461 = vadd.f32 0.0, %v3460
      %v3462 = vpop.f32.mrb[0].mxu0
      %3463 = vmatprep.mubr.bf16.mxu0 %v3137
      %3464 = vmatmul.mubr.bf16.gmra.mrb[0].mxu0 %v3009
      %v3465 = vpop.f32.mrb[0].mxu0
      %v3466 = vadd.f32 0.0, %v3465
      %v3467 = vpop.f32.mrb[0].mxu0
      %v3468 = vpop.f32.mrb[0].mxu0
      %v3469 = vadd.f32 0.0, %v3468
      %v3470 = vpop.f32.mrb[0].mxu0
      %3471 = vmatprep.mubr.bf16.mxu0 %v3140
      %3472 = vmatmul.mubr.bf16.gmra.mrb[0].mxu0 %v3012
      %v3473 = vpop.f32.mrb[0].mxu0
      %v3474 = vadd.f32 0.0, %v3473
      %v3475 = vpop.f32.mrb[0].mxu0
      %v3476 = vpop.f32.mrb[0].mxu0
      %v3477 = vadd.f32 0.0, %v3476
      %v3478 = vpop.f32.mrb[0].mxu0
      %3479 = vmatprep.mubr.bf16.mxu0 %v3143
      %3480 = vmatmul.mubr.bf16.gmra.mrb[0].mxu0 %v3015
      %v3481 = vpop.f32.mrb[0].mxu0
      %v3482 = vadd.f32 0.0, %v3481
      %v3483 = vpop.f32.mrb[0].mxu0
      %v3484 = vpop.f32.mrb[0].mxu0
      %v3485 = vadd.f32 0.0, %v3484
      %v3486 = vpop.f32.mrb[0].mxu0
      %3487 = vmatprep.mubr.bf16.mxu0 %v3146
      %3488 = vmatmul.mubr.bf16.gmra.mrb[0].mxu0 %v3018
      %v3489 = vpop.f32.mrb[0].mxu0
      %v3490 = vadd.f32 0.0, %v3489
      %v3491 = vpop.f32.mrb[0].mxu0
      %v3492 = vpop.f32.mrb[0].mxu0
      %v3493 = vadd.f32 0.0, %v3492
      %v3494 = vpop.f32.mrb[0].mxu0
      %3495 = vmatprep.mubr.bf16.mxu0 %v3149
      %3496 = vmatmul.mubr.bf16.gmra.mrb[0].mxu0 %v3021
      %v3497 = vpop.f32.mrb[0].mxu0
      %v3498 = vadd.f32 0.0, %v3497
      %v3499 = vpop.f32.mrb[0].mxu0
      %v3500 = vpop.f32.mrb[0].mxu0
      %v3501 = vadd.f32 0.0, %v3500
      %v3502 = vpop.f32.mrb[0].mxu0
      %3503 = vdwg.mxu0
      %3504 = vmatprep.subr.bf16.mxu0 0
      %3505 = vmatpush1.bf16.msra.mxu0 %v3275
      %3506 = vmatprep.subr.bf16.mxu0 0
      %3507 = vmatpush1.bf16.msra.mxu0 %v3276
      %3508 = vmatprep.subr.bf16.mxu0 0
      %3509 = vmatpush1.bf16.msra.mxu0 0
      %3510 = vmatprep.subr.bf16.mxu0 0
      %3511 = vmatpush1.bf16.msra.mxu0 0
      %3512 = vmatprep.subr.bf16.mxu0 0
      %3513 = vmatpush1.bf16.msra.mxu0 0
      %3514 = vmatprep.subr.bf16.mxu0 0
      %3515 = vmatpush1.bf16.msra.mxu0 0
      %3516 = vmatprep.subr.bf16.mxu0 0
      %3517 = vmatpush1.bf16.msra.mxu0 0
      %3518 = vmatprep.subr.bf16.mxu0 0
      %3519 = vmatpush1.bf16.msra.mxu0 0
      %3520 = vmatprep.subr.bf16.mxu0 0
      %3521 = vmatpush1.bf16.msra.mxu0 0
      %3522 = vmatprep.subr.bf16.mxu0 0
      %3523 = vmatpush1.bf16.msra.mxu0 0
      %3524 = vmatprep.subr.bf16.mxu0 0
      %3525 = vmatpush1.bf16.msra.mxu0 0
      %3526 = vmatprep.subr.bf16.mxu0 0
      %3527 = vmatpush1.bf16.msra.mxu0 0
      %3528 = vmatprep.subr.bf16.mxu0 0
      %3529 = vmatpush1.bf16.msra.mxu0 0
      %3530 = vmatprep.subr.bf16.mxu0 0
      %3531 = vmatpush1.bf16.msra.mxu0 0
      %3532 = vmatprep.subr.bf16.mxu0 0
      %3533 = vmatpush1.bf16.msra.mxu0 0
      %3534 = vmatprep.subr.bf16.mxu0 0
      %3535 = vmatpush1.bf16.msra.mxu0 0
      %3536 = vmatprep.mubr.bf16.mxu0 0
      %3537 = vmatmul.mubr.bf16.gmra.mrb[0].mxu0 %v3296
      %v3538 = vpop.f32.mrb[0].mxu0
      %v3539 = vadd.f32 %v3378, %v3538
      %v3540 = vpop.f32.mrb[0].mxu0
      %v3541 = vpop.f32.mrb[0].mxu0
      %v3542 = vadd.f32 %v3381, %v3541
      %v3543 = vpop.f32.mrb[0].mxu0
      %3544 = vmatprep.mubr.bf16.mxu0 0
      %3545 = vmatmul.mubr.bf16.gmra.mrb[0].mxu0 %v3299
      %v3546 = vpop.f32.mrb[0].mxu0
      %v3547 = vadd.f32 %v3386, %v3546
      %v3548 = vpop.f32.mrb[0].mxu0
      %v3549 = vpop.f32.mrb[0].mxu0
      %v3550 = vadd.f32 %v3389, %v3549
      %v3551 = vpop.f32.mrb[0].mxu0
      %3552 = vmatprep.mubr.bf16.mxu0 0
      %3553 = vmatmul.mubr.bf16.gmra.mrb[0].mxu0 %v3302
      %v3554 = vpop.f32.mrb[0].mxu0
      %v3555 = vadd.f32 %v3394, %v3554
      %v3556 = vpop.f32.mrb[0].mxu0
      %v3557 = vpop.f32.mrb[0].mxu0
      %v3558 = vadd.f32 %v3397, %v3557
      %v3559 = vpop.f32.mrb[0].mxu0
      %3560 = vmatprep.mubr.bf16.mxu0 0
      %3561 = vmatmul.mubr.bf16.gmra.mrb[0].mxu0 %v3305
      %v3562 = vpop.f32.mrb[0].mxu0
      %v3563 = vadd.f32 %v3402, %v3562
      %v3564 = vpop.f32.mrb[0].mxu0
      %v3565 = vpop.f32.mrb[0].mxu0
      %v3566 = vadd.f32 %v3405, %v3565
      %v3567 = vpop.f32.mrb[0].mxu0
      %3568 = vmatprep.mubr.bf16.mxu0 0
      %3569 = vmatmul.mubr.bf16.gmra.mrb[0].mxu0 %v3308
      %v3570 = vpop.f32.mrb[0].mxu0
      %v3571 = vadd.f32 %v3410, %v3570
      %v3572 = vpop.f32.mrb[0].mxu0
      %v3573 = vpop.f32.mrb[0].mxu0
      %v3574 = vadd.f32 %v3413, %v3573
      %v3575 = vpop.f32.mrb[0].mxu0
      %3576 = vmatprep.mubr.bf16.mxu0 0
      %3577 = vmatmul.mubr.bf16.gmra.mrb[0].mxu0 %v3311
      %v3578 = vpop.f32.mrb[0].mxu0
      %v3579 = vadd.f32 %v3418, %v3578
      %v3580 = vpop.f32.mrb[0].mxu0
      %v3581 = vpop.f32.mrb[0].mxu0
      %v3582 = vadd.f32 %v3421, %v3581
      %v3583 = vpop.f32.mrb[0].mxu0
      %3584 = vmatprep.mubr.bf16.mxu0 0
      %3585 = vmatmul.mubr.bf16.gmra.mrb[0].mxu0 %v3314
      %v3586 = vpop.f32.mrb[0].mxu0
      %v3587 = vadd.f32 %v3426, %v3586
      %v3588 = vpop.f32.mrb[0].mxu0
      %v3589 = vpop.f32.mrb[0].mxu0
      %v3590 = vadd.f32 %v3429, %v3589
      %v3591 = vpop.f32.mrb[0].mxu0
      %3592 = vmatprep.mubr.bf16.mxu0 0
      %3593 = vmatmul.mubr.bf16.gmra.mrb[0].mxu0 %v3317
      %v3594 = vpop.f32.mrb[0].mxu0
      %v3595 = vadd.f32 %v3434, %v3594
      %v3596 = vpop.f32.mrb[0].mxu0
      %v3597 = vpop.f32.mrb[0].mxu0
      %v3598 = vadd.f32 %v3437, %v3597
      %v3599 = vpop.f32.mrb[0].mxu0
      %3600 = vmatprep.mubr.bf16.mxu0 0
      %3601 = vmatmul.mubr.bf16.gmra.mrb[0].mxu0 %v3320
      %v3602 = vpop.f32.mrb[0].mxu0
      %v3603 = vadd.f32 %v3442, %v3602
      %v3604 = vpop.f32.mrb[0].mxu0
      %v3605 = vpop.f32.mrb[0].mxu0
      %v3606 = vadd.f32 %v3445, %v3605
      %v3607 = vpop.f32.mrb[0].mxu0
      %3608 = vmatprep.mubr.bf16.mxu0 0
      %3609 = vmatmul.mubr.bf16.gmra.mrb[0].mxu0 %v3323
      %v3610 = vpop.f32.mrb[0].mxu0
      %v3611 = vadd.f32 %v3450, %v3610
      %v3612 = vpop.f32.mrb[0].mxu0
      %v3613 = vpop.f32.mrb[0].mxu0
      %v3614 = vadd.f32 %v3453, %v3613
      %v3615 = vpop.f32.mrb[0].mxu0
      %3616 = vmatprep.mubr.bf16.mxu0 0
      %3617 = vmatmul.mubr.bf16.gmra.mrb[0].mxu0 %v3326
      %v3618 = vpop.f32.mrb[0].mxu0
      %v3619 = vadd.f32 %v3458, %v3618
      %v3620 = vpop.f32.mrb[0].mxu0
      %v3621 = vpop.f32.mrb[0].mxu0
      %v3622 = vadd.f32 %v3461, %v3621
      %v3623 = vpop.f32.mrb[0].mxu0
      %3624 = vmatprep.mubr.bf16.mxu0 0
      %3625 = vmatmul.mubr.bf16.gmra.mrb[0].mxu0 %v3329
      %v3626 = vpop.f32.mrb[0].mxu0
      %v3627 = vadd.f32 %v3466, %v3626
      %v3628 = vpop.f32.mrb[0].mxu0
      %v3629 = vpop.f32.mrb[0].mxu0
      %v3630 = vadd.f32 %v3469, %v3629
      %v3631 = vpop.f32.mrb[0].mxu0
      %3632 = vmatprep.mubr.bf16.mxu0 0
      %3633 = vmatmul.mubr.bf16.gmra.mrb[0].mxu0 %v3332
      %v3634 = vpop.f32.mrb[0].mxu0
      %v3635 = vadd.f32 %v3474, %v3634
      %v3636 = vpop.f32.mrb[0].mxu0
      %v3637 = vpop.f32.mrb[0].mxu0
      %v3638 = vadd.f32 %v3477, %v3637
      %v3639 = vpop.f32.mrb[0].mxu0
      %3640 = vmatprep.mubr.bf16.mxu0 0
      %3641 = vmatmul.mubr.bf16.gmra.mrb[0].mxu0 %v3335
      %v3642 = vpop.f32.mrb[0].mxu0
      %v3643 = vadd.f32 %v3482, %v3642
      %v3644 = vpop.f32.mrb[0].mxu0
      %v3645 = vpop.f32.mrb[0].mxu0
      %v3646 = vadd.f32 %v3485, %v3645
      %v3647 = vpop.f32.mrb[0].mxu0
      %3648 = vmatprep.mubr.bf16.mxu0 0
      %3649 = vmatmul.mubr.bf16.gmra.mrb[0].mxu0 %v3338
      %v3650 = vpop.f32.mrb[0].mxu0
      %v3651 = vadd.f32 %v3490, %v3650
      %v3652 = vpop.f32.mrb[0].mxu0
      %v3653 = vpop.f32.mrb[0].mxu0
      %v3654 = vadd.f32 %v3493, %v3653
      %v3655 = vpop.f32.mrb[0].mxu0
      %3656 = vmatprep.mubr.bf16.mxu0 0
      %3657 = vmatmul.mubr.bf16.gmra.mrb[0].mxu0 %v3341
      %v3658 = vpop.f32.mrb[0].mxu0
      %v3659 = vadd.f32 %v3498, %v3658
      %v3660 = vpop.f32.mrb[0].mxu0
      %v3661 = vpop.f32.mrb[0].mxu0
      %v3662 = vadd.f32 %v3501, %v3661
      %v3663 = vpop.f32.mrb[0].mxu0
      %3664 = vdwg.mxu0
      %v3665 = vld [vmem:[%s6] sm:$0x1]
      %v3666 = vld [vmem:[%s7] sm:$0x1]
      %v3667 = vsel %vm1510, %v3539, 0.0
      %v3668 = vsel %vm1510, %v3542, 0.0
      %v3669 = vadd.f32 %v3667, %v3668
      %v3670 = vsel %vm1510, %v3547, 0.0
      %v3671 = vadd.f32 %v3669, %v3670
      %v3672 = vsel %vm1510, %v3550, 0.0
      %v3673 = vadd.f32 %v3671, %v3672
      %v3674 = vsel %vm1510, %v3555, 0.0
      %v3675 = vadd.f32 %v3673, %v3674
      %v3676 = vsel %vm1510, %v3558, 0.0
      %v3677 = vadd.f32 %v3675, %v3676
      %v3678 = vsel %vm1510, %v3563, 0.0
      %v3679 = vadd.f32 %v3677, %v3678
      %v3680 = vsel %vm1510, %v3566, 0.0
      %v3681 = vadd.f32 %v3679, %v3680
      %v3682 = vsel %vm1510, %v3571, 0.0
      %v3683 = vadd.f32 %v3681, %v3682
      %v3684 = vsel %vm1510, %v3574, 0.0
      %v3685 = vadd.f32 %v3683, %v3684
      %v3686 = vsel %vm1510, %v3579, 0.0
      %v3687 = vadd.f32 %v3685, %v3686
      %v3688 = vsel %vm1510, %v3582, 0.0
      %v3689 = vadd.f32 %v3687, %v3688
      %v3690 = vsel %vm1510, %v3587, 0.0
      %v3691 = vadd.f32 %v3689, %v3690
      %v3692 = vsel %vm1510, %v3590, 0.0
      %v3693 = vadd.f32 %v3691, %v3692
      %v3694 = vsel %vm1510, %v3595, 0.0
      %v3695 = vadd.f32 %v3693, %v3694
      %v3696 = vsel %vm1510, %v3598, 0.0
      %v3697 = vadd.f32 %v3695, %v3696
      %v3698 = vsel %vm1510, %v3603, 0.0
      %v3699 = vadd.f32 %v3697, %v3698
      %v3700 = vsel %vm1510, %v3606, 0.0
      %v3701 = vadd.f32 %v3699, %v3700
      %v3702 = vsel %vm1510, %v3611, 0.0
      %v3703 = vadd.f32 %v3701, %v3702
      %v3704 = vsel %vm1510, %v3614, 0.0
      %v3705 = vadd.f32 %v3703, %v3704
      %v3706 = vsel %vm1510, %v3619, 0.0
      %v3707 = vadd.f32 %v3705, %v3706
      %v3708 = vsel %vm1510, %v3622, 0.0
      %v3709 = vadd.f32 %v3707, %v3708
      %v3710 = vsel %vm1510, %v3627, 0.0
      %v3711 = vadd.f32 %v3709, %v3710
      %v3712 = vsel %vm1510, %v3630, 0.0
      %v3713 = vadd.f32 %v3711, %v3712
      %v3714 = vsel %vm1510, %v3635, 0.0
      %v3715 = vadd.f32 %v3713, %v3714
      %v3716 = vsel %vm1510, %v3638, 0.0
      %v3717 = vadd.f32 %v3715, %v3716
      %v3718 = vsel %vm1510, %v3643, 0.0
      %v3719 = vadd.f32 %v3717, %v3718
      %v3720 = vsel %vm1510, %v3646, 0.0
      %v3721 = vadd.f32 %v3719, %v3720
      %v3722 = vsel %vm1510, %v3651, 0.0
      %v3723 = vadd.f32 %v3721, %v3722
      %v3724 = vsel %vm1510, %v3654, 0.0
      %v3725 = vadd.f32 %v3723, %v3724
      %v3726 = vsel %vm1510, %v3659, 0.0
      %v3727 = vadd.f32 %v3725, %v3726
      %v3728 = vsel %vm1510, %v3662, 0.0
      %v3729 = vadd.f32 %v3727, %v3728
      %v3730 = vrot.slane %v3729, 4
      %v3731 = vadd.f32 %v3729, %v3730
      %v3732 = vrot.slane %v3731, 2
      %v3733 = vadd.f32 %v3731, %v3732
      %v3734 = vrot.slane %v3733, 1
      %v3735 = vadd.f32 %v3733, %v3734
      %v3736 = vmul.f32 %v3539, %v3539
      %v3737 = vmul.f32 %v3542, %v3542
      %v3738 = vmul.f32 %v3547, %v3547
      %v3739 = vmul.f32 %v3550, %v3550
      %v3740 = vmul.f32 %v3555, %v3555
      %v3741 = vmul.f32 %v3558, %v3558
      %v3742 = vmul.f32 %v3563, %v3563
      %v3743 = vmul.f32 %v3566, %v3566
      %v3744 = vmul.f32 %v3571, %v3571
      %v3745 = vmul.f32 %v3574, %v3574
      %v3746 = vmul.f32 %v3579, %v3579
      %v3747 = vmul.f32 %v3582, %v3582
      %v3748 = vmul.f32 %v3587, %v3587
      %v3749 = vmul.f32 %v3590, %v3590
      %v3750 = vmul.f32 %v3595, %v3595
      %v3751 = vmul.f32 %v3598, %v3598
      %v3752 = vmul.f32 %v3603, %v3603
      %v3753 = vmul.f32 %v3606, %v3606
      %v3754 = vmul.f32 %v3611, %v3611
      %v3755 = vmul.f32 %v3614, %v3614
      %v3756 = vmul.f32 %v3619, %v3619
      %v3757 = vmul.f32 %v3622, %v3622
      %v3758 = vmul.f32 %v3627, %v3627
      %v3759 = vmul.f32 %v3630, %v3630
      %v3760 = vmul.f32 %v3635, %v3635
      %v3761 = vmul.f32 %v3638, %v3638
      %v3762 = vmul.f32 %v3643, %v3643
      %v3763 = vmul.f32 %v3646, %v3646
      %v3764 = vmul.f32 %v3651, %v3651
      %v3765 = vmul.f32 %v3654, %v3654
      %v3766 = vmul.f32 %v3659, %v3659
      %v3767 = vmul.f32 %v3662, %v3662
      %v3768 = vsel %vm1510, %v3736, 0.0
      %v3769 = vsel %vm1510, %v3737, 0.0
      %v3770 = vadd.f32 %v3768, %v3769
      %v3771 = vsel %vm1510, %v3738, 0.0
      %v3772 = vadd.f32 %v3770, %v3771
      %v3773 = vsel %vm1510, %v3739, 0.0
      %v3774 = vadd.f32 %v3772, %v3773
      %v3775 = vsel %vm1510, %v3740, 0.0
      %v3776 = vadd.f32 %v3774, %v3775
      %v3777 = vsel %vm1510, %v3741, 0.0
      %v3778 = vadd.f32 %v3776, %v3777
      %v3779 = vsel %vm1510, %v3742, 0.0
      %v3780 = vadd.f32 %v3778, %v3779
      %v3781 = vsel %vm1510, %v3743, 0.0
      %v3782 = vadd.f32 %v3780, %v3781
      %v3783 = vsel %vm1510, %v3744, 0.0
      %v3784 = vadd.f32 %v3782, %v3783
      %v3785 = vsel %vm1510, %v3745, 0.0
      %v3786 = vadd.f32 %v3784, %v3785
      %v3787 = vsel %vm1510, %v3746, 0.0
      %v3788 = vadd.f32 %v3786, %v3787
      %v3789 = vsel %vm1510, %v3747, 0.0
      %v3790 = vadd.f32 %v3788, %v3789
      %v3791 = vsel %vm1510, %v3748, 0.0
      %v3792 = vadd.f32 %v3790, %v3791
      %v3793 = vsel %vm1510, %v3749, 0.0
      %v3794 = vadd.f32 %v3792, %v3793
      %v3795 = vsel %vm1510, %v3750, 0.0
      %v3796 = vadd.f32 %v3794, %v3795
      %v3797 = vsel %vm1510, %v3751, 0.0
      %v3798 = vadd.f32 %v3796, %v3797
      %v3799 = vsel %vm1510, %v3752, 0.0
      %v3800 = vadd.f32 %v3798, %v3799
      %v3801 = vsel %vm1510, %v3753, 0.0
      %v3802 = vadd.f32 %v3800, %v3801
      %v3803 = vsel %vm1510, %v3754, 0.0
      %v3804 = vadd.f32 %v3802, %v3803
      %v3805 = vsel %vm1510, %v3755, 0.0
      %v3806 = vadd.f32 %v3804, %v3805
      %v3807 = vsel %vm1510, %v3756, 0.0
      %v3808 = vadd.f32 %v3806, %v3807
      %v3809 = vsel %vm1510, %v3757, 0.0
      %v3810 = vadd.f32 %v3808, %v3809
      %v3811 = vsel %vm1510, %v3758, 0.0
      %v3812 = vadd.f32 %v3810, %v3811
      %v3813 = vsel %vm1510, %v3759, 0.0
      %v3814 = vadd.f32 %v3812, %v3813
      %v3815 = vsel %vm1510, %v3760, 0.0
      %v3816 = vadd.f32 %v3814, %v3815
      %v3817 = vsel %vm1510, %v3761, 0.0
      %v3818 = vadd.f32 %v3816, %v3817
      %v3819 = vsel %vm1510, %v3762, 0.0
      %v3820 = vadd.f32 %v3818, %v3819
      %v3821 = vsel %vm1510, %v3763, 0.0
      %v3822 = vadd.f32 %v3820, %v3821
      %v3823 = vsel %vm1510, %v3764, 0.0
      %v3824 = vadd.f32 %v3822, %v3823
      %v3825 = vsel %vm1510, %v3765, 0.0
      %v3826 = vadd.f32 %v3824, %v3825
      %v3827 = vsel %vm1510, %v3766, 0.0
      %v3828 = vadd.f32 %v3826, %v3827
      %v3829 = vsel %vm1510, %v3767, 0.0
      %v3830 = vadd.f32 %v3828, %v3829
      %v3831 = vrot.slane %v3830, 4
      %v3832 = vadd.f32 %v3830, %v3831
      %v3833 = vrot.slane %v3832, 2
      %v3834 = vadd.f32 %v3832, %v3833
      %v3835 = vrot.slane %v3834, 1
      %v3836 = vadd.f32 %v3834, %v3835
      %v3837 = vsel %vm1944, %v3735, %v3836
      %v3839 = vsel %vm1510, %v3837, 0
      %3841 = vmatprep.subr.mxu0 0.0
      %3842 = vmatpush1.msra.mxu0 %v443
      %3843 = vmatprep.subr.mxu0 0.0
      %3844 = vmatpush1.msra.mxu0 %v444
      %3845 = vmatprep.subr.mxu0 0.0
      %3846 = vmatpush1.msra.mxu0 %v445
      %3847 = vmatprep.subr.mxu0 0.0
      %3848 = vmatpush1.msra.mxu0 %v446
      %3849 = vmatprep.subr.mxu0 0.0
      %3850 = vmatpush1.msra.mxu0 0.0
      %3851 = vmatprep.subr.mxu0 0.0
      %3852 = vmatpush1.msra.mxu0 0.0
      %3853 = vmatprep.subr.mxu0 0.0
      %3854 = vmatpush1.msra.mxu0 0.0
      %3855 = vmatprep.subr.mxu0 0.0
      %3856 = vmatpush1.msra.mxu0 0.0
      %3857 = vmatprep.subr.mxu0 0.0
      %3858 = vmatpush1.msra.mxu0 0.0
      %3859 = vmatprep.subr.mxu0 0.0
      %3860 = vmatpush1.msra.mxu0 0.0
      %3861 = vmatprep.subr.mxu0 0.0
      %3862 = vmatpush1.msra.mxu0 0.0
      %3863 = vmatprep.subr.mxu0 0.0
      %3864 = vmatpush1.msra.mxu0 0.0
      %3865 = vmatprep.subr.mxu0 0.0
      %3866 = vmatpush1.msra.mxu0 0.0
      %3867 = vmatprep.subr.mxu0 0.0
      %3868 = vmatpush1.msra.mxu0 0.0
      %3869 = vmatprep.subr.mxu0 0.0
      %3870 = vmatpush1.msra.mxu0 0.0
      %3871 = vmatprep.subr.mxu0 0.0
      %3872 = vmatpush1.msra.mxu0 0.0
      %3873 = vmatprep.subr.mxu0 0.0
      %3874 = vmatpush1.msra.mxu0 0.0
      %3875 = vmatprep.subr.mxu0 0.0
      %3876 = vmatpush1.msra.mxu0 0.0
      %3877 = vmatprep.subr.mxu0 0.0
      %3878 = vmatpush1.msra.mxu0 0.0
      %3879 = vmatprep.subr.mxu0 0.0
      %3880 = vmatpush1.msra.mxu0 0.0
      %3881 = vmatprep.subr.mxu0 0.0
      %3882 = vmatpush1.msra.mxu0 0.0
      %3883 = vmatprep.subr.mxu0 0.0
      %3884 = vmatpush1.msra.mxu0 0.0
      %3885 = vmatprep.subr.mxu0 0.0
      %3886 = vmatpush1.msra.mxu0 0.0
      %3887 = vmatprep.subr.mxu0 0.0
      %3888 = vmatpush1.msra.mxu0 0.0
      %3889 = vmatprep.subr.mxu0 0.0
      %3890 = vmatpush1.msra.mxu0 0.0
      %3891 = vmatprep.subr.mxu0 0.0
      %3892 = vmatpush1.msra.mxu0 0.0
      %3893 = vmatprep.subr.mxu0 0.0
      %3894 = vmatpush1.msra.mxu0 0.0
      %3895 = vmatprep.subr.mxu0 0.0
      %3896 = vmatpush1.msra.mxu0 0.0
      %3897 = vmatprep.subr.mxu0 0.0
      %3898 = vmatpush1.msra.mxu0 0.0
      %3899 = vmatprep.subr.mxu0 0.0
      %3900 = vmatpush1.msra.mxu0 0.0
      %3901 = vmatprep.subr.mxu0 0.0
      %3902 = vmatpush1.msra.mxu0 0.0
      %3903 = vmatprep.subr.mxu0 0.0
      %3904 = vmatpush1.msra.mxu0 0.0
      %3905 = vmatprep.mubr.f32.mxu0 0.0
      %3906 = vmatmul.mubr.f32.gmra.mrb[0].mxu0 %v3839
      %v3907 = vpop.f32.mrb[0].mxu0
      %v3908 = vadd.f32 0.0, %v3907
      %v3909 = vpop.f32.mrb[0].mxu0
      %3910 = vdwg.mxu0
      %v3911 = vmul.f32 %v3908, %v3908
      %v3913 = vrot.slane %v3911, 7
      %v3915 = vsub.f32 %v3908, %v3913
      %v3916 = vmax.f32 %v3915, 0.0
      %v3917 = vadd.f32 %v3916, 1e-05
      %v3918 = vrsqrt.pop %v3917
      %v3921 = vunpack.c.l.s4 1966171168
      %v3922 = vunpack.c.0.s8 %v3921
      %v3923 = vlaneseq
      %v3924 = vshrl.u32 %v3923, 7
      %v3925 = vsub.s32 %v3922, %v3924
      %v3926 = vrot.slane %v3918, %v3925
      %v3927 = vcombine.high %v3926, %v3926
      %v3929 = vunpack.c.l.s4 1966171168
      %v3930 = vunpack.c.0.s8 %v3929
      %v3931 = vlaneseq
      %v3932 = vshrl.u32 %v3931, 7
      %v3933 = vsub.s32 %v3930, %v3932
      %v3934 = vrot.slane %v3927, %v3933
      %v3936 = vmul.f32 %v3665, %v3934
      %v3937 = vmul.f32 %v3908, %v3936
      %v3938 = vsub.f32 %v3666, %v3937
      %v3940 = vlaneseq
      %v3941 = vshrl.u32 %v3940, 7
      %v3942 = vsub.s32 0, %v3941
      %v3943 = vrot.slane %v3936, %v3942
      %v3945 = vmul.f32 %v3539, %v3943
      %v3946 = vmul.f32 %v3542, %v3943
      %v3947 = vmul.f32 %v3547, %v3943
      %v3948 = vmul.f32 %v3550, %v3943
      %v3949 = vmul.f32 %v3555, %v3943
      %v3950 = vmul.f32 %v3558, %v3943
      %v3951 = vmul.f32 %v3563, %v3943
      %v3952 = vmul.f32 %v3566, %v3943
      %v3953 = vmul.f32 %v3571, %v3943
      %v3954 = vmul.f32 %v3574, %v3943
      %v3955 = vmul.f32 %v3579, %v3943
      %v3956 = vmul.f32 %v3582, %v3943
      %v3957 = vmul.f32 %v3587, %v3943
      %v3958 = vmul.f32 %v3590, %v3943
      %v3959 = vmul.f32 %v3595, %v3943
      %v3960 = vmul.f32 %v3598, %v3943
      %v3961 = vmul.f32 %v3603, %v3943
      %v3962 = vmul.f32 %v3606, %v3943
      %v3963 = vmul.f32 %v3611, %v3943
      %v3964 = vmul.f32 %v3614, %v3943
      %v3965 = vmul.f32 %v3619, %v3943
      %v3966 = vmul.f32 %v3622, %v3943
      %v3967 = vmul.f32 %v3627, %v3943
      %v3968 = vmul.f32 %v3630, %v3943
      %v3969 = vmul.f32 %v3635, %v3943
      %v3970 = vmul.f32 %v3638, %v3943
      %v3971 = vmul.f32 %v3643, %v3943
      %v3972 = vmul.f32 %v3646, %v3943
      %v3973 = vmul.f32 %v3651, %v3943
      %v3974 = vmul.f32 %v3654, %v3943
      %v3975 = vmul.f32 %v3659, %v3943
      %v3976 = vmul.f32 %v3662, %v3943
      %v3978 = vlaneseq
      %v3979 = vshrl.u32 %v3978, 7
      %v3980 = vsub.s32 0, %v3979
      %v3981 = vrot.slane %v3938, %v3980
      %v3983 = vadd.f32 %v3945, %v3981
      %v3984 = vadd.f32 %v3946, %v3981
      %v3985 = vadd.f32 %v3947, %v3981
      %v3986 = vadd.f32 %v3948, %v3981
      %v3987 = vadd.f32 %v3949, %v3981
      %v3988 = vadd.f32 %v3950, %v3981
      %v3989 = vadd.f32 %v3951, %v3981
      %v3990 = vadd.f32 %v3952, %v3981
      %v3991 = vadd.f32 %v3953, %v3981
      %v3992 = vadd.f32 %v3954, %v3981
      %v3993 = vadd.f32 %v3955, %v3981
      %v3994 = vadd.f32 %v3956, %v3981
      %v3995 = vadd.f32 %v3957, %v3981
      %v3996 = vadd.f32 %v3958, %v3981
      %v3997 = vadd.f32 %v3959, %v3981
      %v3998 = vadd.f32 %v3960, %v3981
      %v3999 = vadd.f32 %v3961, %v3981
      %v4000 = vadd.f32 %v3962, %v3981
      %v4001 = vadd.f32 %v3963, %v3981
      %v4002 = vadd.f32 %v3964, %v3981
      %v4003 = vadd.f32 %v3965, %v3981
      %v4004 = vadd.f32 %v3966, %v3981
      %v4005 = vadd.f32 %v3967, %v3981
      %v4006 = vadd.f32 %v3968, %v3981
      %v4007 = vadd.f32 %v3969, %v3981
      %v4008 = vadd.f32 %v3970, %v3981
      %v4009 = vadd.f32 %v3971, %v3981
      %v4010 = vadd.f32 %v3972, %v3981
      %v4011 = vadd.f32 %v3973, %v3981
      %v4012 = vadd.f32 %v3974, %v3981
      %v4013 = vadd.f32 %v3975, %v3981
      %v4014 = vadd.f32 %v3976, %v3981
      %v4015 = vmax.f32 %v3983, 0.0
      %v4016 = vmax.f32 %v3984, 0.0
      %v4017 = vmax.f32 %v3985, 0.0
      %v4018 = vmax.f32 %v3986, 0.0
      %v4019 = vmax.f32 %v3987, 0.0
      %v4020 = vmax.f32 %v3988, 0.0
      %v4021 = vmax.f32 %v3989, 0.0
      %v4022 = vmax.f32 %v3990, 0.0
      %v4023 = vmax.f32 %v3991, 0.0
      %v4024 = vmax.f32 %v3992, 0.0
      %v4025 = vmax.f32 %v3993, 0.0
      %v4026 = vmax.f32 %v3994, 0.0
      %v4027 = vmax.f32 %v3995, 0.0
      %v4028 = vmax.f32 %v3996, 0.0
      %v4029 = vmax.f32 %v3997, 0.0
      %v4030 = vmax.f32 %v3998, 0.0
      %v4031 = vmax.f32 %v3999, 0.0
      %v4032 = vmax.f32 %v4000, 0.0
      %v4033 = vmax.f32 %v4001, 0.0
      %v4034 = vmax.f32 %v4002, 0.0
      %v4035 = vmax.f32 %v4003, 0.0
      %v4036 = vmax.f32 %v4004, 0.0
      %v4037 = vmax.f32 %v4005, 0.0
      %v4038 = vmax.f32 %v4006, 0.0
      %v4039 = vmax.f32 %v4007, 0.0
      %v4040 = vmax.f32 %v4008, 0.0
      %v4041 = vmax.f32 %v4009, 0.0
      %v4042 = vmax.f32 %v4010, 0.0
      %v4043 = vmax.f32 %v4011, 0.0
      %v4044 = vmax.f32 %v4012, 0.0
      %v4045 = vmax.f32 %v4013, 0.0
      %v4046 = vmax.f32 %v4014, 0.0
      %v4047 = vpack.c.bf16 %v4016, %v4015
      %v4048 = vpack.c.bf16 %v4018, %v4017
      %v4049 = vpack.c.bf16 %v4020, %v4019
      %v4050 = vpack.c.bf16 %v4022, %v4021
      %v4051 = vpack.c.bf16 %v4024, %v4023
      %v4052 = vpack.c.bf16 %v4026, %v4025
      %v4053 = vpack.c.bf16 %v4028, %v4027
      %v4054 = vpack.c.bf16 %v4030, %v4029
      %v4055 = vpack.c.bf16 %v4032, %v4031
      %v4056 = vpack.c.bf16 %v4034, %v4033
      %v4057 = vpack.c.bf16 %v4036, %v4035
      %v4058 = vpack.c.bf16 %v4038, %v4037
      %v4059 = vpack.c.bf16 %v4040, %v4039
      %v4060 = vpack.c.bf16 %v4042, %v4041
      %v4061 = vpack.c.bf16 %v4044, %v4043
      %v4062 = vpack.c.bf16 %v4046, %v4045
      %v4079 = vunpack.c.l.b16 %v4047
      %v4080 = vunpack.c.h.b16 %v4047
      %v4081 = vunpack.c.l.b16 %v4048
      %v4082 = vunpack.c.h.b16 %v4048
      %v4083 = vunpack.c.l.b16 %v4049
      %v4084 = vunpack.c.h.b16 %v4049
      %v4085 = vunpack.c.l.b16 %v4050
      %v4086 = vunpack.c.h.b16 %v4050
      %v4087 = vunpack.c.l.b16 %v4051
      %v4088 = vunpack.c.h.b16 %v4051
      %v4089 = vunpack.c.l.b16 %v4052
      %v4090 = vunpack.c.h.b16 %v4052
      %v4091 = vunpack.c.l.b16 %v4053
      %v4092 = vunpack.c.h.b16 %v4053
      %v4093 = vunpack.c.l.b16 %v4054
      %v4094 = vunpack.c.h.b16 %v4054
      %v4095 = vunpack.c.l.b16 %v4055
      %v4096 = vunpack.c.h.b16 %v4055
      %v4097 = vunpack.c.l.b16 %v4056
      %v4098 = vunpack.c.h.b16 %v4056
      %v4099 = vunpack.c.l.b16 %v4057
      %v4100 = vunpack.c.h.b16 %v4057
      %v4101 = vunpack.c.l.b16 %v4058
      %v4102 = vunpack.c.h.b16 %v4058
      %v4103 = vunpack.c.l.b16 %v4059
      %v4104 = vunpack.c.h.b16 %v4059
      %v4105 = vunpack.c.l.b16 %v4060
      %v4106 = vunpack.c.h.b16 %v4060
      %v4107 = vunpack.c.l.b16 %v4061
      %v4108 = vunpack.c.h.b16 %v4061
      %v4109 = vunpack.c.l.b16 %v4062
      %v4110 = vunpack.c.h.b16 %v4062
      %v4111 = vpack.c.b16 %v4079, %v4079
      %v4112 = vpack.c.b16 %v4080, %v4080
      %v4113 = vpack.c.b16 %v4081, %v4081
      %v4114 = vpack.c.b16 %v4082, %v4082
      %v4115 = vpack.c.b16 %v4083, %v4083
      %v4116 = vpack.c.b16 %v4084, %v4084
      %v4117 = vpack.c.b16 %v4085, %v4085
      %v4118 = vpack.c.b16 %v4086, %v4086
      %v4119 = vpack.c.b16 %v4087, %v4087
      %v4120 = vpack.c.b16 %v4088, %v4088
      %v4121 = vpack.c.b16 %v4089, %v4089
      %v4122 = vpack.c.b16 %v4090, %v4090
      %v4123 = vpack.c.b16 %v4091, %v4091
      %v4124 = vpack.c.b16 %v4092, %v4092
      %v4125 = vpack.c.b16 %v4093, %v4093
      %v4126 = vpack.c.b16 %v4094, %v4094
      %v4127 = vpack.c.b16 %v4095, %v4095
      %v4128 = vpack.c.b16 %v4096, %v4096
      %v4129 = vpack.c.b16 %v4097, %v4097
      %v4130 = vpack.c.b16 %v4098, %v4098
      %v4131 = vpack.c.b16 %v4099, %v4099
      %v4132 = vpack.c.b16 %v4100, %v4100
      %v4133 = vpack.c.b16 %v4101, %v4101
      %v4134 = vpack.c.b16 %v4102, %v4102
      %v4135 = vpack.c.b16 %v4103, %v4103
      %v4136 = vpack.c.b16 %v4104, %v4104
      %v4137 = vpack.c.b16 %v4105, %v4105
      %v4138 = vpack.c.b16 %v4106, %v4106
      %v4139 = vpack.c.b16 %v4107, %v4107
      %v4140 = vpack.c.b16 %v4108, %v4108
      %v4141 = vpack.c.b16 %v4109, %v4109
      %v4142 = vpack.c.b16 %v4110, %v4110
      %vm4175 = vcmask 257024
      %4176 = vst.msk [vmem:[%s406] sm:$0xf] %vm4175, %v4111
      %4177 = vst.msk [vmem:[%s406 + $0x4] sm:$0xf] %vm4175, %v4112
      %4178 = vst.msk [vmem:[%s406 + $0x8] sm:$0xf] %vm4175, %v4113
      %4179 = vst.msk [vmem:[%s406 + $0xc] sm:$0xf] %vm4175, %v4114
      %4180 = vst.msk [vmem:[%s406 + $0x10] sm:$0xf] %vm4175, %v4115
      %4181 = vst.msk [vmem:[%s406 + $0x14] sm:$0xf] %vm4175, %v4116
      %4182 = vst.msk [vmem:[%s406 + $0x18] sm:$0xf] %vm4175, %v4117
      %4183 = vst.msk [vmem:[%s406 + $0x1c] sm:$0xf] %vm4175, %v4118
      %4184 = vst.msk [vmem:[%s406 + $0x20] sm:$0xf] %vm4175, %v4119
      %4185 = vst.msk [vmem:[%s406 + $0x24] sm:$0xf] %vm4175, %v4120
      %4186 = vst.msk [vmem:[%s406 + $0x28] sm:$0xf] %vm4175, %v4121
      %4187 = vst.msk [vmem:[%s406 + $0x2c] sm:$0xf] %vm4175, %v4122
      %4188 = vst.msk [vmem:[%s406 + $0x30] sm:$0xf] %vm4175, %v4123
      %4189 = vst.msk [vmem:[%s406 + $0x34] sm:$0xf] %vm4175, %v4124
      %4190 = vst.msk [vmem:[%s406 + $0x38] sm:$0xf] %vm4175, %v4125
      %4191 = vst.msk [vmem:[%s406 + $0x3c] sm:$0xf] %vm4175, %v4126
      %4192 = vst.msk [vmem:[%s406 + $0x40] sm:$0xf] %vm4175, %v4127
      %4193 = vst.msk [vmem:[%s406 + $0x44] sm:$0xf] %vm4175, %v4128
      %4194 = vst.msk [vmem:[%s406 + $0x48] sm:$0xf] %vm4175, %v4129
      %4195 = vst.msk [vmem:[%s406 + $0x4c] sm:$0xf] %vm4175, %v4130
      %4196 = vst.msk [vmem:[%s406 + $0x50] sm:$0xf] %vm4175, %v4131
      %4197 = vst.msk [vmem:[%s406 + $0x54] sm:$0xf] %vm4175, %v4132
      %4198 = vst.msk [vmem:[%s406 + $0x58] sm:$0xf] %vm4175, %v4133
      %4199 = vst.msk [vmem:[%s406 + $0x5c] sm:$0xf] %vm4175, %v4134
      %4200 = vst.msk [vmem:[%s406 + $0x60] sm:$0xf] %vm4175, %v4135
      %4201 = vst.msk [vmem:[%s406 + $0x64] sm:$0xf] %vm4175, %v4136
      %4202 = vst.msk [vmem:[%s406 + $0x68] sm:$0xf] %vm4175, %v4137
      %4203 = vst.msk [vmem:[%s406 + $0x6c] sm:$0xf] %vm4175, %v4138
      %4204 = vst.msk [vmem:[%s406 + $0x70] sm:$0xf] %vm4175, %v4139
      %4205 = vst.msk [vmem:[%s406 + $0x74] sm:$0xf] %vm4175, %v4140
      %4206 = vst.msk [vmem:[%s406 + $0x78] sm:$0xf] %vm4175, %v4141
      %4207 = vst.msk [vmem:[%s406 + $0x7c] sm:$0xf] %vm4175, %v4142
      %p4208 = scmp.lt.s32.totalorder %s22, 1
      %s4209 = scalar_select %p4208, %s22, 1
      %s4210 = smul.addr %s4209, 32
      %s4211 = smul.addr %s4210, 4
      %s4212 = scalar_lea.vmem %s11, %s4211
      // Predicated region
      $region65: #{tpu_custom_call.1} parent=63 // pred_check
        %p4213 = pneg %p281
      $region66: #{tpu_custom_call.1} parent=63 // pred_check_branch
        %4215 = sbr.rel (%p4213) target = $region68
      $region67: #{tpu_custom_call.1} parent=63 // pred_region
        _
      $region68: #{tpu_custom_call.1} parent=63 // pred_fallthru
        _
    $region64: #{tpu_custom_call.1} parent=5 // pred_fallthru
      _
    %p4216 = scmp.le.s32.totalorder 2, %s17
    // Predicated region
    $region69: #{tpu_custom_call.1} parent=5 // pred_check
      %p4217 = pneg %p4216
    $region70: #{tpu_custom_call.1} parent=5 // pred_check_branch
      %4219 = sbr.rel (%p4217) target = $region72
    $region71: #{tpu_custom_call.1} parent=5 // pred_region
      %s4220 = ssub.s32 %s17, 2
      // Predicated region
      $region73: #{tpu_custom_call.1} parent=71 // pred_check
        %p4221 = pneg %p287
      $region74: #{tpu_custom_call.1} parent=71 // pred_check_branch
        %4223 = sbr.rel (%p4221) target = $region76
      $region75: #{tpu_custom_call.1} parent=71 // pred_region
        %p4224 = scmp.lt.s32.totalorder %s23, 1
        %s4225 = scalar_select %p4224, %s23, 1
        %s4226 = smul.addr %s4225, 32
        %s4227 = smul.addr %s4226, 4
        %s4228 = scalar_lea.vmem %s11, %s4227
      $region76: #{tpu_custom_call.1} parent=71 // pred_fallthru
        _
    $region72: #{tpu_custom_call.1} parent=5 // pred_fallthru
      _
  $region6: #{tpu_custom_call.1} parent=0 // loop_footer
    %s21 = sadd.s32 1, %s17
  $region7: #{tpu_custom_call.1} parent=0 // loop_footer_branch
    %16 = sbr.rel target = $region3
  $region8: #{tpu_custom_call.1} parent=0 // loop_exit
    _

</llo_original>
